<compile_context>
chip_gen: v7x
topology: tpu7x:2x2x1
jax: 0.10.0
libtpu: 0.0.40
codegen_flags: <defaults>
</compile_context>

<pallas_src>
import jax
import jax.numpy as jnp
from jax.experimental import pallas as pl
from jax.experimental.pallas import tpu as pltpu

N_NODES = 16                 # nodes per graph
USER_DIM = 8                 # user_feature_dim
POST_DIM = 8                 # post_feature_dim
IN_DIM = USER_DIM + POST_DIM # fused activation input width (16)
HIDDEN = 16                  # hidden_dim
OUT_DIM = 4                  # output_dim
HEADS = 4                    # num_heads
NEG_SLOPE = 0.2              # PyG GATConv leaky_relu default
BATCH = 8                    # graphs per call (8 * 16 = 128 rows)

# ---- packed parameter layouts -------------------------------------------------
# w64 [W64_ROWS, HEADS*HIDDEN]: 64-lane-wide matrices.
W1_OFF = 0                   # rows 0..15 : W1 padded to IN_DIM rows (post rows are zero)
ASRC1_OFF = IN_DIM           # rows 16..19: per-head a_src, block-diagonal over lanes
W64_ROWS = 24                # padded to a multiple of 8 sublanes

# m16 [M16_ROWS, HIDDEN]: 16-lane-wide matrices, every block starts on an 8-row boundary.
W2_OFF = 0                            # [HEADS*HIDDEN, HIDDEN]  = rows 0..63
F1U_OFF = W2_OFF + HEADS * HIDDEN     # 64: fc1 weight for x_user  [HIDDEN, HIDDEN]
F1P_OFF = F1U_OFF + HIDDEN            # 80: fc1 weight for post, padded to IN_DIM rows
F2_OFF = F1P_OFF + IN_DIM             # 96: fc2 weight lane-padded [HIDDEN, HIDDEN]
M16_ROWS = F2_OFF + HIDDEN            # 112

# vecs [VEC_ROWS, HIDDEN]: bias / attention vectors, one row each.
V_ADST1 = 0                  # rows 0..3   a_dst per head (GAT1)
V_B1 = V_ADST1 + HEADS       # rows 4..7   bias per head  (GAT1)
V_ASRC2 = V_B1 + HEADS       # 8           a_src (GAT2)
V_ADST2 = V_ASRC2 + 1        # 9           a_dst (GAT2)
V_B2 = V_ADST2 + 1           # 10          bias  (GAT2)
V_F1B = V_B2 + 1             # 11          fc1 bias
V_F2B = V_F1B + 1            # 12          fc2 bias (lane-padded)
VEC_ROWS = 16                # padded to a multiple of 8 sublanes


def _attention_aggregate(h, alpha_dst, alpha_src_row, adj):
    """Masked GAT softmax + aggregation.

    h: [R, H], alpha_dst: [R, 1], alpha_src_row: [1, R], adj[dst, src]: [R, R] in {0,1}
    (block-diagonal across graphs, with self loops)."""
    e = alpha_dst + alpha_src_row                         # e[i,j] = a_d.h_i + a_s.h_j
    e = jnp.where(e > 0, e, NEG_SLOPE * e)                # leaky relu
    e = jnp.where(adj > 0, e, -1e30)                      # mask non-edges / cross-graph
    m = jnp.max(e, axis=-1, keepdims=True)
    p = jnp.exp(e - m) * adj
    denom = jnp.maximum(jnp.sum(p, axis=-1, keepdims=True), 1e-20)
    attn = p * pl.reciprocal(denom, approx=True)          # divide on EUP
    return jnp.dot(attn, h, preferred_element_type=jnp.float32)   # [R, H] MXU matmul


def gat_model_kernel(xin_ref, adj_ref, w64_ref, m16_ref, vec_ref, out_ref):
    xin = xin_ref[0]         # [R, IN_DIM]   = [x_user | post]
    adj = adj_ref[0]         # [R, R]        block-diagonal adjacency
    vecs = vec_ref[...]      # [VEC_ROWS, HIDDEN]

    # ---- GAT layer 1: fused W1 for all heads (post rows of W1 are zero) ----
    h1 = jnp.dot(xin, w64_ref[W1_OFF:W1_OFF + IN_DIM, :],
                 preferred_element_type=jnp.float32)                      # [R, HEADS*HIDDEN]
    # all per-head alpha_src rows in one contraction (block-diag a_src): [HEADS, R]
    asrc_rows = jnp.einsum('oh,nh->on',
                           w64_ref[ASRC1_OFF:ASRC1_OFF + HEADS, :], h1,
                           preferred_element_type=jnp.float32)

    head_outs = []
    for k in range(HEADS):
        h_k = h1[:, k * HIDDEN:(k + 1) * HIDDEN]                          # [R, HIDDEN]
        a_dst = vecs[V_ADST1 + k:V_ADST1 + k + 1, :]                      # [1, HIDDEN]
        alpha_dst = jnp.sum(h_k * a_dst, axis=-1, keepdims=True)          # [R, 1] (VPU)
        alpha_src_row = asrc_rows[k:k + 1, :]                             # [1, R]
        o_k = _attention_aggregate(h_k, alpha_dst, alpha_src_row, adj)    # [R, HIDDEN]
        head_outs.append(jnp.maximum(o_k + vecs[V_B1 + k:V_B1 + k + 1, :], 0.0))

    # ---- GAT layer 2 input: lane-concat heads, one fused W2 matmul ----
    x1 = jnp.concatenate(head_outs, axis=-1)                              # [R, HEADS*HIDDEN]
    h2 = jnp.dot(x1, m16_ref[W2_OFF:W2_OFF + HEADS * HIDDEN, :],
                 preferred_element_type=jnp.float32)                      # [R, HIDDEN]

    # ---- GAT layer 2 (heads=1, concat=False) + ReLU ----
    a_src2 = vecs[V_ASRC2:V_ASRC2 + 1, :]
    a_dst2 = vecs[V_ADST2:V_ADST2 + 1, :]
    alpha_dst2 = jnp.sum(h2 * a_dst2, axis=-1, keepdims=True)             # [R, 1]
    alpha_src2 = jnp.einsum('oh,nh->on', a_src2, h2,
                            preferred_element_type=jnp.float32)           # [1, R]
    o2 = _attention_aggregate(h2, alpha_dst2, alpha_src2, adj)
    x2 = jnp.maximum(o2 + vecs[V_B2:V_B2 + 1, :], 0.0)                    # [R, HIDDEN]

    # ---- fc1 on cat([x_user, post]) via split weight (post path uses zero-padded
    #      rows so the fused xin buffer is consumed without lane slicing), ReLU ----
    z = (jnp.dot(x2, m16_ref[F1U_OFF:F1U_OFF + HIDDEN, :],
                 preferred_element_type=jnp.float32)
         + jnp.dot(xin, m16_ref[F1P_OFF:F1P_OFF + IN_DIM, :],
                   preferred_element_type=jnp.float32)
         + vecs[V_F1B:V_F1B + 1, :])
    z = jnp.maximum(z, 0.0)

    # ---- fc2 + sigmoid; write the lane-padded [R, HIDDEN] slab (first OUT_DIM lanes
    #      valid), the wrapper slices to OUT_DIM ----
    y = (jnp.dot(z, m16_ref[F2_OFF:F2_OFF + HIDDEN, :],
                 preferred_element_type=jnp.float32)
         + vecs[V_F2B:V_F2B + 1, :])
    out_ref[0] = 1.0 / (1.0 + jnp.exp(-y))   # exact sigmoid


def gat_model_forward(user_features, post_features, adj, w64, m16, vecs, *, num_chunks=1):
    """user_features: [B,N,USER_DIM], post_features: [B,N,POST_DIM], adj: [B,N,N].

    num_chunks=1 for v5e/v6e (single grid step); num_chunks=2 on v7x to shard the
    flattened batch across both TensorCores."""
    B, N, _ = user_features.shape
    assert N == N_NODES and B % num_chunks == 0
    gpc = B // num_chunks            # graphs per chunk
    R = gpc * N                      # rows (sublanes) per grid step

    # Fused activation input: one DMA per step.
    xin = jnp.concatenate([user_features, post_features], axis=-1)        # [B, N, IN_DIM]
    xin = xin.reshape(num_chunks, R, IN_DIM)

    # Block-diagonal adjacency per chunk: [num_chunks, R, R]; cross-graph entries 0.
    adj_c = adj.reshape(num_chunks, gpc, N, N)
    eye = jnp.eye(gpc, dtype=adj.dtype)
    adj_bd = jnp.einsum('gh,cgij->cgihj', eye, adj_c).reshape(num_chunks, R, R)

    out = pl.pallas_call(
        gat_model_kernel,
        out_shape=jax.ShapeDtypeStruct((num_chunks, R, HIDDEN), jnp.float32),
        grid=(num_chunks,),
        in_specs=[
            pl.BlockSpec((1, R, IN_DIM), lambda c: (c, 0, 0)),
            pl.BlockSpec((1, R, R), lambda c: (c, 0, 0)),
            # constant block index -> weights DMA'd once, resident across the grid
            pl.BlockSpec((W64_ROWS, HEADS * HIDDEN), lambda c: (0, 0)),
            pl.BlockSpec((M16_ROWS, HIDDEN), lambda c: (0, 0)),
            pl.BlockSpec((VEC_ROWS, HIDDEN), lambda c: (0, 0)),
        ],
        out_specs=pl.BlockSpec((1, R, HIDDEN), lambda c: (c, 0, 0)),
        compiler_params=pltpu.CompilerParams(
            dimension_semantics=("parallel",)),   # both TCs on v7x when num_chunks=2
    )(xin, adj_bd, w64, m16, vecs)

    # Lane-dense store in kernel; the OUT_DIM slice is free layout plumbing here.
    return out[..., :OUT_DIM].reshape(B, N, OUT_DIM)


def pack_params(p):
    """Pack the 13 small parameter arrays into three contiguous f32 buffers."""
    # --- w64 [W64_ROWS, HEADS*HIDDEN] ---
    w1_pad = jnp.concatenate(
        [p["w1"], jnp.zeros((IN_DIM - USER_DIM, HEADS * HIDDEN), jnp.float32)], axis=0)
    # block-diagonal a_src for GAT1: row k has a_src1[k] in lanes [k*HIDDEN:(k+1)*HIDDEN]
    asrc_bd = (jnp.eye(HEADS, dtype=jnp.float32)[:, :, None]
               * p["a_src1"][:, None, :]).reshape(HEADS, HEADS * HIDDEN)
    w64 = jnp.concatenate(
        [w1_pad, asrc_bd,
         jnp.zeros((W64_ROWS - IN_DIM - HEADS, HEADS * HIDDEN), jnp.float32)], axis=0)

    # --- m16 [M16_ROWS, HIDDEN] ---
    f1p_pad = jnp.concatenate(
        [jnp.zeros((USER_DIM, HIDDEN), jnp.float32), p["fc1_w_post"]], axis=0)
    fc2_w_pad = jnp.pad(p["fc2_w"], ((0, 0), (0, HIDDEN - OUT_DIM)))
    m16 = jnp.concatenate([p["w2"], p["fc1_w_user"], f1p_pad, fc2_w_pad], axis=0)

    # --- vecs [VEC_ROWS, HIDDEN] ---
    fc2_b_pad = jnp.pad(p["fc2_b"], ((0, 0), (0, HIDDEN - OUT_DIM)))
    vecs = jnp.concatenate(
        [p["a_dst1"], p["b1"].reshape(HEADS, HIDDEN),
         p["a_src2"], p["a_dst2"], p["b2"], p["fc1_b"], fc2_b_pad,
         jnp.zeros((VEC_ROWS - 13, HIDDEN), jnp.float32)], axis=0)

    assert w64.shape == (W64_ROWS, HEADS * HIDDEN)
    assert m16.shape == (M16_ROWS, HIDDEN)
    assert vecs.shape == (VEC_ROWS, HIDDEN)
    return w64, m16, vecs


def build_adjacency(edge_index, num_nodes):
    # adj[dst, src] = 1 for each edge, plus self loops (GATConv default).
    adj = jnp.zeros((num_nodes, num_nodes), jnp.float32)
    adj = adj.at[edge_index[1], edge_index[0]].set(1.0)
    idx = jnp.arange(num_nodes)
    adj = adj.at[idx, idx].set(1.0)
    return adj


if __name__ == "__main__":
    key = jax.random.PRNGKey(0)
    keys = jax.random.split(key, 16)

    def init(k, shape, scale=0.1):
        return jax.random.normal(k, shape, jnp.float32) * scale

    params = {
        # GATConv(user_feature_dim, hidden, heads=4, concat=True) -- head-major columns
        "w1": init(keys[0], (USER_DIM, HEADS * HIDDEN)),
        "a_src1": init(keys[1], (HEADS, HIDDEN)),
        "a_dst1": init(keys[2], (HEADS, HIDDEN)),
        "b1": init(keys[3], (1, HEADS * HIDDEN)),
        # GATConv(hidden*4, hidden, heads=1, concat=False)
        "w2": init(keys[4], (HEADS * HIDDEN, HIDDEN)),
        "a_src2": init(keys[5], (1, HIDDEN)),
        "a_dst2": init(keys[6], (1, HIDDEN)),
        "b2": init(keys[7], (1, HIDDEN)),
        # fc1: Linear(hidden + post_feature_dim, hidden), weight split [x_user | post]
        "fc1_w_user": init(keys[8], (HIDDEN, HIDDEN)),
        "fc1_w_post": init(keys[9], (POST_DIM, HIDDEN)),
        "fc1_b": init(keys[10], (1, HIDDEN)),
        # fc2: Linear(hidden, output_dim)
        "fc2_w": init(keys[11], (HIDDEN, OUT_DIM)),
        "fc2_b": init(keys[12], (1, OUT_DIM)),
    }

    user_features = jax.random.normal(keys[13], (BATCH, N_NODES, USER_DIM), jnp.float32)
    post_features = jax.random.normal(keys[14], (BATCH, N_NODES, POST_DIM), jnp.float32)

    # Deterministic bidirectional ring graph, shared by all graphs in the batch.
    src = jnp.arange(N_NODES)
    dst = (src + 1) % N_NODES
    edge_index = jnp.stack([jnp.concatenate([src, dst]),
                            jnp.concatenate([dst, src])])
    adj1 = build_adjacency(edge_index, N_NODES)
    adj = jnp.broadcast_to(adj1, (BATCH, N_NODES, N_NODES))

    w64, m16, vecs = pack_params(params)

    out = gat_model_forward(user_features, post_features, adj, w64, m16, vecs,
                            num_chunks=1)   # use num_chunks=2 on v7x (2 TensorCores)
    jax.block_until_ready(out)
    assert out.shape == (BATCH, N_NODES, OUT_DIM)
    print("KERNEL_OK")
</pallas_src>

<mosaic_0001>
module attributes {stable_mosaic.version = 11 : i64} {
  func.func @gat_model_kernel(%arg0: i32, %arg1: memref<1x128x16xf32, #tpu.memory_space<vmem>>, %arg2: memref<1x128x128xf32, #tpu.memory_space<vmem>>, %arg3: memref<24x64xf32, #tpu.memory_space<vmem>>, %arg4: memref<112x16xf32, #tpu.memory_space<vmem>>, %arg5: memref<16x16xf32, #tpu.memory_space<vmem>>, %arg6: memref<1x128x16xf32, #tpu.memory_space<vmem>>) attributes {dimension_semantics = [#tpu.dimension_semantics<parallel>], iteration_bounds = array<i64: 1>, scalar_prefetch = 0 : i64, scratch_operands = 0 : i64, tpu.core_type = #tpu.core_type<tc>, window_params = [{transform_indices = @transform_0, window_bounds = array<i64: 1, 128, 16>}, {transform_indices = @transform_1, window_bounds = array<i64: 1, 128, 128>}, {pipeline_mode = #tpu.pipeline_mode<synchronous>, transform_indices = @transform_2, window_bounds = array<i64: 24, 64>}, {pipeline_mode = #tpu.pipeline_mode<synchronous>, transform_indices = @transform_3, window_bounds = array<i64: 112, 16>}, {pipeline_mode = #tpu.pipeline_mode<synchronous>, transform_indices = @transform_4, window_bounds = array<i64: 16, 16>}, {transform_indices = @transform_5, window_bounds = array<i64: 1, 128, 16>}]} {
    %c0 = arith.constant 0 : index
    %c0_0 = arith.constant 0 : index
    %c0_1 = arith.constant 0 : index
    %0 = vector.load %arg1[%c0, %c0_0, %c0_1] : memref<1x128x16xf32, #tpu.memory_space<vmem>>, vector<1x128x16xf32>
    %1 = vector.shape_cast %0 : vector<1x128x16xf32> to vector<128x16xf32>
    %c0_2 = arith.constant 0 : index
    %c0_3 = arith.constant 0 : index
    %c0_4 = arith.constant 0 : index
    %2 = vector.load %arg2[%c0_2, %c0_3, %c0_4] : memref<1x128x128xf32, #tpu.memory_space<vmem>>, vector<1x128x128xf32>
    %3 = vector.shape_cast %2 : vector<1x128x128xf32> to vector<128x128xf32>
    %c0_5 = arith.constant 0 : index
    %c0_6 = arith.constant 0 : index
    %4 = vector.load %arg5[%c0_5, %c0_6] : memref<16x16xf32, #tpu.memory_space<vmem>>, vector<16x16xf32>
    %c0_7 = arith.constant 0 : index
    %c0_8 = arith.constant 0 : index
    %5 = vector.load %arg3[%c0_7, %c0_8] : memref<24x64xf32, #tpu.memory_space<vmem>>, vector<16x64xf32>
    %cst = arith.constant dense<0.000000e+00> : vector<128x64xf32>
    %6 = tpu.matmul %1, %5, %cst {dimension_numbers = #tpu.dot_dimension_numbers<[1], [0], [0], [1], [0, 0, 1, 1], [], []>} : vector<128x16xf32>, vector<16x64xf32>, vector<128x64xf32> -> vector<128x64xf32>
    %c16 = arith.constant 16 : index
    %c0_9 = arith.constant 0 : index
    %7 = vector.load %arg3[%c16, %c0_9] : memref<24x64xf32, #tpu.memory_space<vmem>>, vector<4x64xf32>
    "tpu.trace_start"() <{level = 10 : i32, message = "oh,nh->on"}> : () -> ()
    %cst_10 = arith.constant dense<0.000000e+00> : vector<4x128xf32>
    %8 = tpu.matmul %7, %6, %cst_10 {dimension_numbers = #tpu.dot_dimension_numbers<[1], [1], [0], [0], [0, 0, 1, 0], [], []>} : vector<4x64xf32>, vector<128x64xf32>, vector<4x128xf32> -> vector<4x128xf32>
    "tpu.trace_stop"() : () -> ()
    %9 = vector.extract_strided_slice %6 {offsets = [0, 0], sizes = [128, 16], strides = [1, 1]} : vector<128x64xf32> to vector<128x16xf32>
    %10 = vector.extract_strided_slice %4 {offsets = [0, 0], sizes = [1, 16], strides = [1, 1]} : vector<16x16xf32> to vector<1x16xf32>
    %11 = vector.broadcast %10 : vector<1x16xf32> to vector<128x16xf32>
    %12 = arith.mulf %9, %11 : vector<128x16xf32>
    %cst_11 = arith.constant dense<0.000000e+00> : vector<128xf32>
    %13 = vector.multi_reduction <add>, %12, %cst_11 [1] : vector<128x16xf32> to vector<128xf32>
    %14 = vector.shape_cast %13 : vector<128xf32> to vector<128x1xf32>
    %15 = vector.extract_strided_slice %8 {offsets = [0, 0], sizes = [1, 128], strides = [1, 1]} : vector<4x128xf32> to vector<1x128xf32>
    %16 = vector.broadcast %14 : vector<128x1xf32> to vector<128x128xf32>
    %17 = vector.broadcast %15 : vector<1x128xf32> to vector<128x128xf32>
    %18 = arith.addf %16, %17 : vector<128x128xf32>
    %cst_12 = arith.constant 0.000000e+00 : f32
    %19 = vector.broadcast %cst_12 : f32 to vector<128x128xf32>
    %20 = arith.cmpf ogt, %18, %19 : vector<128x128xf32>
    %cst_13 = arith.constant 2.000000e-01 : f32
    %21 = vector.broadcast %cst_13 : f32 to vector<128x128xf32>
    %22 = arith.mulf %21, %18 : vector<128x128xf32>
    %23 = arith.select %20, %18, %22 : vector<128x128xi1>, vector<128x128xf32>
    %cst_14 = arith.constant 0.000000e+00 : f32
    %24 = vector.broadcast %cst_14 : f32 to vector<128x128xf32>
    %25 = arith.cmpf ogt, %3, %24 : vector<128x128xf32>
    %cst_15 = arith.constant -1.000000e+30 : f32
    %26 = vector.broadcast %cst_15 : f32 to vector<128x128xf32>
    %27 = arith.select %25, %23, %26 : vector<128x128xi1>, vector<128x128xf32>
    %cst_16 = arith.constant dense<0xFF800000> : vector<128xf32>
    %28 = vector.multi_reduction <maximumf>, %27, %cst_16 [1] : vector<128x128xf32> to vector<128xf32>
    %29 = vector.shape_cast %28 : vector<128xf32> to vector<128x1xf32>
    %30 = vector.broadcast %29 : vector<128x1xf32> to vector<128x128xf32>
    %31 = arith.subf %27, %30 : vector<128x128xf32>
    %32 = math.exp %31 : vector<128x128xf32>
    %33 = arith.mulf %32, %3 : vector<128x128xf32>
    %cst_17 = arith.constant dense<0.000000e+00> : vector<128xf32>
    %34 = vector.multi_reduction <add>, %33, %cst_17 [1] : vector<128x128xf32> to vector<128xf32>
    %35 = vector.shape_cast %34 : vector<128xf32> to vector<128x1xf32>
    %cst_18 = arith.constant 9.99999968E-21 : f32
    %36 = vector.broadcast %cst_18 : f32 to vector<128x1xf32>
    %37 = arith.maximumf %35, %36 : vector<128x1xf32>
    %38 = tpu.reciprocal %37 {approx = true} : vector<128x1xf32> -> vector<128x1xf32>
    %39 = vector.broadcast %38 : vector<128x1xf32> to vector<128x128xf32>
    %40 = arith.mulf %33, %39 : vector<128x128xf32>
    %cst_19 = arith.constant dense<0.000000e+00> : vector<128x16xf32>
    %41 = tpu.matmul %40, %9, %cst_19 {dimension_numbers = #tpu.dot_dimension_numbers<[1], [0], [0], [1], [0, 0, 1, 1], [], []>} : vector<128x128xf32>, vector<128x16xf32>, vector<128x16xf32> -> vector<128x16xf32>
    %42 = vector.extract_strided_slice %4 {offsets = [4, 0], sizes = [1, 16], strides = [1, 1]} : vector<16x16xf32> to vector<1x16xf32>
    %43 = vector.broadcast %42 : vector<1x16xf32> to vector<128x16xf32>
    %44 = arith.addf %41, %43 : vector<128x16xf32>
    %cst_20 = arith.constant 0.000000e+00 : f32
    %45 = vector.broadcast %cst_20 : f32 to vector<128x16xf32>
    %46 = arith.maximumf %44, %45 : vector<128x16xf32>
    %47 = vector.extract_strided_slice %6 {offsets = [0, 16], sizes = [128, 16], strides = [1, 1]} : vector<128x64xf32> to vector<128x16xf32>
    %48 = vector.extract_strided_slice %4 {offsets = [1, 0], sizes = [1, 16], strides = [1, 1]} : vector<16x16xf32> to vector<1x16xf32>
    %49 = vector.broadcast %48 : vector<1x16xf32> to vector<128x16xf32>
    %50 = arith.mulf %47, %49 : vector<128x16xf32>
    %cst_21 = arith.constant dense<0.000000e+00> : vector<128xf32>
    %51 = vector.multi_reduction <add>, %50, %cst_21 [1] : vector<128x16xf32> to vector<128xf32>
    %52 = vector.shape_cast %51 : vector<128xf32> to vector<128x1xf32>
    %53 = vector.extract_strided_slice %8 {offsets = [1, 0], sizes = [1, 128], strides = [1, 1]} : vector<4x128xf32> to vector<1x128xf32>
    %54 = vector.broadcast %52 : vector<128x1xf32> to vector<128x128xf32>
    %55 = vector.broadcast %53 : vector<1x128xf32> to vector<128x128xf32>
    %56 = arith.addf %54, %55 : vector<128x128xf32>
    %cst_22 = arith.constant 0.000000e+00 : f32
    %57 = vector.broadcast %cst_22 : f32 to vector<128x128xf32>
    %58 = arith.cmpf ogt, %56, %57 : vector<128x128xf32>
    %cst_23 = arith.constant 2.000000e-01 : f32
    %59 = vector.broadcast %cst_23 : f32 to vector<128x128xf32>
    %60 = arith.mulf %59, %56 : vector<128x128xf32>
    %61 = arith.select %58, %56, %60 : vector<128x128xi1>, vector<128x128xf32>
    %cst_24 = arith.constant 0.000000e+00 : f32
    %62 = vector.broadcast %cst_24 : f32 to vector<128x128xf32>
    %63 = arith.cmpf ogt, %3, %62 : vector<128x128xf32>
    %cst_25 = arith.constant -1.000000e+30 : f32
    %64 = vector.broadcast %cst_25 : f32 to vector<128x128xf32>
    %65 = arith.select %63, %61, %64 : vector<128x128xi1>, vector<128x128xf32>
    %cst_26 = arith.constant dense<0xFF800000> : vector<128xf32>
    %66 = vector.multi_reduction <maximumf>, %65, %cst_26 [1] : vector<128x128xf32> to vector<128xf32>
    %67 = vector.shape_cast %66 : vector<128xf32> to vector<128x1xf32>
    %68 = vector.broadcast %67 : vector<128x1xf32> to vector<128x128xf32>
    %69 = arith.subf %65, %68 : vector<128x128xf32>
    %70 = math.exp %69 : vector<128x128xf32>
    %71 = arith.mulf %70, %3 : vector<128x128xf32>
    %cst_27 = arith.constant dense<0.000000e+00> : vector<128xf32>
    %72 = vector.multi_reduction <add>, %71, %cst_27 [1] : vector<128x128xf32> to vector<128xf32>
    %73 = vector.shape_cast %72 : vector<128xf32> to vector<128x1xf32>
    %cst_28 = arith.constant 9.99999968E-21 : f32
    %74 = vector.broadcast %cst_28 : f32 to vector<128x1xf32>
    %75 = arith.maximumf %73, %74 : vector<128x1xf32>
    %76 = tpu.reciprocal %75 {approx = true} : vector<128x1xf32> -> vector<128x1xf32>
    %77 = vector.broadcast %76 : vector<128x1xf32> to vector<128x128xf32>
    %78 = arith.mulf %71, %77 : vector<128x128xf32>
    %cst_29 = arith.constant dense<0.000000e+00> : vector<128x16xf32>
    %79 = tpu.matmul %78, %47, %cst_29 {dimension_numbers = #tpu.dot_dimension_numbers<[1], [0], [0], [1], [0, 0, 1, 1], [], []>} : vector<128x128xf32>, vector<128x16xf32>, vector<128x16xf32> -> vector<128x16xf32>
    %80 = vector.extract_strided_slice %4 {offsets = [5, 0], sizes = [1, 16], strides = [1, 1]} : vector<16x16xf32> to vector<1x16xf32>
    %81 = vector.broadcast %80 : vector<1x16xf32> to vector<128x16xf32>
    %82 = arith.addf %79, %81 : vector<128x16xf32>
    %cst_30 = arith.constant 0.000000e+00 : f32
    %83 = vector.broadcast %cst_30 : f32 to vector<128x16xf32>
    %84 = arith.maximumf %82, %83 : vector<128x16xf32>
    %85 = vector.extract_strided_slice %6 {offsets = [0, 32], sizes = [128, 16], strides = [1, 1]} : vector<128x64xf32> to vector<128x16xf32>
    %86 = vector.extract_strided_slice %4 {offsets = [2, 0], sizes = [1, 16], strides = [1, 1]} : vector<16x16xf32> to vector<1x16xf32>
    %87 = vector.broadcast %86 : vector<1x16xf32> to vector<128x16xf32>
    %88 = arith.mulf %85, %87 : vector<128x16xf32>
    %cst_31 = arith.constant dense<0.000000e+00> : vector<128xf32>
    %89 = vector.multi_reduction <add>, %88, %cst_31 [1] : vector<128x16xf32> to vector<128xf32>
    %90 = vector.shape_cast %89 : vector<128xf32> to vector<128x1xf32>
    %91 = vector.extract_strided_slice %8 {offsets = [2, 0], sizes = [1, 128], strides = [1, 1]} : vector<4x128xf32> to vector<1x128xf32>
    %92 = vector.broadcast %90 : vector<128x1xf32> to vector<128x128xf32>
    %93 = vector.broadcast %91 : vector<1x128xf32> to vector<128x128xf32>
    %94 = arith.addf %92, %93 : vector<128x128xf32>
    %cst_32 = arith.constant 0.000000e+00 : f32
    %95 = vector.broadcast %cst_32 : f32 to vector<128x128xf32>
    %96 = arith.cmpf ogt, %94, %95 : vector<128x128xf32>
    %cst_33 = arith.constant 2.000000e-01 : f32
    %97 = vector.broadcast %cst_33 : f32 to vector<128x128xf32>
    %98 = arith.mulf %97, %94 : vector<128x128xf32>
    %99 = arith.select %96, %94, %98 : vector<128x128xi1>, vector<128x128xf32>
    %cst_34 = arith.constant 0.000000e+00 : f32
    %100 = vector.broadcast %cst_34 : f32 to vector<128x128xf32>
    %101 = arith.cmpf ogt, %3, %100 : vector<128x128xf32>
    %cst_35 = arith.constant -1.000000e+30 : f32
    %102 = vector.broadcast %cst_35 : f32 to vector<128x128xf32>
    %103 = arith.select %101, %99, %102 : vector<128x128xi1>, vector<128x128xf32>
    %cst_36 = arith.constant dense<0xFF800000> : vector<128xf32>
    %104 = vector.multi_reduction <maximumf>, %103, %cst_36 [1] : vector<128x128xf32> to vector<128xf32>
    %105 = vector.shape_cast %104 : vector<128xf32> to vector<128x1xf32>
    %106 = vector.broadcast %105 : vector<128x1xf32> to vector<128x128xf32>
    %107 = arith.subf %103, %106 : vector<128x128xf32>
    %108 = math.exp %107 : vector<128x128xf32>
    %109 = arith.mulf %108, %3 : vector<128x128xf32>
    %cst_37 = arith.constant dense<0.000000e+00> : vector<128xf32>
    %110 = vector.multi_reduction <add>, %109, %cst_37 [1] : vector<128x128xf32> to vector<128xf32>
    %111 = vector.shape_cast %110 : vector<128xf32> to vector<128x1xf32>
    %cst_38 = arith.constant 9.99999968E-21 : f32
    %112 = vector.broadcast %cst_38 : f32 to vector<128x1xf32>
    %113 = arith.maximumf %111, %112 : vector<128x1xf32>
    %114 = tpu.reciprocal %113 {approx = true} : vector<128x1xf32> -> vector<128x1xf32>
    %115 = vector.broadcast %114 : vector<128x1xf32> to vector<128x128xf32>
    %116 = arith.mulf %109, %115 : vector<128x128xf32>
    %cst_39 = arith.constant dense<0.000000e+00> : vector<128x16xf32>
    %117 = tpu.matmul %116, %85, %cst_39 {dimension_numbers = #tpu.dot_dimension_numbers<[1], [0], [0], [1], [0, 0, 1, 1], [], []>} : vector<128x128xf32>, vector<128x16xf32>, vector<128x16xf32> -> vector<128x16xf32>
    %118 = vector.extract_strided_slice %4 {offsets = [6, 0], sizes = [1, 16], strides = [1, 1]} : vector<16x16xf32> to vector<1x16xf32>
    %119 = vector.broadcast %118 : vector<1x16xf32> to vector<128x16xf32>
    %120 = arith.addf %117, %119 : vector<128x16xf32>
    %cst_40 = arith.constant 0.000000e+00 : f32
    %121 = vector.broadcast %cst_40 : f32 to vector<128x16xf32>
    %122 = arith.maximumf %120, %121 : vector<128x16xf32>
    %123 = vector.extract_strided_slice %6 {offsets = [0, 48], sizes = [128, 16], strides = [1, 1]} : vector<128x64xf32> to vector<128x16xf32>
    %124 = vector.extract_strided_slice %4 {offsets = [3, 0], sizes = [1, 16], strides = [1, 1]} : vector<16x16xf32> to vector<1x16xf32>
    %125 = vector.broadcast %124 : vector<1x16xf32> to vector<128x16xf32>
    %126 = arith.mulf %123, %125 : vector<128x16xf32>
    %cst_41 = arith.constant dense<0.000000e+00> : vector<128xf32>
    %127 = vector.multi_reduction <add>, %126, %cst_41 [1] : vector<128x16xf32> to vector<128xf32>
    %128 = vector.shape_cast %127 : vector<128xf32> to vector<128x1xf32>
    %129 = vector.extract_strided_slice %8 {offsets = [3, 0], sizes = [1, 128], strides = [1, 1]} : vector<4x128xf32> to vector<1x128xf32>
    %130 = vector.broadcast %128 : vector<128x1xf32> to vector<128x128xf32>
    %131 = vector.broadcast %129 : vector<1x128xf32> to vector<128x128xf32>
    %132 = arith.addf %130, %131 : vector<128x128xf32>
    %cst_42 = arith.constant 0.000000e+00 : f32
    %133 = vector.broadcast %cst_42 : f32 to vector<128x128xf32>
    %134 = arith.cmpf ogt, %132, %133 : vector<128x128xf32>
    %cst_43 = arith.constant 2.000000e-01 : f32
    %135 = vector.broadcast %cst_43 : f32 to vector<128x128xf32>
    %136 = arith.mulf %135, %132 : vector<128x128xf32>
    %137 = arith.select %134, %132, %136 : vector<128x128xi1>, vector<128x128xf32>
    %cst_44 = arith.constant 0.000000e+00 : f32
    %138 = vector.broadcast %cst_44 : f32 to vector<128x128xf32>
    %139 = arith.cmpf ogt, %3, %138 : vector<128x128xf32>
    %cst_45 = arith.constant -1.000000e+30 : f32
    %140 = vector.broadcast %cst_45 : f32 to vector<128x128xf32>
    %141 = arith.select %139, %137, %140 : vector<128x128xi1>, vector<128x128xf32>
    %cst_46 = arith.constant dense<0xFF800000> : vector<128xf32>
    %142 = vector.multi_reduction <maximumf>, %141, %cst_46 [1] : vector<128x128xf32> to vector<128xf32>
    %143 = vector.shape_cast %142 : vector<128xf32> to vector<128x1xf32>
    %144 = vector.broadcast %143 : vector<128x1xf32> to vector<128x128xf32>
    %145 = arith.subf %141, %144 : vector<128x128xf32>
    %146 = math.exp %145 : vector<128x128xf32>
    %147 = arith.mulf %146, %3 : vector<128x128xf32>
    %cst_47 = arith.constant dense<0.000000e+00> : vector<128xf32>
    %148 = vector.multi_reduction <add>, %147, %cst_47 [1] : vector<128x128xf32> to vector<128xf32>
    %149 = vector.shape_cast %148 : vector<128xf32> to vector<128x1xf32>
    %cst_48 = arith.constant 9.99999968E-21 : f32
    %150 = vector.broadcast %cst_48 : f32 to vector<128x1xf32>
    %151 = arith.maximumf %149, %150 : vector<128x1xf32>
    %152 = tpu.reciprocal %151 {approx = true} : vector<128x1xf32> -> vector<128x1xf32>
    %153 = vector.broadcast %152 : vector<128x1xf32> to vector<128x128xf32>
    %154 = arith.mulf %147, %153 : vector<128x128xf32>
    %cst_49 = arith.constant dense<0.000000e+00> : vector<128x16xf32>
    %155 = tpu.matmul %154, %123, %cst_49 {dimension_numbers = #tpu.dot_dimension_numbers<[1], [0], [0], [1], [0, 0, 1, 1], [], []>} : vector<128x128xf32>, vector<128x16xf32>, vector<128x16xf32> -> vector<128x16xf32>
    %156 = vector.extract_strided_slice %4 {offsets = [7, 0], sizes = [1, 16], strides = [1, 1]} : vector<16x16xf32> to vector<1x16xf32>
    %157 = vector.broadcast %156 : vector<1x16xf32> to vector<128x16xf32>
    %158 = arith.addf %155, %157 : vector<128x16xf32>
    %cst_50 = arith.constant 0.000000e+00 : f32
    %159 = vector.broadcast %cst_50 : f32 to vector<128x16xf32>
    %160 = arith.maximumf %158, %159 : vector<128x16xf32>
    %161 = tpu.concatenate %46, %84, %122, %160 in 1 : vector<128x16xf32>, vector<128x16xf32>, vector<128x16xf32>, vector<128x16xf32> -> vector<128x64xf32>
    %c0_51 = arith.constant 0 : index
    %c0_52 = arith.constant 0 : index
    %162 = vector.load %arg4[%c0_51, %c0_52] : memref<112x16xf32, #tpu.memory_space<vmem>>, vector<64x16xf32>
    %cst_53 = arith.constant dense<0.000000e+00> : vector<128x16xf32>
    %163 = tpu.matmul %161, %162, %cst_53 {dimension_numbers = #tpu.dot_dimension_numbers<[1], [0], [0], [1], [0, 0, 1, 1], [], []>} : vector<128x64xf32>, vector<64x16xf32>, vector<128x16xf32> -> vector<128x16xf32>
    %164 = vector.extract_strided_slice %4 {offsets = [8, 0], sizes = [1, 16], strides = [1, 1]} : vector<16x16xf32> to vector<1x16xf32>
    %165 = vector.extract_strided_slice %4 {offsets = [9, 0], sizes = [1, 16], strides = [1, 1]} : vector<16x16xf32> to vector<1x16xf32>
    %166 = vector.broadcast %165 : vector<1x16xf32> to vector<128x16xf32>
    %167 = arith.mulf %163, %166 : vector<128x16xf32>
    %cst_54 = arith.constant dense<0.000000e+00> : vector<128xf32>
    %168 = vector.multi_reduction <add>, %167, %cst_54 [1] : vector<128x16xf32> to vector<128xf32>
    %169 = vector.shape_cast %168 : vector<128xf32> to vector<128x1xf32>
    "tpu.trace_start"() <{level = 10 : i32, message = "oh,nh->on"}> : () -> ()
    %cst_55 = arith.constant dense<0.000000e+00> : vector<1x128xf32>
    %170 = tpu.matmul %164, %163, %cst_55 {dimension_numbers = #tpu.dot_dimension_numbers<[1], [1], [0], [0], [0, 0, 1, 0], [], []>} : vector<1x16xf32>, vector<128x16xf32>, vector<1x128xf32> -> vector<1x128xf32>
    "tpu.trace_stop"() : () -> ()
    %171 = vector.broadcast %169 : vector<128x1xf32> to vector<128x128xf32>
    %172 = vector.broadcast %170 : vector<1x128xf32> to vector<128x128xf32>
    %173 = arith.addf %171, %172 : vector<128x128xf32>
    %cst_56 = arith.constant 0.000000e+00 : f32
    %174 = vector.broadcast %cst_56 : f32 to vector<128x128xf32>
    %175 = arith.cmpf ogt, %173, %174 : vector<128x128xf32>
    %cst_57 = arith.constant 2.000000e-01 : f32
    %176 = vector.broadcast %cst_57 : f32 to vector<128x128xf32>
    %177 = arith.mulf %176, %173 : vector<128x128xf32>
    %178 = arith.select %175, %173, %177 : vector<128x128xi1>, vector<128x128xf32>
    %cst_58 = arith.constant 0.000000e+00 : f32
    %179 = vector.broadcast %cst_58 : f32 to vector<128x128xf32>
    %180 = arith.cmpf ogt, %3, %179 : vector<128x128xf32>
    %cst_59 = arith.constant -1.000000e+30 : f32
    %181 = vector.broadcast %cst_59 : f32 to vector<128x128xf32>
    %182 = arith.select %180, %178, %181 : vector<128x128xi1>, vector<128x128xf32>
    %cst_60 = arith.constant dense<0xFF800000> : vector<128xf32>
    %183 = vector.multi_reduction <maximumf>, %182, %cst_60 [1] : vector<128x128xf32> to vector<128xf32>
    %184 = vector.shape_cast %183 : vector<128xf32> to vector<128x1xf32>
    %185 = vector.broadcast %184 : vector<128x1xf32> to vector<128x128xf32>
    %186 = arith.subf %182, %185 : vector<128x128xf32>
    %187 = math.exp %186 : vector<128x128xf32>
    %188 = arith.mulf %187, %3 : vector<128x128xf32>
    %cst_61 = arith.constant dense<0.000000e+00> : vector<128xf32>
    %189 = vector.multi_reduction <add>, %188, %cst_61 [1] : vector<128x128xf32> to vector<128xf32>
    %190 = vector.shape_cast %189 : vector<128xf32> to vector<128x1xf32>
    %cst_62 = arith.constant 9.99999968E-21 : f32
    %191 = vector.broadcast %cst_62 : f32 to vector<128x1xf32>
    %192 = arith.maximumf %190, %191 : vector<128x1xf32>
    %193 = tpu.reciprocal %192 {approx = true} : vector<128x1xf32> -> vector<128x1xf32>
    %194 = vector.broadcast %193 : vector<128x1xf32> to vector<128x128xf32>
    %195 = arith.mulf %188, %194 : vector<128x128xf32>
    %cst_63 = arith.constant dense<0.000000e+00> : vector<128x16xf32>
    %196 = tpu.matmul %195, %163, %cst_63 {dimension_numbers = #tpu.dot_dimension_numbers<[1], [0], [0], [1], [0, 0, 1, 1], [], []>} : vector<128x128xf32>, vector<128x16xf32>, vector<128x16xf32> -> vector<128x16xf32>
    %197 = vector.extract_strided_slice %4 {offsets = [10, 0], sizes = [1, 16], strides = [1, 1]} : vector<16x16xf32> to vector<1x16xf32>
    %198 = vector.broadcast %197 : vector<1x16xf32> to vector<128x16xf32>
    %199 = arith.addf %196, %198 : vector<128x16xf32>
    %cst_64 = arith.constant 0.000000e+00 : f32
    %200 = vector.broadcast %cst_64 : f32 to vector<128x16xf32>
    %201 = arith.maximumf %199, %200 : vector<128x16xf32>
    %c64 = arith.constant 64 : index
    %c0_65 = arith.constant 0 : index
    %202 = vector.load %arg4[%c64, %c0_65] : memref<112x16xf32, #tpu.memory_space<vmem>>, vector<16x16xf32>
    %cst_66 = arith.constant dense<0.000000e+00> : vector<128x16xf32>
    %203 = tpu.matmul %201, %202, %cst_66 {dimension_numbers = #tpu.dot_dimension_numbers<[1], [0], [0], [1], [0, 0, 1, 1], [], []>} : vector<128x16xf32>, vector<16x16xf32>, vector<128x16xf32> -> vector<128x16xf32>
    %c80 = arith.constant 80 : index
    %c0_67 = arith.constant 0 : index
    %204 = vector.load %arg4[%c80, %c0_67] : memref<112x16xf32, #tpu.memory_space<vmem>>, vector<16x16xf32>
    %cst_68 = arith.constant dense<0.000000e+00> : vector<128x16xf32>
    %205 = tpu.matmul %1, %204, %cst_68 {dimension_numbers = #tpu.dot_dimension_numbers<[1], [0], [0], [1], [0, 0, 1, 1], [], []>} : vector<128x16xf32>, vector<16x16xf32>, vector<128x16xf32> -> vector<128x16xf32>
    %206 = arith.addf %203, %205 : vector<128x16xf32>
    %207 = vector.extract_strided_slice %4 {offsets = [11, 0], sizes = [1, 16], strides = [1, 1]} : vector<16x16xf32> to vector<1x16xf32>
    %208 = vector.broadcast %207 : vector<1x16xf32> to vector<128x16xf32>
    %209 = arith.addf %206, %208 : vector<128x16xf32>
    %cst_69 = arith.constant 0.000000e+00 : f32
    %210 = vector.broadcast %cst_69 : f32 to vector<128x16xf32>
    %211 = arith.maximumf %209, %210 : vector<128x16xf32>
    %c96 = arith.constant 96 : index
    %c0_70 = arith.constant 0 : index
    %212 = vector.load %arg4[%c96, %c0_70] : memref<112x16xf32, #tpu.memory_space<vmem>>, vector<16x16xf32>
    %cst_71 = arith.constant dense<0.000000e+00> : vector<128x16xf32>
    %213 = tpu.matmul %211, %212, %cst_71 {dimension_numbers = #tpu.dot_dimension_numbers<[1], [0], [0], [1], [0, 0, 1, 1], [], []>} : vector<128x16xf32>, vector<16x16xf32>, vector<128x16xf32> -> vector<128x16xf32>
    %214 = vector.extract_strided_slice %4 {offsets = [12, 0], sizes = [1, 16], strides = [1, 1]} : vector<16x16xf32> to vector<1x16xf32>
    %215 = vector.broadcast %214 : vector<1x16xf32> to vector<128x16xf32>
    %216 = arith.addf %213, %215 : vector<128x16xf32>
    %cst_72 = arith.constant 0.000000e+00 : f32
    %217 = vector.broadcast %cst_72 : f32 to vector<128x16xf32>
    %218 = arith.subf %217, %216 : vector<128x16xf32>
    %219 = math.exp %218 : vector<128x16xf32>
    %cst_73 = arith.constant 1.000000e+00 : f32
    %220 = vector.broadcast %cst_73 : f32 to vector<128x16xf32>
    %221 = arith.addf %220, %219 : vector<128x16xf32>
    %cst_74 = arith.constant 1.000000e+00 : f32
    %222 = vector.broadcast %cst_74 : f32 to vector<128x16xf32>
    %223 = arith.divf %222, %221 : vector<128x16xf32>
    %c0_75 = arith.constant 0 : index
    %c0_76 = arith.constant 0 : index
    %c0_77 = arith.constant 0 : index
    %224 = vector.load %arg6[%c0_75, %c0_76, %c0_77] : memref<1x128x16xf32, #tpu.memory_space<vmem>>, vector<1x128x16xf32>
    %225 = vector.shape_cast %224 : vector<1x128x16xf32> to vector<128x16xf32>
    %226 = vector.shape_cast %223 : vector<128x16xf32> to vector<1x128x16xf32>
    tpu.vector_store %arg6[%c0_75, %c0_76, %c0_77], %226 {strides = array<i32>} : memref<1x128x16xf32, #tpu.memory_space<vmem>>, vector<1x128x16xf32>,
    return
  }
  func.func @transform_0(%arg0: i32) -> (i32, i32, i32) {
    %c0_i32 = arith.constant 0 : i32
    %c0_i32_0 = arith.constant 0 : i32
    %c0_i32_1 = arith.constant 0 : i32
    return %arg0, %c0_i32, %c0_i32_0 : i32, i32, i32
  }
  func.func @transform_1(%arg0: i32) -> (i32, i32, i32) {
    %c0_i32 = arith.constant 0 : i32
    %c0_i32_0 = arith.constant 0 : i32
    %c0_i32_1 = arith.constant 0 : i32
    return %arg0, %c0_i32, %c0_i32_0 : i32, i32, i32
  }
  func.func @transform_2(%arg0: i32) -> (i32, i32) {
    %c0_i32 = arith.constant 0 : i32
    %c0_i32_0 = arith.constant 0 : i32
    %c0_i32_1 = arith.constant 0 : i32
    return %c0_i32, %c0_i32_0 : i32, i32
  }
  func.func @transform_3(%arg0: i32) -> (i32, i32) {
    %c0_i32 = arith.constant 0 : i32
    %c0_i32_0 = arith.constant 0 : i32
    %c0_i32_1 = arith.constant 0 : i32
    return %c0_i32, %c0_i32_0 : i32, i32
  }
  func.func @transform_4(%arg0: i32) -> (i32, i32) {
    %c0_i32 = arith.constant 0 : i32
    %c0_i32_0 = arith.constant 0 : i32
    %c0_i32_1 = arith.constant 0 : i32
    return %c0_i32, %c0_i32_0 : i32, i32
  }
  func.func @transform_5(%arg0: i32) -> (i32, i32, i32) {
    %c0_i32 = arith.constant 0 : i32
    %c0_i32_0 = arith.constant 0 : i32
    %c0_i32_1 = arith.constant 0 : i32
    return %arg0, %c0_i32, %c0_i32_0 : i32, i32, i32
  }
}

</mosaic_0001>

<llo_original>
// kernel: tpu_custom_call.1
$region0: #{tpu_custom_call.1}
  #allocation0 [shape = 'u32[]', space=smem, size = 0x4, offset = 0x4, fixed_abs, tag = 'smem constant byte address 0x4 - core index']
  #allocation1 [shape = 'u32[144,128]{1,0:T(1,128)}', space=vmem, size = 0x12000, scoped, tag = 'internal scratch']
  %s0 = inlined_call_operand.vmem [shape: f32[1,128,16], index: 0, kind: input, shape index: {}]
  %s1 = inlined_call_operand.vmem [shape: f32[1,128,128], index: 1, kind: input, shape index: {}]
  %s2 = inlined_call_operand.vmem [shape: f32[24,64], index: 2, kind: input, shape index: {}]
  %s3 = inlined_call_operand.vmem [shape: f32[112,16], index: 3, kind: input, shape index: {}]
  %s4 = inlined_call_operand.vmem [shape: f32[16,16], index: 4, kind: input, shape index: {}]
  %s5 = inlined_call_operand.vmem [shape: f32[1,128,16], index: 5, kind: output, shape index: {}]
  %s6 = sld [smem:[#allocation0]]
  $region30: #{tpu_custom_call.1} parent=0
    _
  %s8 = ssub.s32 1, %s6
  %s9 = scalar_select 0, %s8, %s6
  // Predicated region
  $region2: #{tpu_custom_call.1} parent=0 // pred_check
    _
  $region3: #{tpu_custom_call.1} parent=0 // pred_check_branch
    %11 = sbr.rel (0) target = $region5
  $region4: #{tpu_custom_call.1} parent=0 // pred_region
    _
  $region5: #{tpu_custom_call.1} parent=0 // pred_fallthru
    _
  // Predicated region
  $region6: #{tpu_custom_call.1} parent=0 // pred_check
    _
  $region7: #{tpu_custom_call.1} parent=0 // pred_check_branch
    %13 = sbr.rel (0) target = $region9
  $region8: #{tpu_custom_call.1} parent=0 // pred_region
    _
  $region9: #{tpu_custom_call.1} parent=0 // pred_fallthru
    _
  // Predicated region
  $region10: #{tpu_custom_call.1} parent=0 // pred_check
    _
  $region11: #{tpu_custom_call.1} parent=0 // pred_check_branch
    %15 = sbr.rel (0) target = $region13
  $region12: #{tpu_custom_call.1} parent=0 // pred_region
    _
  $region13: #{tpu_custom_call.1} parent=0 // pred_fallthru
    _
  // Predicated region
  $region14: #{tpu_custom_call.1} parent=0 // pred_check
    _
  $region15: #{tpu_custom_call.1} parent=0 // pred_check_branch
    %17 = sbr.rel (0) target = $region17
  $region16: #{tpu_custom_call.1} parent=0 // pred_region
    _
  $region17: #{tpu_custom_call.1} parent=0 // pred_fallthru
    _
  // Predicated region
  $region18: #{tpu_custom_call.1} parent=0 // pred_check
    _
  $region19: #{tpu_custom_call.1} parent=0 // pred_check_branch
    %19 = sbr.rel (0) target = $region21
  $region20: #{tpu_custom_call.1} parent=0 // pred_region
    _
  $region21: #{tpu_custom_call.1} parent=0 // pred_fallthru
    _
  %v20 = vld [vmem:[%s0] sm:$0xff]
  %v21 = vld [vmem:[%s0 + $0x8] sm:$0xff]
  %v22 = vld [vmem:[%s0 + $0x10] sm:$0xff]
  %v23 = vld [vmem:[%s0 + $0x18] sm:$0xff]
  %v24 = vld [vmem:[%s0 + $0x20] sm:$0xff]
  %v25 = vld [vmem:[%s0 + $0x28] sm:$0xff]
  %v26 = vld [vmem:[%s0 + $0x30] sm:$0xff]
  %v27 = vld [vmem:[%s0 + $0x38] sm:$0xff]
  %v28 = vld [vmem:[%s0 + $0x40] sm:$0xff]
  %v29 = vld [vmem:[%s0 + $0x48] sm:$0xff]
  %v30 = vld [vmem:[%s0 + $0x50] sm:$0xff]
  %v31 = vld [vmem:[%s0 + $0x58] sm:$0xff]
  %v32 = vld [vmem:[%s0 + $0x60] sm:$0xff]
  %v33 = vld [vmem:[%s0 + $0x68] sm:$0xff]
  %v34 = vld [vmem:[%s0 + $0x70] sm:$0xff]
  %v35 = vld [vmem:[%s0 + $0x78] sm:$0xff]
  %v36 = vld [vmem:[%s1] sm:$0xff]
  %v37 = vld [vmem:[%s1 + $0x8] sm:$0xff]
  %v38 = vld [vmem:[%s1 + $0x10] sm:$0xff]
  %v39 = vld [vmem:[%s1 + $0x18] sm:$0xff]
  %v40 = vld [vmem:[%s1 + $0x20] sm:$0xff]
  %v41 = vld [vmem:[%s1 + $0x28] sm:$0xff]
  %v42 = vld [vmem:[%s1 + $0x30] sm:$0xff]
  %v43 = vld [vmem:[%s1 + $0x38] sm:$0xff]
  %v44 = vld [vmem:[%s1 + $0x40] sm:$0xff]
  %v45 = vld [vmem:[%s1 + $0x48] sm:$0xff]
  %v46 = vld [vmem:[%s1 + $0x50] sm:$0xff]
  %v47 = vld [vmem:[%s1 + $0x58] sm:$0xff]
  %v48 = vld [vmem:[%s1 + $0x60] sm:$0xff]
  %v49 = vld [vmem:[%s1 + $0x68] sm:$0xff]
  %v50 = vld [vmem:[%s1 + $0x70] sm:$0xff]
  %v51 = vld [vmem:[%s1 + $0x78] sm:$0xff]
  %v52 = vld [vmem:[%s4] sm:$0xff]
  %v53 = vld [vmem:[%s4 + $0x8] sm:$0xff]
  %v54 = vld [vmem:[%s2] sm:$0xff]
  %v55 = vld [vmem:[%s2 + $0x8] sm:$0xff]
  %vm56 = vcmask 130048
  %v58 = vsel %vm56, %v20, 0
  %v61 = vsel %vm56, %v21, 0
  %v64 = vsel %vm56, %v22, 0
  %v67 = vsel %vm56, %v23, 0
  %v70 = vsel %vm56, %v24, 0
  %v73 = vsel %vm56, %v25, 0
  %v76 = vsel %vm56, %v26, 0
  %v79 = vsel %vm56, %v27, 0
  %v82 = vsel %vm56, %v28, 0
  %v85 = vsel %vm56, %v29, 0
  %v88 = vsel %vm56, %v30, 0
  %v91 = vsel %vm56, %v31, 0
  %v94 = vsel %vm56, %v32, 0
  %v97 = vsel %vm56, %v33, 0
  %v100 = vsel %vm56, %v34, 0
  %v103 = vsel %vm56, %v35, 0
  %105 = vmatprep.subr.mxu0 0.0
  %106 = vmatpush1.msra.mxu0 %v54
  %107 = vmatprep.subr.mxu0 0.0
  %108 = vmatpush1.msra.mxu0 %v55
  %109 = vmatprep.subr.mxu0 0.0
  %110 = vmatpush1.msra.mxu0 0.0
  %111 = vmatprep.subr.mxu0 0.0
  %112 = vmatpush1.msra.mxu0 0.0
  %113 = vmatprep.subr.mxu0 0.0
  %114 = vmatpush1.msra.mxu0 0.0
  %115 = vmatprep.subr.mxu0 0.0
  %116 = vmatpush1.msra.mxu0 0.0
  %117 = vmatprep.subr.mxu0 0.0
  %118 = vmatpush1.msra.mxu0 0.0
  %119 = vmatprep.subr.mxu0 0.0
  %120 = vmatpush1.msra.mxu0 0.0
  %121 = vmatprep.subr.mxu0 0.0
  %122 = vmatpush1.msra.mxu0 0.0
  %123 = vmatprep.subr.mxu0 0.0
  %124 = vmatpush1.msra.mxu0 0.0
  %125 = vmatprep.subr.mxu0 0.0
  %126 = vmatpush1.msra.mxu0 0.0
  %127 = vmatprep.subr.mxu0 0.0
  %128 = vmatpush1.msra.mxu0 0.0
  %129 = vmatprep.subr.mxu0 0.0
  %130 = vmatpush1.msra.mxu0 0.0
  %131 = vmatprep.subr.mxu0 0.0
  %132 = vmatpush1.msra.mxu0 0.0
  %133 = vmatprep.subr.mxu0 0.0
  %134 = vmatpush1.msra.mxu0 0.0
  %135 = vmatprep.subr.mxu0 0.0
  %136 = vmatpush1.msra.mxu0 0.0
  %137 = vmatprep.subr.mxu0 0.0
  %138 = vmatpush1.msra.mxu0 0.0
  %139 = vmatprep.subr.mxu0 0.0
  %140 = vmatpush1.msra.mxu0 0.0
  %141 = vmatprep.subr.mxu0 0.0
  %142 = vmatpush1.msra.mxu0 0.0
  %143 = vmatprep.subr.mxu0 0.0
  %144 = vmatpush1.msra.mxu0 0.0
  %145 = vmatprep.subr.mxu0 0.0
  %146 = vmatpush1.msra.mxu0 0.0
  %147 = vmatprep.subr.mxu0 0.0
  %148 = vmatpush1.msra.mxu0 0.0
  %149 = vmatprep.subr.mxu0 0.0
  %150 = vmatpush1.msra.mxu0 0.0
  %151 = vmatprep.subr.mxu0 0.0
  %152 = vmatpush1.msra.mxu0 0.0
  %153 = vmatprep.subr.mxu0 0.0
  %154 = vmatpush1.msra.mxu0 0.0
  %155 = vmatprep.subr.mxu0 0.0
  %156 = vmatpush1.msra.mxu0 0.0
  %157 = vmatprep.subr.mxu0 0.0
  %158 = vmatpush1.msra.mxu0 0.0
  %159 = vmatprep.subr.mxu0 0.0
  %160 = vmatpush1.msra.mxu0 0.0
  %161 = vmatprep.subr.mxu0 0.0
  %162 = vmatpush1.msra.mxu0 0.0
  %163 = vmatprep.subr.mxu0 0.0
  %164 = vmatpush1.msra.mxu0 0.0
  %165 = vmatprep.subr.mxu0 0.0
  %166 = vmatpush1.msra.mxu0 0.0
  %167 = vmatprep.subr.mxu0 0.0
  %168 = vmatpush1.msra.mxu0 0.0
  %169 = vmatprep.mubr.f32.mxu0 0.0
  %170 = vmatmul.mubr.f32.gmra.mrb[0].mxu0 %v58
  %v171 = vpop.f32.mrb[0].mxu0
  %v172 = vadd.f32 0.0, %v171
  %v173 = vpop.f32.mrb[0].mxu0
  %174 = vmatprep.mubr.f32.mxu0 0.0
  %175 = vmatmul.mubr.f32.gmra.mrb[0].mxu0 %v61
  %v176 = vpop.f32.mrb[0].mxu0
  %v177 = vadd.f32 0.0, %v176
  %v178 = vpop.f32.mrb[0].mxu0
  %179 = vmatprep.mubr.f32.mxu0 0.0
  %180 = vmatmul.mubr.f32.gmra.mrb[0].mxu0 %v64
  %v181 = vpop.f32.mrb[0].mxu0
  %v182 = vadd.f32 0.0, %v181
  %v183 = vpop.f32.mrb[0].mxu0
  %184 = vmatprep.mubr.f32.mxu0 0.0
  %185 = vmatmul.mubr.f32.gmra.mrb[0].mxu0 %v67
  %v186 = vpop.f32.mrb[0].mxu0
  %v187 = vadd.f32 0.0, %v186
  %v188 = vpop.f32.mrb[0].mxu0
  %189 = vmatprep.mubr.f32.mxu0 0.0
  %190 = vmatmul.mubr.f32.gmra.mrb[0].mxu0 %v70
  %v191 = vpop.f32.mrb[0].mxu0
  %v192 = vadd.f32 0.0, %v191
  %v193 = vpop.f32.mrb[0].mxu0
  %194 = vmatprep.mubr.f32.mxu0 0.0
  %195 = vmatmul.mubr.f32.gmra.mrb[0].mxu0 %v73
  %v196 = vpop.f32.mrb[0].mxu0
  %v197 = vadd.f32 0.0, %v196
  %v198 = vpop.f32.mrb[0].mxu0
  %199 = vmatprep.mubr.f32.mxu0 0.0
  %200 = vmatmul.mubr.f32.gmra.mrb[0].mxu0 %v76
  %v201 = vpop.f32.mrb[0].mxu0
  %v202 = vadd.f32 0.0, %v201
  %v203 = vpop.f32.mrb[0].mxu0
  %204 = vmatprep.mubr.f32.mxu0 0.0
  %205 = vmatmul.mubr.f32.gmra.mrb[0].mxu0 %v79
  %v206 = vpop.f32.mrb[0].mxu0
  %v207 = vadd.f32 0.0, %v206
  %v208 = vpop.f32.mrb[0].mxu0
  %209 = vmatprep.mubr.f32.mxu0 0.0
  %210 = vmatmul.mubr.f32.gmra.mrb[0].mxu0 %v82
  %v211 = vpop.f32.mrb[0].mxu0
  %v212 = vadd.f32 0.0, %v211
  %v213 = vpop.f32.mrb[0].mxu0
  %214 = vmatprep.mubr.f32.mxu0 0.0
  %215 = vmatmul.mubr.f32.gmra.mrb[0].mxu0 %v85
  %v216 = vpop.f32.mrb[0].mxu0
  %v217 = vadd.f32 0.0, %v216
  %v218 = vpop.f32.mrb[0].mxu0
  %219 = vmatprep.mubr.f32.mxu0 0.0
  %220 = vmatmul.mubr.f32.gmra.mrb[0].mxu0 %v88
  %v221 = vpop.f32.mrb[0].mxu0
  %v222 = vadd.f32 0.0, %v221
  %v223 = vpop.f32.mrb[0].mxu0
  %224 = vmatprep.mubr.f32.mxu0 0.0
  %225 = vmatmul.mubr.f32.gmra.mrb[0].mxu0 %v91
  %v226 = vpop.f32.mrb[0].mxu0
  %v227 = vadd.f32 0.0, %v226
  %v228 = vpop.f32.mrb[0].mxu0
  %229 = vmatprep.mubr.f32.mxu0 0.0
  %230 = vmatmul.mubr.f32.gmra.mrb[0].mxu0 %v94
  %v231 = vpop.f32.mrb[0].mxu0
  %v232 = vadd.f32 0.0, %v231
  %v233 = vpop.f32.mrb[0].mxu0
  %234 = vmatprep.mubr.f32.mxu0 0.0
  %235 = vmatmul.mubr.f32.gmra.mrb[0].mxu0 %v97
  %v236 = vpop.f32.mrb[0].mxu0
  %v237 = vadd.f32 0.0, %v236
  %v238 = vpop.f32.mrb[0].mxu0
  %239 = vmatprep.mubr.f32.mxu0 0.0
  %240 = vmatmul.mubr.f32.gmra.mrb[0].mxu0 %v100
  %v241 = vpop.f32.mrb[0].mxu0
  %v242 = vadd.f32 0.0, %v241
  %v243 = vpop.f32.mrb[0].mxu0
  %244 = vmatprep.mubr.f32.mxu0 0.0
  %245 = vmatmul.mubr.f32.gmra.mrb[0].mxu0 %v103
  %v246 = vpop.f32.mrb[0].mxu0
  %v247 = vadd.f32 0.0, %v246
  %v248 = vpop.f32.mrb[0].mxu0
  %249 = vdwg.mxu0
  %v250 = vld [vmem:[%s2 + $0x10] sm:$0xf]
  %vm251 = vcmask 523264
  %v253 = vsel %vm251, %v250, 0
  %v256 = vsel %vm251, %v172, 0
  %v259 = vsel %vm251, %v177, 0
  %v262 = vsel %vm251, %v182, 0
  %v265 = vsel %vm251, %v187, 0
  %v268 = vsel %vm251, %v192, 0
  %v271 = vsel %vm251, %v197, 0
  %v274 = vsel %vm251, %v202, 0
  %v277 = vsel %vm251, %v207, 0
  %v280 = vsel %vm251, %v212, 0
  %v283 = vsel %vm251, %v217, 0
  %v286 = vsel %vm251, %v222, 0
  %v289 = vsel %vm251, %v227, 0
  %v292 = vsel %vm251, %v232, 0
  %v295 = vsel %vm251, %v237, 0
  %v298 = vsel %vm251, %v242, 0
  %v301 = vsel %vm251, %v247, 0
  %303 = vmatprep.subr.mxu0 0.0
  %304 = vmatpush1.xpose.msra.mxu0 %v256
  %305 = vmatprep.subr.mxu0 0.0
  %306 = vmatpush1.xpose.msra.mxu0 %v259
  %307 = vmatprep.subr.mxu0 0.0
  %308 = vmatpush1.xpose.msra.mxu0 %v262
  %309 = vmatprep.subr.mxu0 0.0
  %310 = vmatpush1.xpose.msra.mxu0 %v265
  %311 = vmatprep.subr.mxu0 0.0
  %312 = vmatpush1.xpose.msra.mxu0 %v268
  %313 = vmatprep.subr.mxu0 0.0
  %314 = vmatpush1.xpose.msra.mxu0 %v271
  %315 = vmatprep.subr.mxu0 0.0
  %316 = vmatpush1.xpose.msra.mxu0 %v274
  %317 = vmatprep.subr.mxu0 0.0
  %318 = vmatpush1.xpose.msra.mxu0 %v277
  %319 = vmatprep.subr.mxu0 0.0
  %320 = vmatpush1.xpose.msra.mxu0 %v280
  %321 = vmatprep.subr.mxu0 0.0
  %322 = vmatpush1.xpose.msra.mxu0 %v283
  %323 = vmatprep.subr.mxu0 0.0
  %324 = vmatpush1.xpose.msra.mxu0 %v286
  %325 = vmatprep.subr.mxu0 0.0
  %326 = vmatpush1.xpose.msra.mxu0 %v289
  %327 = vmatprep.subr.mxu0 0.0
  %328 = vmatpush1.xpose.msra.mxu0 %v292
  %329 = vmatprep.subr.mxu0 0.0
  %330 = vmatpush1.xpose.msra.mxu0 %v295
  %331 = vmatprep.subr.mxu0 0.0
  %332 = vmatpush1.xpose.msra.mxu0 %v298
  %333 = vmatprep.subr.mxu0 0.0
  %334 = vmatpush1.xpose.msra.mxu0 %v301
  %335 = vmatprep.subr.mxu0 0.0
  %336 = vmatpush1.xpose.msra.mxu0 0.0
  %337 = vmatprep.subr.mxu0 0.0
  %338 = vmatpush1.xpose.msra.mxu0 0.0
  %339 = vmatprep.subr.mxu0 0.0
  %340 = vmatpush1.xpose.msra.mxu0 0.0
  %341 = vmatprep.subr.mxu0 0.0
  %342 = vmatpush1.xpose.msra.mxu0 0.0
  %343 = vmatprep.subr.mxu0 0.0
  %344 = vmatpush1.xpose.msra.mxu0 0.0
  %345 = vmatprep.subr.mxu0 0.0
  %346 = vmatpush1.xpose.msra.mxu0 0.0
  %347 = vmatprep.subr.mxu0 0.0
  %348 = vmatpush1.xpose.msra.mxu0 0.0
  %349 = vmatprep.subr.mxu0 0.0
  %350 = vmatpush1.xpose.msra.mxu0 0.0
  %351 = vmatprep.subr.mxu0 0.0
  %352 = vmatpush1.xpose.msra.mxu0 0.0
  %353 = vmatprep.subr.mxu0 0.0
  %354 = vmatpush1.xpose.msra.mxu0 0.0
  %355 = vmatprep.subr.mxu0 0.0
  %356 = vmatpush1.xpose.msra.mxu0 0.0
  %357 = vmatprep.subr.mxu0 0.0
  %358 = vmatpush1.xpose.msra.mxu0 0.0
  %359 = vmatprep.subr.mxu0 0.0
  %360 = vmatpush1.xpose.msra.mxu0 0.0
  %361 = vmatprep.subr.mxu0 0.0
  %362 = vmatpush1.xpose.msra.mxu0 0.0
  %363 = vmatprep.subr.mxu0 0.0
  %364 = vmatpush1.xpose.msra.mxu0 0.0
  %365 = vmatprep.subr.mxu0 0.0
  %366 = vmatpush1.xpose.msra.mxu0 0.0
  %367 = vmatprep.mubr.f32.mxu0 0.0
  %368 = vmatmul.mubr.f32.gmra.mrb[0].mxu0 %v253
  %v369 = vpop.f32.mrb[0].mxu0
  %v370 = vadd.f32 0.0, %v369
  %v371 = vpop.f32.mrb[0].mxu0
  %372 = vdwg.mxu0
  %v373 = vlaneseq
  %v374 = vshrl.u32 %v373, 7
  %v375 = vsub.s32 0, %v374
  %v376 = vrot.slane %v52, %v375
  %v377 = vmul.f32 %v172, %v376
  %v378 = vmul.f32 %v177, %v376
  %v379 = vmul.f32 %v182, %v376
  %v380 = vmul.f32 %v187, %v376
  %v381 = vmul.f32 %v192, %v376
  %v382 = vmul.f32 %v197, %v376
  %v383 = vmul.f32 %v202, %v376
  %v384 = vmul.f32 %v207, %v376
  %v385 = vmul.f32 %v212, %v376
  %v386 = vmul.f32 %v217, %v376
  %v387 = vmul.f32 %v222, %v376
  %v388 = vmul.f32 %v227, %v376
  %v389 = vmul.f32 %v232, %v376
  %v390 = vmul.f32 %v237, %v376
  %v391 = vmul.f32 %v242, %v376
  %v392 = vmul.f32 %v247, %v376
  %v393 = vsel %vm56, %v377, 0.0
  %394 = vadd.xlane.f32.xlu0 %v393
  %v395 = vpop.xlane.xlu0 %394
  %v396 = vsel %vm56, %v378, 0.0
  %397 = vadd.xlane.f32.xlu0 %v396
  %v398 = vpop.xlane.xlu0 %397
  %v399 = vsel %vm56, %v379, 0.0
  %400 = vadd.xlane.f32.xlu0 %v399
  %v401 = vpop.xlane.xlu0 %400
  %v402 = vsel %vm56, %v380, 0.0
  %403 = vadd.xlane.f32.xlu0 %v402
  %v404 = vpop.xlane.xlu0 %403
  %v405 = vsel %vm56, %v381, 0.0
  %406 = vadd.xlane.f32.xlu0 %v405
  %v407 = vpop.xlane.xlu0 %406
  %v408 = vsel %vm56, %v382, 0.0
  %409 = vadd.xlane.f32.xlu0 %v408
  %v410 = vpop.xlane.xlu0 %409
  %v411 = vsel %vm56, %v383, 0.0
  %412 = vadd.xlane.f32.xlu0 %v411
  %v413 = vpop.xlane.xlu0 %412
  %v414 = vsel %vm56, %v384, 0.0
  %415 = vadd.xlane.f32.xlu0 %v414
  %v416 = vpop.xlane.xlu0 %415
  %v417 = vsel %vm56, %v385, 0.0
  %418 = vadd.xlane.f32.xlu0 %v417
  %v419 = vpop.xlane.xlu0 %418
  %v420 = vsel %vm56, %v386, 0.0
  %421 = vadd.xlane.f32.xlu0 %v420
  %v422 = vpop.xlane.xlu0 %421
  %v423 = vsel %vm56, %v387, 0.0
  %424 = vadd.xlane.f32.xlu0 %v423
  %v425 = vpop.xlane.xlu0 %424
  %v426 = vsel %vm56, %v388, 0.0
  %427 = vadd.xlane.f32.xlu0 %v426
  %v428 = vpop.xlane.xlu0 %427
  %v429 = vsel %vm56, %v389, 0.0
  %430 = vadd.xlane.f32.xlu0 %v429
  %v431 = vpop.xlane.xlu0 %430
  %v432 = vsel %vm56, %v390, 0.0
  %433 = vadd.xlane.f32.xlu0 %v432
  %v434 = vpop.xlane.xlu0 %433
  %v435 = vsel %vm56, %v391, 0.0
  %436 = vadd.xlane.f32.xlu0 %v435
  %v437 = vpop.xlane.xlu0 %436
  %v438 = vsel %vm56, %v392, 0.0
  %439 = vadd.xlane.f32.xlu0 %v438
  %v440 = vpop.xlane.xlu0 %439
  %v441 = vlaneseq
  %v442 = vshrl.u32 %v441, 7
  %v443 = vsub.s32 0, %v442
  %v444 = vrot.slane %v370, %v443
  %v445 = vadd.f32 %v395, %v444
  %v446 = vadd.f32 %v398, %v444
  %v447 = vadd.f32 %v401, %v444
  %v448 = vadd.f32 %v404, %v444
  %v449 = vadd.f32 %v407, %v444
  %v450 = vadd.f32 %v410, %v444
  %v451 = vadd.f32 %v413, %v444
  %v452 = vadd.f32 %v416, %v444
  %v453 = vadd.f32 %v419, %v444
  %v454 = vadd.f32 %v422, %v444
  %v455 = vadd.f32 %v425, %v444
  %v456 = vadd.f32 %v428, %v444
  %v457 = vadd.f32 %v431, %v444
  %v458 = vadd.f32 %v434, %v444
  %v459 = vadd.f32 %v437, %v444
  %v460 = vadd.f32 %v440, %v444
  %vm461 = vcmp.gt.f32.partialorder %v445, 0.0
  %vm462 = vcmp.gt.f32.partialorder %v446, 0.0
  %vm463 = vcmp.gt.f32.partialorder %v447, 0.0
  %vm464 = vcmp.gt.f32.partialorder %v448, 0.0
  %vm465 = vcmp.gt.f32.partialorder %v449, 0.0
  %vm466 = vcmp.gt.f32.partialorder %v450, 0.0
  %vm467 = vcmp.gt.f32.partialorder %v451, 0.0
  %vm468 = vcmp.gt.f32.partialorder %v452, 0.0
  %vm469 = vcmp.gt.f32.partialorder %v453, 0.0
  %vm470 = vcmp.gt.f32.partialorder %v454, 0.0
  %vm471 = vcmp.gt.f32.partialorder %v455, 0.0
  %vm472 = vcmp.gt.f32.partialorder %v456, 0.0
  %vm473 = vcmp.gt.f32.partialorder %v457, 0.0
  %vm474 = vcmp.gt.f32.partialorder %v458, 0.0
  %vm475 = vcmp.gt.f32.partialorder %v459, 0.0
  %vm476 = vcmp.gt.f32.partialorder %v460, 0.0
  %v477 = vmul.f32 %v445, 0.2
  %v478 = vmul.f32 %v446, 0.2
  %v479 = vmul.f32 %v447, 0.2
  %v480 = vmul.f32 %v448, 0.2
  %v481 = vmul.f32 %v449, 0.2
  %v482 = vmul.f32 %v450, 0.2
  %v483 = vmul.f32 %v451, 0.2
  %v484 = vmul.f32 %v452, 0.2
  %v485 = vmul.f32 %v453, 0.2
  %v486 = vmul.f32 %v454, 0.2
  %v487 = vmul.f32 %v455, 0.2
  %v488 = vmul.f32 %v456, 0.2
  %v489 = vmul.f32 %v457, 0.2
  %v490 = vmul.f32 %v458, 0.2
  %v491 = vmul.f32 %v459, 0.2
  %v492 = vmul.f32 %v460, 0.2
  %v493 = vsel %vm461, %v445, %v477
  %v494 = vsel %vm462, %v446, %v478
  %v495 = vsel %vm463, %v447, %v479
  %v496 = vsel %vm464, %v448, %v480
  %v497 = vsel %vm465, %v449, %v481
  %v498 = vsel %vm466, %v450, %v482
  %v499 = vsel %vm467, %v451, %v483
  %v500 = vsel %vm468, %v452, %v484
  %v501 = vsel %vm469, %v453, %v485
  %v502 = vsel %vm470, %v454, %v486
  %v503 = vsel %vm471, %v455, %v487
  %v504 = vsel %vm472, %v456, %v488
  %v505 = vsel %vm473, %v457, %v489
  %v506 = vsel %vm474, %v458, %v490
  %v507 = vsel %vm475, %v459, %v491
  %v508 = vsel %vm476, %v460, %v492
  %vm509 = vcmp.gt.f32.partialorder %v36, 0.0
  %vm510 = vcmp.gt.f32.partialorder %v37, 0.0
  %vm511 = vcmp.gt.f32.partialorder %v38, 0.0
  %vm512 = vcmp.gt.f32.partialorder %v39, 0.0
  %vm513 = vcmp.gt.f32.partialorder %v40, 0.0
  %vm514 = vcmp.gt.f32.partialorder %v41, 0.0
  %vm515 = vcmp.gt.f32.partialorder %v42, 0.0
  %vm516 = vcmp.gt.f32.partialorder %v43, 0.0
  %vm517 = vcmp.gt.f32.partialorder %v44, 0.0
  %vm518 = vcmp.gt.f32.partialorder %v45, 0.0
  %vm519 = vcmp.gt.f32.partialorder %v46, 0.0
  %vm520 = vcmp.gt.f32.partialorder %v47, 0.0
  %vm521 = vcmp.gt.f32.partialorder %v48, 0.0
  %vm522 = vcmp.gt.f32.partialorder %v49, 0.0
  %vm523 = vcmp.gt.f32.partialorder %v50, 0.0
  %vm524 = vcmp.gt.f32.partialorder %v51, 0.0
  %v525 = vsel %vm509, %v493, -1e+30
  %v526 = vsel %vm510, %v494, -1e+30
  %v527 = vsel %vm511, %v495, -1e+30
  %v528 = vsel %vm512, %v496, -1e+30
  %v529 = vsel %vm513, %v497, -1e+30
  %v530 = vsel %vm514, %v498, -1e+30
  %v531 = vsel %vm515, %v499, -1e+30
  %v532 = vsel %vm516, %v500, -1e+30
  %v533 = vsel %vm517, %v501, -1e+30
  %v534 = vsel %vm518, %v502, -1e+30
  %v535 = vsel %vm519, %v503, -1e+30
  %v536 = vsel %vm520, %v504, -1e+30
  %v537 = vsel %vm521, %v505, -1e+30
  %v538 = vsel %vm522, %v506, -1e+30
  %v539 = vsel %vm523, %v507, -1e+30
  %v540 = vsel %vm524, %v508, -1e+30
  %541 = vmax.xlane.f32.xlu0 %v525
  %v542 = vpop.xlane.xlu0 %541
  %543 = vmax.xlane.f32.xlu0 %v526
  %v544 = vpop.xlane.xlu0 %543
  %545 = vmax.xlane.f32.xlu0 %v527
  %v546 = vpop.xlane.xlu0 %545
  %547 = vmax.xlane.f32.xlu0 %v528
  %v548 = vpop.xlane.xlu0 %547
  %549 = vmax.xlane.f32.xlu0 %v529
  %v550 = vpop.xlane.xlu0 %549
  %551 = vmax.xlane.f32.xlu0 %v530
  %v552 = vpop.xlane.xlu0 %551
  %553 = vmax.xlane.f32.xlu0 %v531
  %v554 = vpop.xlane.xlu0 %553
  %555 = vmax.xlane.f32.xlu0 %v532
  %v556 = vpop.xlane.xlu0 %555
  %557 = vmax.xlane.f32.xlu0 %v533
  %v558 = vpop.xlane.xlu0 %557
  %559 = vmax.xlane.f32.xlu0 %v534
  %v560 = vpop.xlane.xlu0 %559
  %561 = vmax.xlane.f32.xlu0 %v535
  %v562 = vpop.xlane.xlu0 %561
  %563 = vmax.xlane.f32.xlu0 %v536
  %v564 = vpop.xlane.xlu0 %563
  %565 = vmax.xlane.f32.xlu0 %v537
  %v566 = vpop.xlane.xlu0 %565
  %567 = vmax.xlane.f32.xlu0 %v538
  %v568 = vpop.xlane.xlu0 %567
  %569 = vmax.xlane.f32.xlu0 %v539
  %v570 = vpop.xlane.xlu0 %569
  %571 = vmax.xlane.f32.xlu0 %v540
  %v572 = vpop.xlane.xlu0 %571
  %v573 = vsub.f32 %v525, %v542
  %v574 = vsub.f32 %v526, %v544
  %v575 = vsub.f32 %v527, %v546
  %v576 = vsub.f32 %v528, %v548
  %v577 = vsub.f32 %v529, %v550
  %v578 = vsub.f32 %v530, %v552
  %v579 = vsub.f32 %v531, %v554
  %v580 = vsub.f32 %v532, %v556
  %v581 = vsub.f32 %v533, %v558
  %v582 = vsub.f32 %v534, %v560
  %v583 = vsub.f32 %v535, %v562
  %v584 = vsub.f32 %v536, %v564
  %v585 = vsub.f32 %v537, %v566
  %v586 = vsub.f32 %v538, %v568
  %v587 = vsub.f32 %v539, %v570
  %v588 = vsub.f32 %v540, %v572
  %v589 = vmul.f32 %v573, 1.442695
  %v590 = vpow.pop %v589
  %v591 = vmul.f32 %v574, 1.442695
  %v592 = vpow.pop %v591
  %v593 = vmul.f32 %v575, 1.442695
  %v594 = vpow.pop %v593
  %v595 = vmul.f32 %v576, 1.442695
  %v596 = vpow.pop %v595
  %v597 = vmul.f32 %v577, 1.442695
  %v598 = vpow.pop %v597
  %v599 = vmul.f32 %v578, 1.442695
  %v600 = vpow.pop %v599
  %v601 = vmul.f32 %v579, 1.442695
  %v602 = vpow.pop %v601
  %v603 = vmul.f32 %v580, 1.442695
  %v604 = vpow.pop %v603
  %v605 = vmul.f32 %v581, 1.442695
  %v606 = vpow.pop %v605
  %v607 = vmul.f32 %v582, 1.442695
  %v608 = vpow.pop %v607
  %v609 = vmul.f32 %v583, 1.442695
  %v610 = vpow.pop %v609
  %v611 = vmul.f32 %v584, 1.442695
  %v612 = vpow.pop %v611
  %v613 = vmul.f32 %v585, 1.442695
  %v614 = vpow.pop %v613
  %v615 = vmul.f32 %v586, 1.442695
  %v616 = vpow.pop %v615
  %v617 = vmul.f32 %v587, 1.442695
  %v618 = vpow.pop %v617
  %v619 = vmul.f32 %v588, 1.442695
  %v620 = vpow.pop %v619
  %v621 = vmul.f32 %v590, %v36
  %v622 = vmul.f32 %v592, %v37
  %v623 = vmul.f32 %v594, %v38
  %v624 = vmul.f32 %v596, %v39
  %v625 = vmul.f32 %v598, %v40
  %v626 = vmul.f32 %v600, %v41
  %v627 = vmul.f32 %v602, %v42
  %v628 = vmul.f32 %v604, %v43
  %v629 = vmul.f32 %v606, %v44
  %v630 = vmul.f32 %v608, %v45
  %v631 = vmul.f32 %v610, %v46
  %v632 = vmul.f32 %v612, %v47
  %v633 = vmul.f32 %v614, %v48
  %v634 = vmul.f32 %v616, %v49
  %v635 = vmul.f32 %v618, %v50
  %v636 = vmul.f32 %v620, %v51
  %637 = vadd.xlane.f32.xlu0 %v621
  %v638 = vpop.xlane.xlu0 %637
  %639 = vadd.xlane.f32.xlu0 %v622
  %v640 = vpop.xlane.xlu0 %639
  %641 = vadd.xlane.f32.xlu0 %v623
  %v642 = vpop.xlane.xlu0 %641
  %643 = vadd.xlane.f32.xlu0 %v624
  %v644 = vpop.xlane.xlu0 %643
  %645 = vadd.xlane.f32.xlu0 %v625
  %v646 = vpop.xlane.xlu0 %645
  %647 = vadd.xlane.f32.xlu0 %v626
  %v648 = vpop.xlane.xlu0 %647
  %649 = vadd.xlane.f32.xlu0 %v627
  %v650 = vpop.xlane.xlu0 %649
  %651 = vadd.xlane.f32.xlu0 %v628
  %v652 = vpop.xlane.xlu0 %651
  %653 = vadd.xlane.f32.xlu0 %v629
  %v654 = vpop.xlane.xlu0 %653
  %655 = vadd.xlane.f32.xlu0 %v630
  %v656 = vpop.xlane.xlu0 %655
  %657 = vadd.xlane.f32.xlu0 %v631
  %v658 = vpop.xlane.xlu0 %657
  %659 = vadd.xlane.f32.xlu0 %v632
  %v660 = vpop.xlane.xlu0 %659
  %661 = vadd.xlane.f32.xlu0 %v633
  %v662 = vpop.xlane.xlu0 %661
  %663 = vadd.xlane.f32.xlu0 %v634
  %v664 = vpop.xlane.xlu0 %663
  %665 = vadd.xlane.f32.xlu0 %v635
  %v666 = vpop.xlane.xlu0 %665
  %667 = vadd.xlane.f32.xlu0 %v636
  %v668 = vpop.xlane.xlu0 %667
  %v669 = vmax.f32 %v638, 1e-20
  %v670 = vmax.f32 %v640, 1e-20
  %v671 = vmax.f32 %v642, 1e-20
  %v672 = vmax.f32 %v644, 1e-20
  %v673 = vmax.f32 %v646, 1e-20
  %v674 = vmax.f32 %v648, 1e-20
  %v675 = vmax.f32 %v650, 1e-20
  %v676 = vmax.f32 %v652, 1e-20
  %v677 = vmax.f32 %v654, 1e-20
  %v678 = vmax.f32 %v656, 1e-20
  %v679 = vmax.f32 %v658, 1e-20
  %v680 = vmax.f32 %v660, 1e-20
  %v681 = vmax.f32 %v662, 1e-20
  %v682 = vmax.f32 %v664, 1e-20
  %v683 = vmax.f32 %v666, 1e-20
  %v684 = vmax.f32 %v668, 1e-20
  %v685 = vrcp.pop %v669
  %v686 = vrcp.pop %v670
  %v687 = vrcp.pop %v671
  %v688 = vrcp.pop %v672
  %v689 = vrcp.pop %v673
  %v690 = vrcp.pop %v674
  %v691 = vrcp.pop %v675
  %v692 = vrcp.pop %v676
  %v693 = vrcp.pop %v677
  %v694 = vrcp.pop %v678
  %v695 = vrcp.pop %v679
  %v696 = vrcp.pop %v680
  %v697 = vrcp.pop %v681
  %v698 = vrcp.pop %v682
  %v699 = vrcp.pop %v683
  %v700 = vrcp.pop %v684
  %v701 = vmul.f32 %v621, %v685
  %v702 = vmul.f32 %v622, %v686
  %v703 = vmul.f32 %v623, %v687
  %v704 = vmul.f32 %v624, %v688
  %v705 = vmul.f32 %v625, %v689
  %v706 = vmul.f32 %v626, %v690
  %v707 = vmul.f32 %v627, %v691
  %v708 = vmul.f32 %v628, %v692
  %v709 = vmul.f32 %v629, %v693
  %v710 = vmul.f32 %v630, %v694
  %v711 = vmul.f32 %v631, %v695
  %v712 = vmul.f32 %v632, %v696
  %v713 = vmul.f32 %v633, %v697
  %v714 = vmul.f32 %v634, %v698
  %v715 = vmul.f32 %v635, %v699
  %v716 = vmul.f32 %v636, %v700
  %v717 = vlaneseq
  %v718 = vshrl.u32 %v717, 7
  %v719 = vsub.s32 4, %v718
  %v720 = vrot.slane %v52, %v719
  %721 = vmatprep.subr.mxu0 0.0
  %722 = vmatpush1.msra.mxu0 %v172
  %723 = vmatprep.subr.mxu0 0.0
  %724 = vmatpush1.msra.mxu0 %v177
  %725 = vmatprep.subr.mxu0 0.0
  %726 = vmatpush1.msra.mxu0 %v182
  %727 = vmatprep.subr.mxu0 0.0
  %728 = vmatpush1.msra.mxu0 %v187
  %729 = vmatprep.subr.mxu0 0.0
  %730 = vmatpush1.msra.mxu0 %v192
  %731 = vmatprep.subr.mxu0 0.0
  %732 = vmatpush1.msra.mxu0 %v197
  %733 = vmatprep.subr.mxu0 0.0
  %734 = vmatpush1.msra.mxu0 %v202
  %735 = vmatprep.subr.mxu0 0.0
  %736 = vmatpush1.msra.mxu0 %v207
  %737 = vmatprep.subr.mxu0 0.0
  %738 = vmatpush1.msra.mxu0 %v212
  %739 = vmatprep.subr.mxu0 0.0
  %740 = vmatpush1.msra.mxu0 %v217
  %741 = vmatprep.subr.mxu0 0.0
  %742 = vmatpush1.msra.mxu0 %v222
  %743 = vmatprep.subr.mxu0 0.0
  %744 = vmatpush1.msra.mxu0 %v227
  %745 = vmatprep.subr.mxu0 0.0
  %746 = vmatpush1.msra.mxu0 %v232
  %747 = vmatprep.subr.mxu0 0.0
  %748 = vmatpush1.msra.mxu0 %v237
  %749 = vmatprep.subr.mxu0 0.0
  %750 = vmatpush1.msra.mxu0 %v242
  %751 = vmatprep.subr.mxu0 0.0
  %752 = vmatpush1.msra.mxu0 %v247
  %753 = vmatprep.subr.mxu0 0.0
  %754 = vmatpush1.msra.mxu0 0.0
  %755 = vmatprep.subr.mxu0 0.0
  %756 = vmatpush1.msra.mxu0 0.0
  %757 = vmatprep.subr.mxu0 0.0
  %758 = vmatpush1.msra.mxu0 0.0
  %759 = vmatprep.subr.mxu0 0.0
  %760 = vmatpush1.msra.mxu0 0.0
  %761 = vmatprep.subr.mxu0 0.0
  %762 = vmatpush1.msra.mxu0 0.0
  %763 = vmatprep.subr.mxu0 0.0
  %764 = vmatpush1.msra.mxu0 0.0
  %765 = vmatprep.subr.mxu0 0.0
  %766 = vmatpush1.msra.mxu0 0.0
  %767 = vmatprep.subr.mxu0 0.0
  %768 = vmatpush1.msra.mxu0 0.0
  %769 = vmatprep.subr.mxu0 0.0
  %770 = vmatpush1.msra.mxu0 0.0
  %771 = vmatprep.subr.mxu0 0.0
  %772 = vmatpush1.msra.mxu0 0.0
  %773 = vmatprep.subr.mxu0 0.0
  %774 = vmatpush1.msra.mxu0 0.0
  %775 = vmatprep.subr.mxu0 0.0
  %776 = vmatpush1.msra.mxu0 0.0
  %777 = vmatprep.subr.mxu0 0.0
  %778 = vmatpush1.msra.mxu0 0.0
  %779 = vmatprep.subr.mxu0 0.0
  %780 = vmatpush1.msra.mxu0 0.0
  %781 = vmatprep.subr.mxu0 0.0
  %782 = vmatpush1.msra.mxu0 0.0
  %783 = vmatprep.subr.mxu0 0.0
  %784 = vmatpush1.msra.mxu0 0.0
  %785 = vmatprep.mubr.f32.mxu0 0.0
  %786 = vmatmul.mubr.f32.gmra.mrb[0].mxu0 %v701
  %v787 = vpop.f32.mrb[0].mxu0
  %v788 = vadd.f32 %v720, %v787
  %v789 = vpop.f32.mrb[0].mxu0
  %790 = vmatprep.mubr.f32.mxu0 0.0
  %791 = vmatmul.mubr.f32.gmra.mrb[0].mxu0 %v702
  %v792 = vpop.f32.mrb[0].mxu0
  %v793 = vadd.f32 %v720, %v792
  %v794 = vpop.f32.mrb[0].mxu0
  %795 = vmatprep.mubr.f32.mxu0 0.0
  %796 = vmatmul.mubr.f32.gmra.mrb[0].mxu0 %v703
  %v797 = vpop.f32.mrb[0].mxu0
  %v798 = vadd.f32 %v720, %v797
  %v799 = vpop.f32.mrb[0].mxu0
  %800 = vmatprep.mubr.f32.mxu0 0.0
  %801 = vmatmul.mubr.f32.gmra.mrb[0].mxu0 %v704
  %v802 = vpop.f32.mrb[0].mxu0
  %v803 = vadd.f32 %v720, %v802
  %v804 = vpop.f32.mrb[0].mxu0
  %805 = vmatprep.mubr.f32.mxu0 0.0
  %806 = vmatmul.mubr.f32.gmra.mrb[0].mxu0 %v705
  %v807 = vpop.f32.mrb[0].mxu0
  %v808 = vadd.f32 %v720, %v807
  %v809 = vpop.f32.mrb[0].mxu0
  %810 = vmatprep.mubr.f32.mxu0 0.0
  %811 = vmatmul.mubr.f32.gmra.mrb[0].mxu0 %v706
  %v812 = vpop.f32.mrb[0].mxu0
  %v813 = vadd.f32 %v720, %v812
  %v814 = vpop.f32.mrb[0].mxu0
  %815 = vmatprep.mubr.f32.mxu0 0.0
  %816 = vmatmul.mubr.f32.gmra.mrb[0].mxu0 %v707
  %v817 = vpop.f32.mrb[0].mxu0
  %v818 = vadd.f32 %v720, %v817
  %v819 = vpop.f32.mrb[0].mxu0
  %820 = vmatprep.mubr.f32.mxu0 0.0
  %821 = vmatmul.mubr.f32.gmra.mrb[0].mxu0 %v708
  %v822 = vpop.f32.mrb[0].mxu0
  %v823 = vadd.f32 %v720, %v822
  %v824 = vpop.f32.mrb[0].mxu0
  %825 = vmatprep.mubr.f32.mxu0 0.0
  %826 = vmatmul.mubr.f32.gmra.mrb[0].mxu0 %v709
  %v827 = vpop.f32.mrb[0].mxu0
  %v828 = vadd.f32 %v720, %v827
  %v829 = vpop.f32.mrb[0].mxu0
  %830 = vmatprep.mubr.f32.mxu0 0.0
  %831 = vmatmul.mubr.f32.gmra.mrb[0].mxu0 %v710
  %v832 = vpop.f32.mrb[0].mxu0
  %v833 = vadd.f32 %v720, %v832
  %v834 = vpop.f32.mrb[0].mxu0
  %835 = vmatprep.mubr.f32.mxu0 0.0
  %836 = vmatmul.mubr.f32.gmra.mrb[0].mxu0 %v711
  %v837 = vpop.f32.mrb[0].mxu0
  %v838 = vadd.f32 %v720, %v837
  %v839 = vpop.f32.mrb[0].mxu0
  %840 = vmatprep.mubr.f32.mxu0 0.0
  %841 = vmatmul.mubr.f32.gmra.mrb[0].mxu0 %v712
  %v842 = vpop.f32.mrb[0].mxu0
  %v843 = vadd.f32 %v720, %v842
  %v844 = vpop.f32.mrb[0].mxu0
  %845 = vmatprep.mubr.f32.mxu0 0.0
  %846 = vmatmul.mubr.f32.gmra.mrb[0].mxu0 %v713
  %v847 = vpop.f32.mrb[0].mxu0
  %v848 = vadd.f32 %v720, %v847
  %v849 = vpop.f32.mrb[0].mxu0
  %850 = vmatprep.mubr.f32.mxu0 0.0
  %851 = vmatmul.mubr.f32.gmra.mrb[0].mxu0 %v714
  %v852 = vpop.f32.mrb[0].mxu0
  %v853 = vadd.f32 %v720, %v852
  %v854 = vpop.f32.mrb[0].mxu0
  %855 = vmatprep.mubr.f32.mxu0 0.0
  %856 = vmatmul.mubr.f32.gmra.mrb[0].mxu0 %v715
  %v857 = vpop.f32.mrb[0].mxu0
  %v858 = vadd.f32 %v720, %v857
  %v859 = vpop.f32.mrb[0].mxu0
  %860 = vmatprep.mubr.f32.mxu0 0.0
  %861 = vmatmul.mubr.f32.gmra.mrb[0].mxu0 %v716
  %v862 = vpop.f32.mrb[0].mxu0
  %v863 = vadd.f32 %v720, %v862
  %v864 = vpop.f32.mrb[0].mxu0
  %865 = vdwg.mxu0
  %v866 = vmax.f32 %v788, 0.0
  %v867 = vmax.f32 %v793, 0.0
  %v868 = vmax.f32 %v798, 0.0
  %v869 = vmax.f32 %v803, 0.0
  %v870 = vmax.f32 %v808, 0.0
  %v871 = vmax.f32 %v813, 0.0
  %v872 = vmax.f32 %v818, 0.0
  %v873 = vmax.f32 %v823, 0.0
  %v874 = vmax.f32 %v828, 0.0
  %v875 = vmax.f32 %v833, 0.0
  %v876 = vmax.f32 %v838, 0.0
  %v877 = vmax.f32 %v843, 0.0
  %v878 = vmax.f32 %v848, 0.0
  %v879 = vmax.f32 %v853, 0.0
  %v880 = vmax.f32 %v858, 0.0
  %v881 = vmax.f32 %v863, 0.0
  %v882 = vlaneseq
  %v883 = vshrl.u32 %v882, 7
  %v884 = vsub.s32 1, %v883
  %v885 = vrot.slane %v52, %v884
  %887 = vrot.lane.b32.xlu0 %v885, 16
  %v888 = vpop.permute.xlu0 %887
  %v890 = vmul.f32 %v172, %v888
  %v891 = vmul.f32 %v177, %v888
  %v892 = vmul.f32 %v182, %v888
  %v893 = vmul.f32 %v187, %v888
  %v894 = vmul.f32 %v192, %v888
  %v895 = vmul.f32 %v197, %v888
  %v896 = vmul.f32 %v202, %v888
  %v897 = vmul.f32 %v207, %v888
  %v898 = vmul.f32 %v212, %v888
  %v899 = vmul.f32 %v217, %v888
  %v900 = vmul.f32 %v222, %v888
  %v901 = vmul.f32 %v227, %v888
  %v902 = vmul.f32 %v232, %v888
  %v903 = vmul.f32 %v237, %v888
  %v904 = vmul.f32 %v242, %v888
  %v905 = vmul.f32 %v247, %v888
  %922 = vrot.lane.b32.xlu0 %v890, 112
  %v923 = vpop.permute.xlu0 %922
  %924 = vrot.lane.b32.xlu0 %v891, 112
  %v925 = vpop.permute.xlu0 %924
  %926 = vrot.lane.b32.xlu0 %v892, 112
  %v927 = vpop.permute.xlu0 %926
  %928 = vrot.lane.b32.xlu0 %v893, 112
  %v929 = vpop.permute.xlu0 %928
  %930 = vrot.lane.b32.xlu0 %v894, 112
  %v931 = vpop.permute.xlu0 %930
  %932 = vrot.lane.b32.xlu0 %v895, 112
  %v933 = vpop.permute.xlu0 %932
  %934 = vrot.lane.b32.xlu0 %v896, 112
  %v935 = vpop.permute.xlu0 %934
  %936 = vrot.lane.b32.xlu0 %v897, 112
  %v937 = vpop.permute.xlu0 %936
  %938 = vrot.lane.b32.xlu0 %v898, 112
  %v939 = vpop.permute.xlu0 %938
  %940 = vrot.lane.b32.xlu0 %v899, 112
  %v941 = vpop.permute.xlu0 %940
  %942 = vrot.lane.b32.xlu0 %v900, 112
  %v943 = vpop.permute.xlu0 %942
  %944 = vrot.lane.b32.xlu0 %v901, 112
  %v945 = vpop.permute.xlu0 %944
  %946 = vrot.lane.b32.xlu0 %v902, 112
  %v947 = vpop.permute.xlu0 %946
  %948 = vrot.lane.b32.xlu0 %v903, 112
  %v949 = vpop.permute.xlu0 %948
  %950 = vrot.lane.b32.xlu0 %v904, 112
  %v951 = vpop.permute.xlu0 %950
  %952 = vrot.lane.b32.xlu0 %v905, 112
  %v953 = vpop.permute.xlu0 %952
  %v970 = vsel %vm56, %v923, 0.0
  %971 = vadd.xlane.f32.xlu0 %v970
  %v972 = vpop.xlane.xlu0 %971
  %v973 = vsel %vm56, %v925, 0.0
  %974 = vadd.xlane.f32.xlu0 %v973
  %v975 = vpop.xlane.xlu0 %974
  %v976 = vsel %vm56, %v927, 0.0
  %977 = vadd.xlane.f32.xlu0 %v976
  %v978 = vpop.xlane.xlu0 %977
  %v979 = vsel %vm56, %v929, 0.0
  %980 = vadd.xlane.f32.xlu0 %v979
  %v981 = vpop.xlane.xlu0 %980
  %v982 = vsel %vm56, %v931, 0.0
  %983 = vadd.xlane.f32.xlu0 %v982
  %v984 = vpop.xlane.xlu0 %983
  %v985 = vsel %vm56, %v933, 0.0
  %986 = vadd.xlane.f32.xlu0 %v985
  %v987 = vpop.xlane.xlu0 %986
  %v988 = vsel %vm56, %v935, 0.0
  %989 = vadd.xlane.f32.xlu0 %v988
  %v990 = vpop.xlane.xlu0 %989
  %v991 = vsel %vm56, %v937, 0.0
  %992 = vadd.xlane.f32.xlu0 %v991
  %v993 = vpop.xlane.xlu0 %992
  %v994 = vsel %vm56, %v939, 0.0
  %995 = vadd.xlane.f32.xlu0 %v994
  %v996 = vpop.xlane.xlu0 %995
  %v997 = vsel %vm56, %v941, 0.0
  %998 = vadd.xlane.f32.xlu0 %v997
  %v999 = vpop.xlane.xlu0 %998
  %v1000 = vsel %vm56, %v943, 0.0
  %1001 = vadd.xlane.f32.xlu0 %v1000
  %v1002 = vpop.xlane.xlu0 %1001
  %v1003 = vsel %vm56, %v945, 0.0
  %1004 = vadd.xlane.f32.xlu0 %v1003
  %v1005 = vpop.xlane.xlu0 %1004
  %v1006 = vsel %vm56, %v947, 0.0
  %1007 = vadd.xlane.f32.xlu0 %v1006
  %v1008 = vpop.xlane.xlu0 %1007
  %v1009 = vsel %vm56, %v949, 0.0
  %1010 = vadd.xlane.f32.xlu0 %v1009
  %v1011 = vpop.xlane.xlu0 %1010
  %v1012 = vsel %vm56, %v951, 0.0
  %1013 = vadd.xlane.f32.xlu0 %v1012
  %v1014 = vpop.xlane.xlu0 %1013
  %v1015 = vsel %vm56, %v953, 0.0
  %1016 = vadd.xlane.f32.xlu0 %v1015
  %v1017 = vpop.xlane.xlu0 %1016
  %v1018 = vlaneseq
  %v1019 = vshrl.u32 %v1018, 7
  %v1020 = vsub.s32 1, %v1019
  %v1021 = vrot.slane %v370, %v1020
  %v1022 = vadd.f32 %v972, %v1021
  %v1023 = vadd.f32 %v975, %v1021
  %v1024 = vadd.f32 %v978, %v1021
  %v1025 = vadd.f32 %v981, %v1021
  %v1026 = vadd.f32 %v984, %v1021
  %v1027 = vadd.f32 %v987, %v1021
  %v1028 = vadd.f32 %v990, %v1021
  %v1029 = vadd.f32 %v993, %v1021
  %v1030 = vadd.f32 %v996, %v1021
  %v1031 = vadd.f32 %v999, %v1021
  %v1032 = vadd.f32 %v1002, %v1021
  %v1033 = vadd.f32 %v1005, %v1021
  %v1034 = vadd.f32 %v1008, %v1021
  %v1035 = vadd.f32 %v1011, %v1021
  %v1036 = vadd.f32 %v1014, %v1021
  %v1037 = vadd.f32 %v1017, %v1021
  %vm1038 = vcmp.gt.f32.partialorder %v1022, 0.0
  %vm1039 = vcmp.gt.f32.partialorder %v1023, 0.0
  %vm1040 = vcmp.gt.f32.partialorder %v1024, 0.0
  %vm1041 = vcmp.gt.f32.partialorder %v1025, 0.0
  %vm1042 = vcmp.gt.f32.partialorder %v1026, 0.0
  %vm1043 = vcmp.gt.f32.partialorder %v1027, 0.0
  %vm1044 = vcmp.gt.f32.partialorder %v1028, 0.0
  %vm1045 = vcmp.gt.f32.partialorder %v1029, 0.0
  %vm1046 = vcmp.gt.f32.partialorder %v1030, 0.0
  %vm1047 = vcmp.gt.f32.partialorder %v1031, 0.0
  %vm1048 = vcmp.gt.f32.partialorder %v1032, 0.0
  %vm1049 = vcmp.gt.f32.partialorder %v1033, 0.0
  %vm1050 = vcmp.gt.f32.partialorder %v1034, 0.0
  %vm1051 = vcmp.gt.f32.partialorder %v1035, 0.0
  %vm1052 = vcmp.gt.f32.partialorder %v1036, 0.0
  %vm1053 = vcmp.gt.f32.partialorder %v1037, 0.0
  %v1054 = vmul.f32 %v1022, 0.2
  %v1055 = vmul.f32 %v1023, 0.2
  %v1056 = vmul.f32 %v1024, 0.2
  %v1057 = vmul.f32 %v1025, 0.2
  %v1058 = vmul.f32 %v1026, 0.2
  %v1059 = vmul.f32 %v1027, 0.2
  %v1060 = vmul.f32 %v1028, 0.2
  %v1061 = vmul.f32 %v1029, 0.2
  %v1062 = vmul.f32 %v1030, 0.2
  %v1063 = vmul.f32 %v1031, 0.2
  %v1064 = vmul.f32 %v1032, 0.2
  %v1065 = vmul.f32 %v1033, 0.2
  %v1066 = vmul.f32 %v1034, 0.2
  %v1067 = vmul.f32 %v1035, 0.2
  %v1068 = vmul.f32 %v1036, 0.2
  %v1069 = vmul.f32 %v1037, 0.2
  %v1070 = vsel %vm1038, %v1022, %v1054
  %v1071 = vsel %vm1039, %v1023, %v1055
  %v1072 = vsel %vm1040, %v1024, %v1056
  %v1073 = vsel %vm1041, %v1025, %v1057
  %v1074 = vsel %vm1042, %v1026, %v1058
  %v1075 = vsel %vm1043, %v1027, %v1059
  %v1076 = vsel %vm1044, %v1028, %v1060
  %v1077 = vsel %vm1045, %v1029, %v1061
  %v1078 = vsel %vm1046, %v1030, %v1062
  %v1079 = vsel %vm1047, %v1031, %v1063
  %v1080 = vsel %vm1048, %v1032, %v1064
  %v1081 = vsel %vm1049, %v1033, %v1065
  %v1082 = vsel %vm1050, %v1034, %v1066
  %v1083 = vsel %vm1051, %v1035, %v1067
  %v1084 = vsel %vm1052, %v1036, %v1068
  %v1085 = vsel %vm1053, %v1037, %v1069
  %v1086 = vsel %vm509, %v1070, -1e+30
  %v1087 = vsel %vm510, %v1071, -1e+30
  %v1088 = vsel %vm511, %v1072, -1e+30
  %v1089 = vsel %vm512, %v1073, -1e+30
  %v1090 = vsel %vm513, %v1074, -1e+30
  %v1091 = vsel %vm514, %v1075, -1e+30
  %v1092 = vsel %vm515, %v1076, -1e+30
  %v1093 = vsel %vm516, %v1077, -1e+30
  %v1094 = vsel %vm517, %v1078, -1e+30
  %v1095 = vsel %vm518, %v1079, -1e+30
  %v1096 = vsel %vm519, %v1080, -1e+30
  %v1097 = vsel %vm520, %v1081, -1e+30
  %v1098 = vsel %vm521, %v1082, -1e+30
  %v1099 = vsel %vm522, %v1083, -1e+30
  %v1100 = vsel %vm523, %v1084, -1e+30
  %v1101 = vsel %vm524, %v1085, -1e+30
  %1102 = vmax.xlane.f32.xlu0 %v1086
  %v1103 = vpop.xlane.xlu0 %1102
  %1104 = vmax.xlane.f32.xlu0 %v1087
  %v1105 = vpop.xlane.xlu0 %1104
  %1106 = vmax.xlane.f32.xlu0 %v1088
  %v1107 = vpop.xlane.xlu0 %1106
  %1108 = vmax.xlane.f32.xlu0 %v1089
  %v1109 = vpop.xlane.xlu0 %1108
  %1110 = vmax.xlane.f32.xlu0 %v1090
  %v1111 = vpop.xlane.xlu0 %1110
  %1112 = vmax.xlane.f32.xlu0 %v1091
  %v1113 = vpop.xlane.xlu0 %1112
  %1114 = vmax.xlane.f32.xlu0 %v1092
  %v1115 = vpop.xlane.xlu0 %1114
  %1116 = vmax.xlane.f32.xlu0 %v1093
  %v1117 = vpop.xlane.xlu0 %1116
  %1118 = vmax.xlane.f32.xlu0 %v1094
  %v1119 = vpop.xlane.xlu0 %1118
  %1120 = vmax.xlane.f32.xlu0 %v1095
  %v1121 = vpop.xlane.xlu0 %1120
  %1122 = vmax.xlane.f32.xlu0 %v1096
  %v1123 = vpop.xlane.xlu0 %1122
  %1124 = vmax.xlane.f32.xlu0 %v1097
  %v1125 = vpop.xlane.xlu0 %1124
  %1126 = vmax.xlane.f32.xlu0 %v1098
  %v1127 = vpop.xlane.xlu0 %1126
  %1128 = vmax.xlane.f32.xlu0 %v1099
  %v1129 = vpop.xlane.xlu0 %1128
  %1130 = vmax.xlane.f32.xlu0 %v1100
  %v1131 = vpop.xlane.xlu0 %1130
  %1132 = vmax.xlane.f32.xlu0 %v1101
  %v1133 = vpop.xlane.xlu0 %1132
  %v1134 = vsub.f32 %v1086, %v1103
  %v1135 = vsub.f32 %v1087, %v1105
  %v1136 = vsub.f32 %v1088, %v1107
  %v1137 = vsub.f32 %v1089, %v1109
  %v1138 = vsub.f32 %v1090, %v1111
  %v1139 = vsub.f32 %v1091, %v1113
  %v1140 = vsub.f32 %v1092, %v1115
  %v1141 = vsub.f32 %v1093, %v1117
  %v1142 = vsub.f32 %v1094, %v1119
  %v1143 = vsub.f32 %v1095, %v1121
  %v1144 = vsub.f32 %v1096, %v1123
  %v1145 = vsub.f32 %v1097, %v1125
  %v1146 = vsub.f32 %v1098, %v1127
  %v1147 = vsub.f32 %v1099, %v1129
  %v1148 = vsub.f32 %v1100, %v1131
  %v1149 = vsub.f32 %v1101, %v1133
  %v1150 = vmul.f32 %v1134, 1.442695
  %v1151 = vpow.pop %v1150
  %v1152 = vmul.f32 %v1135, 1.442695
  %v1153 = vpow.pop %v1152
  %v1154 = vmul.f32 %v1136, 1.442695
  %v1155 = vpow.pop %v1154
  %v1156 = vmul.f32 %v1137, 1.442695
  %v1157 = vpow.pop %v1156
  %v1158 = vmul.f32 %v1138, 1.442695
  %v1159 = vpow.pop %v1158
  %v1160 = vmul.f32 %v1139, 1.442695
  %v1161 = vpow.pop %v1160
  %v1162 = vmul.f32 %v1140, 1.442695
  %v1163 = vpow.pop %v1162
  %v1164 = vmul.f32 %v1141, 1.442695
  %v1165 = vpow.pop %v1164
  %v1166 = vmul.f32 %v1142, 1.442695
  %v1167 = vpow.pop %v1166
  %v1168 = vmul.f32 %v1143, 1.442695
  %v1169 = vpow.pop %v1168
  %v1170 = vmul.f32 %v1144, 1.442695
  %v1171 = vpow.pop %v1170
  %v1172 = vmul.f32 %v1145, 1.442695
  %v1173 = vpow.pop %v1172
  %v1174 = vmul.f32 %v1146, 1.442695
  %v1175 = vpow.pop %v1174
  %v1176 = vmul.f32 %v1147, 1.442695
  %v1177 = vpow.pop %v1176
  %v1178 = vmul.f32 %v1148, 1.442695
  %v1179 = vpow.pop %v1178
  %v1180 = vmul.f32 %v1149, 1.442695
  %v1181 = vpow.pop %v1180
  %v1182 = vmul.f32 %v1151, %v36
  %v1183 = vmul.f32 %v1153, %v37
  %v1184 = vmul.f32 %v1155, %v38
  %v1185 = vmul.f32 %v1157, %v39
  %v1186 = vmul.f32 %v1159, %v40
  %v1187 = vmul.f32 %v1161, %v41
  %v1188 = vmul.f32 %v1163, %v42
  %v1189 = vmul.f32 %v1165, %v43
  %v1190 = vmul.f32 %v1167, %v44
  %v1191 = vmul.f32 %v1169, %v45
  %v1192 = vmul.f32 %v1171, %v46
  %v1193 = vmul.f32 %v1173, %v47
  %v1194 = vmul.f32 %v1175, %v48
  %v1195 = vmul.f32 %v1177, %v49
  %v1196 = vmul.f32 %v1179, %v50
  %v1197 = vmul.f32 %v1181, %v51
  %1198 = vadd.xlane.f32.xlu0 %v1182
  %v1199 = vpop.xlane.xlu0 %1198
  %1200 = vadd.xlane.f32.xlu0 %v1183
  %v1201 = vpop.xlane.xlu0 %1200
  %1202 = vadd.xlane.f32.xlu0 %v1184
  %v1203 = vpop.xlane.xlu0 %1202
  %1204 = vadd.xlane.f32.xlu0 %v1185
  %v1205 = vpop.xlane.xlu0 %1204
  %1206 = vadd.xlane.f32.xlu0 %v1186
  %v1207 = vpop.xlane.xlu0 %1206
  %1208 = vadd.xlane.f32.xlu0 %v1187
  %v1209 = vpop.xlane.xlu0 %1208
  %1210 = vadd.xlane.f32.xlu0 %v1188
  %v1211 = vpop.xlane.xlu0 %1210
  %1212 = vadd.xlane.f32.xlu0 %v1189
  %v1213 = vpop.xlane.xlu0 %1212
  %1214 = vadd.xlane.f32.xlu0 %v1190
  %v1215 = vpop.xlane.xlu0 %1214
  %1216 = vadd.xlane.f32.xlu0 %v1191
  %v1217 = vpop.xlane.xlu0 %1216
  %1218 = vadd.xlane.f32.xlu0 %v1192
  %v1219 = vpop.xlane.xlu0 %1218
  %1220 = vadd.xlane.f32.xlu0 %v1193
  %v1221 = vpop.xlane.xlu0 %1220
  %1222 = vadd.xlane.f32.xlu0 %v1194
  %v1223 = vpop.xlane.xlu0 %1222
  %1224 = vadd.xlane.f32.xlu0 %v1195
  %v1225 = vpop.xlane.xlu0 %1224
  %1226 = vadd.xlane.f32.xlu0 %v1196
  %v1227 = vpop.xlane.xlu0 %1226
  %1228 = vadd.xlane.f32.xlu0 %v1197
  %v1229 = vpop.xlane.xlu0 %1228
  %v1230 = vmax.f32 %v1199, 1e-20
  %v1231 = vmax.f32 %v1201, 1e-20
  %v1232 = vmax.f32 %v1203, 1e-20
  %v1233 = vmax.f32 %v1205, 1e-20
  %v1234 = vmax.f32 %v1207, 1e-20
  %v1235 = vmax.f32 %v1209, 1e-20
  %v1236 = vmax.f32 %v1211, 1e-20
  %v1237 = vmax.f32 %v1213, 1e-20
  %v1238 = vmax.f32 %v1215, 1e-20
  %v1239 = vmax.f32 %v1217, 1e-20
  %v1240 = vmax.f32 %v1219, 1e-20
  %v1241 = vmax.f32 %v1221, 1e-20
  %v1242 = vmax.f32 %v1223, 1e-20
  %v1243 = vmax.f32 %v1225, 1e-20
  %v1244 = vmax.f32 %v1227, 1e-20
  %v1245 = vmax.f32 %v1229, 1e-20
  %v1246 = vrcp.pop %v1230
  %v1247 = vrcp.pop %v1231
  %v1248 = vrcp.pop %v1232
  %v1249 = vrcp.pop %v1233
  %v1250 = vrcp.pop %v1234
  %v1251 = vrcp.pop %v1235
  %v1252 = vrcp.pop %v1236
  %v1253 = vrcp.pop %v1237
  %v1254 = vrcp.pop %v1238
  %v1255 = vrcp.pop %v1239
  %v1256 = vrcp.pop %v1240
  %v1257 = vrcp.pop %v1241
  %v1258 = vrcp.pop %v1242
  %v1259 = vrcp.pop %v1243
  %v1260 = vrcp.pop %v1244
  %v1261 = vrcp.pop %v1245
  %v1262 = vmul.f32 %v1182, %v1246
  %v1263 = vmul.f32 %v1183, %v1247
  %v1264 = vmul.f32 %v1184, %v1248
  %v1265 = vmul.f32 %v1185, %v1249
  %v1266 = vmul.f32 %v1186, %v1250
  %v1267 = vmul.f32 %v1187, %v1251
  %v1268 = vmul.f32 %v1188, %v1252
  %v1269 = vmul.f32 %v1189, %v1253
  %v1270 = vmul.f32 %v1190, %v1254
  %v1271 = vmul.f32 %v1191, %v1255
  %v1272 = vmul.f32 %v1192, %v1256
  %v1273 = vmul.f32 %v1193, %v1257
  %v1274 = vmul.f32 %v1194, %v1258
  %v1275 = vmul.f32 %v1195, %v1259
  %v1276 = vmul.f32 %v1196, %v1260
  %v1277 = vmul.f32 %v1197, %v1261
  %v1278 = vlaneseq
  %v1279 = vshrl.u32 %v1278, 7
  %v1280 = vsub.s32 5, %v1279
  %v1281 = vrot.slane %v52, %v1280
  %1282 = vrot.lane.b32.xlu0 %v172, 112
  %v1283 = vpop.permute.xlu0 %1282
  %1284 = vrot.lane.b32.xlu0 %v177, 112
  %v1285 = vpop.permute.xlu0 %1284
  %1286 = vrot.lane.b32.xlu0 %v182, 112
  %v1287 = vpop.permute.xlu0 %1286
  %1288 = vrot.lane.b32.xlu0 %v187, 112
  %v1289 = vpop.permute.xlu0 %1288
  %1290 = vrot.lane.b32.xlu0 %v192, 112
  %v1291 = vpop.permute.xlu0 %1290
  %1292 = vrot.lane.b32.xlu0 %v197, 112
  %v1293 = vpop.permute.xlu0 %1292
  %1294 = vrot.lane.b32.xlu0 %v202, 112
  %v1295 = vpop.permute.xlu0 %1294
  %1296 = vrot.lane.b32.xlu0 %v207, 112
  %v1297 = vpop.permute.xlu0 %1296
  %1298 = vrot.lane.b32.xlu0 %v212, 112
  %v1299 = vpop.permute.xlu0 %1298
  %1300 = vrot.lane.b32.xlu0 %v217, 112
  %v1301 = vpop.permute.xlu0 %1300
  %1302 = vrot.lane.b32.xlu0 %v222, 112
  %v1303 = vpop.permute.xlu0 %1302
  %1304 = vrot.lane.b32.xlu0 %v227, 112
  %v1305 = vpop.permute.xlu0 %1304
  %1306 = vrot.lane.b32.xlu0 %v232, 112
  %v1307 = vpop.permute.xlu0 %1306
  %1308 = vrot.lane.b32.xlu0 %v237, 112
  %v1309 = vpop.permute.xlu0 %1308
  %1310 = vrot.lane.b32.xlu0 %v242, 112
  %v1311 = vpop.permute.xlu0 %1310
  %1312 = vrot.lane.b32.xlu0 %v247, 112
  %v1313 = vpop.permute.xlu0 %1312
  %1330 = vmatprep.subr.mxu0 0.0
  %1331 = vmatpush1.msra.mxu0 %v1283
  %1332 = vmatprep.subr.mxu0 0.0
  %1333 = vmatpush1.msra.mxu0 %v1285
  %1334 = vmatprep.subr.mxu0 0.0
  %1335 = vmatpush1.msra.mxu0 %v1287
  %1336 = vmatprep.subr.mxu0 0.0
  %1337 = vmatpush1.msra.mxu0 %v1289
  %1338 = vmatprep.subr.mxu0 0.0
  %1339 = vmatpush1.msra.mxu0 %v1291
  %1340 = vmatprep.subr.mxu0 0.0
  %1341 = vmatpush1.msra.mxu0 %v1293
  %1342 = vmatprep.subr.mxu0 0.0
  %1343 = vmatpush1.msra.mxu0 %v1295
  %1344 = vmatprep.subr.mxu0 0.0
  %1345 = vmatpush1.msra.mxu0 %v1297
  %1346 = vmatprep.subr.mxu0 0.0
  %1347 = vmatpush1.msra.mxu0 %v1299
  %1348 = vmatprep.subr.mxu0 0.0
  %1349 = vmatpush1.msra.mxu0 %v1301
  %1350 = vmatprep.subr.mxu0 0.0
  %1351 = vmatpush1.msra.mxu0 %v1303
  %1352 = vmatprep.subr.mxu0 0.0
  %1353 = vmatpush1.msra.mxu0 %v1305
  %1354 = vmatprep.subr.mxu0 0.0
  %1355 = vmatpush1.msra.mxu0 %v1307
  %1356 = vmatprep.subr.mxu0 0.0
  %1357 = vmatpush1.msra.mxu0 %v1309
  %1358 = vmatprep.subr.mxu0 0.0
  %1359 = vmatpush1.msra.mxu0 %v1311
  %1360 = vmatprep.subr.mxu0 0.0
  %1361 = vmatpush1.msra.mxu0 %v1313
  %1362 = vmatprep.subr.mxu0 0.0
  %1363 = vmatpush1.msra.mxu0 0.0
  %1364 = vmatprep.subr.mxu0 0.0
  %1365 = vmatpush1.msra.mxu0 0.0
  %1366 = vmatprep.subr.mxu0 0.0
  %1367 = vmatpush1.msra.mxu0 0.0
  %1368 = vmatprep.subr.mxu0 0.0
  %1369 = vmatpush1.msra.mxu0 0.0
  %1370 = vmatprep.subr.mxu0 0.0
  %1371 = vmatpush1.msra.mxu0 0.0
  %1372 = vmatprep.subr.mxu0 0.0
  %1373 = vmatpush1.msra.mxu0 0.0
  %1374 = vmatprep.subr.mxu0 0.0
  %1375 = vmatpush1.msra.mxu0 0.0
  %1376 = vmatprep.subr.mxu0 0.0
  %1377 = vmatpush1.msra.mxu0 0.0
  %1378 = vmatprep.subr.mxu0 0.0
  %1379 = vmatpush1.msra.mxu0 0.0
  %1380 = vmatprep.subr.mxu0 0.0
  %1381 = vmatpush1.msra.mxu0 0.0
  %1382 = vmatprep.subr.mxu0 0.0
  %1383 = vmatpush1.msra.mxu0 0.0
  %1384 = vmatprep.subr.mxu0 0.0
  %1385 = vmatpush1.msra.mxu0 0.0
  %1386 = vmatprep.subr.mxu0 0.0
  %1387 = vmatpush1.msra.mxu0 0.0
  %1388 = vmatprep.subr.mxu0 0.0
  %1389 = vmatpush1.msra.mxu0 0.0
  %1390 = vmatprep.subr.mxu0 0.0
  %1391 = vmatpush1.msra.mxu0 0.0
  %1392 = vmatprep.subr.mxu0 0.0
  %1393 = vmatpush1.msra.mxu0 0.0
  %1394 = vmatprep.mubr.f32.mxu0 0.0
  %1395 = vmatmul.mubr.f32.gmra.mrb[0].mxu0 %v1262
  %v1396 = vpop.f32.mrb[0].mxu0
  %v1397 = vadd.f32 %v1281, %v1396
  %v1398 = vpop.f32.mrb[0].mxu0
  %1399 = vmatprep.mubr.f32.mxu0 0.0
  %1400 = vmatmul.mubr.f32.gmra.mrb[0].mxu0 %v1263
  %v1401 = vpop.f32.mrb[0].mxu0
  %v1402 = vadd.f32 %v1281, %v1401
  %v1403 = vpop.f32.mrb[0].mxu0
  %1404 = vmatprep.mubr.f32.mxu0 0.0
  %1405 = vmatmul.mubr.f32.gmra.mrb[0].mxu0 %v1264
  %v1406 = vpop.f32.mrb[0].mxu0
  %v1407 = vadd.f32 %v1281, %v1406
  %v1408 = vpop.f32.mrb[0].mxu0
  %1409 = vmatprep.mubr.f32.mxu0 0.0
  %1410 = vmatmul.mubr.f32.gmra.mrb[0].mxu0 %v1265
  %v1411 = vpop.f32.mrb[0].mxu0
  %v1412 = vadd.f32 %v1281, %v1411
  %v1413 = vpop.f32.mrb[0].mxu0
  %1414 = vmatprep.mubr.f32.mxu0 0.0
  %1415 = vmatmul.mubr.f32.gmra.mrb[0].mxu0 %v1266
  %v1416 = vpop.f32.mrb[0].mxu0
  %v1417 = vadd.f32 %v1281, %v1416
  %v1418 = vpop.f32.mrb[0].mxu0
  %1419 = vmatprep.mubr.f32.mxu0 0.0
  %1420 = vmatmul.mubr.f32.gmra.mrb[0].mxu0 %v1267
  %v1421 = vpop.f32.mrb[0].mxu0
  %v1422 = vadd.f32 %v1281, %v1421
  %v1423 = vpop.f32.mrb[0].mxu0
  %1424 = vmatprep.mubr.f32.mxu0 0.0
  %1425 = vmatmul.mubr.f32.gmra.mrb[0].mxu0 %v1268
  %v1426 = vpop.f32.mrb[0].mxu0
  %v1427 = vadd.f32 %v1281, %v1426
  %v1428 = vpop.f32.mrb[0].mxu0
  %1429 = vmatprep.mubr.f32.mxu0 0.0
  %1430 = vmatmul.mubr.f32.gmra.mrb[0].mxu0 %v1269
  %v1431 = vpop.f32.mrb[0].mxu0
  %v1432 = vadd.f32 %v1281, %v1431
  %v1433 = vpop.f32.mrb[0].mxu0
  %1434 = vmatprep.mubr.f32.mxu0 0.0
  %1435 = vmatmul.mubr.f32.gmra.mrb[0].mxu0 %v1270
  %v1436 = vpop.f32.mrb[0].mxu0
  %v1437 = vadd.f32 %v1281, %v1436
  %v1438 = vpop.f32.mrb[0].mxu0
  %1439 = vmatprep.mubr.f32.mxu0 0.0
  %1440 = vmatmul.mubr.f32.gmra.mrb[0].mxu0 %v1271
  %v1441 = vpop.f32.mrb[0].mxu0
  %v1442 = vadd.f32 %v1281, %v1441
  %v1443 = vpop.f32.mrb[0].mxu0
  %1444 = vmatprep.mubr.f32.mxu0 0.0
  %1445 = vmatmul.mubr.f32.gmra.mrb[0].mxu0 %v1272
  %v1446 = vpop.f32.mrb[0].mxu0
  %v1447 = vadd.f32 %v1281, %v1446
  %v1448 = vpop.f32.mrb[0].mxu0
  %1449 = vmatprep.mubr.f32.mxu0 0.0
  %1450 = vmatmul.mubr.f32.gmra.mrb[0].mxu0 %v1273
  %v1451 = vpop.f32.mrb[0].mxu0
  %v1452 = vadd.f32 %v1281, %v1451
  %v1453 = vpop.f32.mrb[0].mxu0
  %1454 = vmatprep.mubr.f32.mxu0 0.0
  %1455 = vmatmul.mubr.f32.gmra.mrb[0].mxu0 %v1274
  %v1456 = vpop.f32.mrb[0].mxu0
  %v1457 = vadd.f32 %v1281, %v1456
  %v1458 = vpop.f32.mrb[0].mxu0
  %1459 = vmatprep.mubr.f32.mxu0 0.0
  %1460 = vmatmul.mubr.f32.gmra.mrb[0].mxu0 %v1275
  %v1461 = vpop.f32.mrb[0].mxu0
  %v1462 = vadd.f32 %v1281, %v1461
  %v1463 = vpop.f32.mrb[0].mxu0
  %1464 = vmatprep.mubr.f32.mxu0 0.0
  %1465 = vmatmul.mubr.f32.gmra.mrb[0].mxu0 %v1276
  %v1466 = vpop.f32.mrb[0].mxu0
  %v1467 = vadd.f32 %v1281, %v1466
  %v1468 = vpop.f32.mrb[0].mxu0
  %1469 = vmatprep.mubr.f32.mxu0 0.0
  %1470 = vmatmul.mubr.f32.gmra.mrb[0].mxu0 %v1277
  %v1471 = vpop.f32.mrb[0].mxu0
  %v1472 = vadd.f32 %v1281, %v1471
  %v1473 = vpop.f32.mrb[0].mxu0
  %1474 = vdwg.mxu0
  %v1475 = vmax.f32 %v1397, 0.0
  %v1476 = vmax.f32 %v1402, 0.0
  %v1477 = vmax.f32 %v1407, 0.0
  %v1478 = vmax.f32 %v1412, 0.0
  %v1479 = vmax.f32 %v1417, 0.0
  %v1480 = vmax.f32 %v1422, 0.0
  %v1481 = vmax.f32 %v1427, 0.0
  %v1482 = vmax.f32 %v1432, 0.0
  %v1483 = vmax.f32 %v1437, 0.0
  %v1484 = vmax.f32 %v1442, 0.0
  %v1485 = vmax.f32 %v1447, 0.0
  %v1486 = vmax.f32 %v1452, 0.0
  %v1487 = vmax.f32 %v1457, 0.0
  %v1488 = vmax.f32 %v1462, 0.0
  %v1489 = vmax.f32 %v1467, 0.0
  %v1490 = vmax.f32 %v1472, 0.0
  %v1491 = vlaneseq
  %v1492 = vshrl.u32 %v1491, 7
  %v1493 = vsub.s32 2, %v1492
  %v1494 = vrot.slane %v52, %v1493
  %1496 = vrot.lane.b32.xlu0 %v1494, 32
  %v1497 = vpop.permute.xlu0 %1496
  %v1499 = vmul.f32 %v172, %v1497
  %v1500 = vmul.f32 %v177, %v1497
  %v1501 = vmul.f32 %v182, %v1497
  %v1502 = vmul.f32 %v187, %v1497
  %v1503 = vmul.f32 %v192, %v1497
  %v1504 = vmul.f32 %v197, %v1497
  %v1505 = vmul.f32 %v202, %v1497
  %v1506 = vmul.f32 %v207, %v1497
  %v1507 = vmul.f32 %v212, %v1497
  %v1508 = vmul.f32 %v217, %v1497
  %v1509 = vmul.f32 %v222, %v1497
  %v1510 = vmul.f32 %v227, %v1497
  %v1511 = vmul.f32 %v232, %v1497
  %v1512 = vmul.f32 %v237, %v1497
  %v1513 = vmul.f32 %v242, %v1497
  %v1514 = vmul.f32 %v247, %v1497
  %1531 = vrot.lane.b32.xlu0 %v1499, 96
  %v1532 = vpop.permute.xlu0 %1531
  %1533 = vrot.lane.b32.xlu0 %v1500, 96
  %v1534 = vpop.permute.xlu0 %1533
  %1535 = vrot.lane.b32.xlu0 %v1501, 96
  %v1536 = vpop.permute.xlu0 %1535
  %1537 = vrot.lane.b32.xlu0 %v1502, 96
  %v1538 = vpop.permute.xlu0 %1537
  %1539 = vrot.lane.b32.xlu0 %v1503, 96
  %v1540 = vpop.permute.xlu0 %1539
  %1541 = vrot.lane.b32.xlu0 %v1504, 96
  %v1542 = vpop.permute.xlu0 %1541
  %1543 = vrot.lane.b32.xlu0 %v1505, 96
  %v1544 = vpop.permute.xlu0 %1543
  %1545 = vrot.lane.b32.xlu0 %v1506, 96
  %v1546 = vpop.permute.xlu0 %1545
  %1547 = vrot.lane.b32.xlu0 %v1507, 96
  %v1548 = vpop.permute.xlu0 %1547
  %1549 = vrot.lane.b32.xlu0 %v1508, 96
  %v1550 = vpop.permute.xlu0 %1549
  %1551 = vrot.lane.b32.xlu0 %v1509, 96
  %v1552 = vpop.permute.xlu0 %1551
  %1553 = vrot.lane.b32.xlu0 %v1510, 96
  %v1554 = vpop.permute.xlu0 %1553
  %1555 = vrot.lane.b32.xlu0 %v1511, 96
  %v1556 = vpop.permute.xlu0 %1555
  %1557 = vrot.lane.b32.xlu0 %v1512, 96
  %v1558 = vpop.permute.xlu0 %1557
  %1559 = vrot.lane.b32.xlu0 %v1513, 96
  %v1560 = vpop.permute.xlu0 %1559
  %1561 = vrot.lane.b32.xlu0 %v1514, 96
  %v1562 = vpop.permute.xlu0 %1561
  %v1579 = vsel %vm56, %v1532, 0.0
  %1580 = vadd.xlane.f32.xlu0 %v1579
  %v1581 = vpop.xlane.xlu0 %1580
  %v1582 = vsel %vm56, %v1534, 0.0
  %1583 = vadd.xlane.f32.xlu0 %v1582
  %v1584 = vpop.xlane.xlu0 %1583
  %v1585 = vsel %vm56, %v1536, 0.0
  %1586 = vadd.xlane.f32.xlu0 %v1585
  %v1587 = vpop.xlane.xlu0 %1586
  %v1588 = vsel %vm56, %v1538, 0.0
  %1589 = vadd.xlane.f32.xlu0 %v1588
  %v1590 = vpop.xlane.xlu0 %1589
  %v1591 = vsel %vm56, %v1540, 0.0
  %1592 = vadd.xlane.f32.xlu0 %v1591
  %v1593 = vpop.xlane.xlu0 %1592
  %v1594 = vsel %vm56, %v1542, 0.0
  %1595 = vadd.xlane.f32.xlu0 %v1594
  %v1596 = vpop.xlane.xlu0 %1595
  %v1597 = vsel %vm56, %v1544, 0.0
  %1598 = vadd.xlane.f32.xlu0 %v1597
  %v1599 = vpop.xlane.xlu0 %1598
  %v1600 = vsel %vm56, %v1546, 0.0
  %1601 = vadd.xlane.f32.xlu0 %v1600
  %v1602 = vpop.xlane.xlu0 %1601
  %v1603 = vsel %vm56, %v1548, 0.0
  %1604 = vadd.xlane.f32.xlu0 %v1603
  %v1605 = vpop.xlane.xlu0 %1604
  %v1606 = vsel %vm56, %v1550, 0.0
  %1607 = vadd.xlane.f32.xlu0 %v1606
  %v1608 = vpop.xlane.xlu0 %1607
  %v1609 = vsel %vm56, %v1552, 0.0
  %1610 = vadd.xlane.f32.xlu0 %v1609
  %v1611 = vpop.xlane.xlu0 %1610
  %v1612 = vsel %vm56, %v1554, 0.0
  %1613 = vadd.xlane.f32.xlu0 %v1612
  %v1614 = vpop.xlane.xlu0 %1613
  %v1615 = vsel %vm56, %v1556, 0.0
  %1616 = vadd.xlane.f32.xlu0 %v1615
  %v1617 = vpop.xlane.xlu0 %1616
  %v1618 = vsel %vm56, %v1558, 0.0
  %1619 = vadd.xlane.f32.xlu0 %v1618
  %v1620 = vpop.xlane.xlu0 %1619
  %v1621 = vsel %vm56, %v1560, 0.0
  %1622 = vadd.xlane.f32.xlu0 %v1621
  %v1623 = vpop.xlane.xlu0 %1622
  %v1624 = vsel %vm56, %v1562, 0.0
  %1625 = vadd.xlane.f32.xlu0 %v1624
  %v1626 = vpop.xlane.xlu0 %1625
  %v1627 = vlaneseq
  %v1628 = vshrl.u32 %v1627, 7
  %v1629 = vsub.s32 2, %v1628
  %v1630 = vrot.slane %v370, %v1629
  %v1631 = vadd.f32 %v1581, %v1630
  %v1632 = vadd.f32 %v1584, %v1630
  %v1633 = vadd.f32 %v1587, %v1630
  %v1634 = vadd.f32 %v1590, %v1630
  %v1635 = vadd.f32 %v1593, %v1630
  %v1636 = vadd.f32 %v1596, %v1630
  %v1637 = vadd.f32 %v1599, %v1630
  %v1638 = vadd.f32 %v1602, %v1630
  %v1639 = vadd.f32 %v1605, %v1630
  %v1640 = vadd.f32 %v1608, %v1630
  %v1641 = vadd.f32 %v1611, %v1630
  %v1642 = vadd.f32 %v1614, %v1630
  %v1643 = vadd.f32 %v1617, %v1630
  %v1644 = vadd.f32 %v1620, %v1630
  %v1645 = vadd.f32 %v1623, %v1630
  %v1646 = vadd.f32 %v1626, %v1630
  %vm1647 = vcmp.gt.f32.partialorder %v1631, 0.0
  %vm1648 = vcmp.gt.f32.partialorder %v1632, 0.0
  %vm1649 = vcmp.gt.f32.partialorder %v1633, 0.0
  %vm1650 = vcmp.gt.f32.partialorder %v1634, 0.0
  %vm1651 = vcmp.gt.f32.partialorder %v1635, 0.0
  %vm1652 = vcmp.gt.f32.partialorder %v1636, 0.0
  %vm1653 = vcmp.gt.f32.partialorder %v1637, 0.0
  %vm1654 = vcmp.gt.f32.partialorder %v1638, 0.0
  %vm1655 = vcmp.gt.f32.partialorder %v1639, 0.0
  %vm1656 = vcmp.gt.f32.partialorder %v1640, 0.0
  %vm1657 = vcmp.gt.f32.partialorder %v1641, 0.0
  %vm1658 = vcmp.gt.f32.partialorder %v1642, 0.0
  %vm1659 = vcmp.gt.f32.partialorder %v1643, 0.0
  %vm1660 = vcmp.gt.f32.partialorder %v1644, 0.0
  %vm1661 = vcmp.gt.f32.partialorder %v1645, 0.0
  %vm1662 = vcmp.gt.f32.partialorder %v1646, 0.0
  %v1663 = vmul.f32 %v1631, 0.2
  %v1664 = vmul.f32 %v1632, 0.2
  %v1665 = vmul.f32 %v1633, 0.2
  %v1666 = vmul.f32 %v1634, 0.2
  %v1667 = vmul.f32 %v1635, 0.2
  %v1668 = vmul.f32 %v1636, 0.2
  %v1669 = vmul.f32 %v1637, 0.2
  %v1670 = vmul.f32 %v1638, 0.2
  %v1671 = vmul.f32 %v1639, 0.2
  %v1672 = vmul.f32 %v1640, 0.2
  %v1673 = vmul.f32 %v1641, 0.2
  %v1674 = vmul.f32 %v1642, 0.2
  %v1675 = vmul.f32 %v1643, 0.2
  %v1676 = vmul.f32 %v1644, 0.2
  %v1677 = vmul.f32 %v1645, 0.2
  %v1678 = vmul.f32 %v1646, 0.2
  %v1679 = vsel %vm1647, %v1631, %v1663
  %v1680 = vsel %vm1648, %v1632, %v1664
  %v1681 = vsel %vm1649, %v1633, %v1665
  %v1682 = vsel %vm1650, %v1634, %v1666
  %v1683 = vsel %vm1651, %v1635, %v1667
  %v1684 = vsel %vm1652, %v1636, %v1668
  %v1685 = vsel %vm1653, %v1637, %v1669
  %v1686 = vsel %vm1654, %v1638, %v1670
  %v1687 = vsel %vm1655, %v1639, %v1671
  %v1688 = vsel %vm1656, %v1640, %v1672
  %v1689 = vsel %vm1657, %v1641, %v1673
  %v1690 = vsel %vm1658, %v1642, %v1674
  %v1691 = vsel %vm1659, %v1643, %v1675
  %v1692 = vsel %vm1660, %v1644, %v1676
  %v1693 = vsel %vm1661, %v1645, %v1677
  %v1694 = vsel %vm1662, %v1646, %v1678
  %v1695 = vsel %vm509, %v1679, -1e+30
  %v1696 = vsel %vm510, %v1680, -1e+30
  %v1697 = vsel %vm511, %v1681, -1e+30
  %v1698 = vsel %vm512, %v1682, -1e+30
  %v1699 = vsel %vm513, %v1683, -1e+30
  %v1700 = vsel %vm514, %v1684, -1e+30
  %v1701 = vsel %vm515, %v1685, -1e+30
  %v1702 = vsel %vm516, %v1686, -1e+30
  %v1703 = vsel %vm517, %v1687, -1e+30
  %v1704 = vsel %vm518, %v1688, -1e+30
  %v1705 = vsel %vm519, %v1689, -1e+30
  %v1706 = vsel %vm520, %v1690, -1e+30
  %v1707 = vsel %vm521, %v1691, -1e+30
  %v1708 = vsel %vm522, %v1692, -1e+30
  %v1709 = vsel %vm523, %v1693, -1e+30
  %v1710 = vsel %vm524, %v1694, -1e+30
  %1711 = vmax.xlane.f32.xlu0 %v1695
  %v1712 = vpop.xlane.xlu0 %1711
  %1713 = vmax.xlane.f32.xlu0 %v1696
  %v1714 = vpop.xlane.xlu0 %1713
  %1715 = vmax.xlane.f32.xlu0 %v1697
  %v1716 = vpop.xlane.xlu0 %1715
  %1717 = vmax.xlane.f32.xlu0 %v1698
  %v1718 = vpop.xlane.xlu0 %1717
  %1719 = vmax.xlane.f32.xlu0 %v1699
  %v1720 = vpop.xlane.xlu0 %1719
  %1721 = vmax.xlane.f32.xlu0 %v1700
  %v1722 = vpop.xlane.xlu0 %1721
  %1723 = vmax.xlane.f32.xlu0 %v1701
  %v1724 = vpop.xlane.xlu0 %1723
  %1725 = vmax.xlane.f32.xlu0 %v1702
  %v1726 = vpop.xlane.xlu0 %1725
  %1727 = vmax.xlane.f32.xlu0 %v1703
  %v1728 = vpop.xlane.xlu0 %1727
  %1729 = vmax.xlane.f32.xlu0 %v1704
  %v1730 = vpop.xlane.xlu0 %1729
  %1731 = vmax.xlane.f32.xlu0 %v1705
  %v1732 = vpop.xlane.xlu0 %1731
  %1733 = vmax.xlane.f32.xlu0 %v1706
  %v1734 = vpop.xlane.xlu0 %1733
  %1735 = vmax.xlane.f32.xlu0 %v1707
  %v1736 = vpop.xlane.xlu0 %1735
  %1737 = vmax.xlane.f32.xlu0 %v1708
  %v1738 = vpop.xlane.xlu0 %1737
  %1739 = vmax.xlane.f32.xlu0 %v1709
  %v1740 = vpop.xlane.xlu0 %1739
  %1741 = vmax.xlane.f32.xlu0 %v1710
  %v1742 = vpop.xlane.xlu0 %1741
  %v1743 = vsub.f32 %v1695, %v1712
  %v1744 = vsub.f32 %v1696, %v1714
  %v1745 = vsub.f32 %v1697, %v1716
  %v1746 = vsub.f32 %v1698, %v1718
  %v1747 = vsub.f32 %v1699, %v1720
  %v1748 = vsub.f32 %v1700, %v1722
  %v1749 = vsub.f32 %v1701, %v1724
  %v1750 = vsub.f32 %v1702, %v1726
  %v1751 = vsub.f32 %v1703, %v1728
  %v1752 = vsub.f32 %v1704, %v1730
  %v1753 = vsub.f32 %v1705, %v1732
  %v1754 = vsub.f32 %v1706, %v1734
  %v1755 = vsub.f32 %v1707, %v1736
  %v1756 = vsub.f32 %v1708, %v1738
  %v1757 = vsub.f32 %v1709, %v1740
  %v1758 = vsub.f32 %v1710, %v1742
  %v1759 = vmul.f32 %v1743, 1.442695
  %v1760 = vpow.pop %v1759
  %v1761 = vmul.f32 %v1744, 1.442695
  %v1762 = vpow.pop %v1761
  %v1763 = vmul.f32 %v1745, 1.442695
  %v1764 = vpow.pop %v1763
  %v1765 = vmul.f32 %v1746, 1.442695
  %v1766 = vpow.pop %v1765
  %v1767 = vmul.f32 %v1747, 1.442695
  %v1768 = vpow.pop %v1767
  %v1769 = vmul.f32 %v1748, 1.442695
  %v1770 = vpow.pop %v1769
  %v1771 = vmul.f32 %v1749, 1.442695
  %v1772 = vpow.pop %v1771
  %v1773 = vmul.f32 %v1750, 1.442695
  %v1774 = vpow.pop %v1773
  %v1775 = vmul.f32 %v1751, 1.442695
  %v1776 = vpow.pop %v1775
  %v1777 = vmul.f32 %v1752, 1.442695
  %v1778 = vpow.pop %v1777
  %v1779 = vmul.f32 %v1753, 1.442695
  %v1780 = vpow.pop %v1779
  %v1781 = vmul.f32 %v1754, 1.442695
  %v1782 = vpow.pop %v1781
  %v1783 = vmul.f32 %v1755, 1.442695
  %v1784 = vpow.pop %v1783
  %v1785 = vmul.f32 %v1756, 1.442695
  %v1786 = vpow.pop %v1785
  %v1787 = vmul.f32 %v1757, 1.442695
  %v1788 = vpow.pop %v1787
  %v1789 = vmul.f32 %v1758, 1.442695
  %v1790 = vpow.pop %v1789
  %v1791 = vmul.f32 %v1760, %v36
  %v1792 = vmul.f32 %v1762, %v37
  %v1793 = vmul.f32 %v1764, %v38
  %v1794 = vmul.f32 %v1766, %v39
  %v1795 = vmul.f32 %v1768, %v40
  %v1796 = vmul.f32 %v1770, %v41
  %v1797 = vmul.f32 %v1772, %v42
  %v1798 = vmul.f32 %v1774, %v43
  %v1799 = vmul.f32 %v1776, %v44
  %v1800 = vmul.f32 %v1778, %v45
  %v1801 = vmul.f32 %v1780, %v46
  %v1802 = vmul.f32 %v1782, %v47
  %v1803 = vmul.f32 %v1784, %v48
  %v1804 = vmul.f32 %v1786, %v49
  %v1805 = vmul.f32 %v1788, %v50
  %v1806 = vmul.f32 %v1790, %v51
  %1807 = vadd.xlane.f32.xlu0 %v1791
  %v1808 = vpop.xlane.xlu0 %1807
  %1809 = vadd.xlane.f32.xlu0 %v1792
  %v1810 = vpop.xlane.xlu0 %1809
  %1811 = vadd.xlane.f32.xlu0 %v1793
  %v1812 = vpop.xlane.xlu0 %1811
  %1813 = vadd.xlane.f32.xlu0 %v1794
  %v1814 = vpop.xlane.xlu0 %1813
  %1815 = vadd.xlane.f32.xlu0 %v1795
  %v1816 = vpop.xlane.xlu0 %1815
  %1817 = vadd.xlane.f32.xlu0 %v1796
  %v1818 = vpop.xlane.xlu0 %1817
  %1819 = vadd.xlane.f32.xlu0 %v1797
  %v1820 = vpop.xlane.xlu0 %1819
  %1821 = vadd.xlane.f32.xlu0 %v1798
  %v1822 = vpop.xlane.xlu0 %1821
  %1823 = vadd.xlane.f32.xlu0 %v1799
  %v1824 = vpop.xlane.xlu0 %1823
  %1825 = vadd.xlane.f32.xlu0 %v1800
  %v1826 = vpop.xlane.xlu0 %1825
  %1827 = vadd.xlane.f32.xlu0 %v1801
  %v1828 = vpop.xlane.xlu0 %1827
  %1829 = vadd.xlane.f32.xlu0 %v1802
  %v1830 = vpop.xlane.xlu0 %1829
  %1831 = vadd.xlane.f32.xlu0 %v1803
  %v1832 = vpop.xlane.xlu0 %1831
  %1833 = vadd.xlane.f32.xlu0 %v1804
  %v1834 = vpop.xlane.xlu0 %1833
  %1835 = vadd.xlane.f32.xlu0 %v1805
  %v1836 = vpop.xlane.xlu0 %1835
  %1837 = vadd.xlane.f32.xlu0 %v1806
  %v1838 = vpop.xlane.xlu0 %1837
  %v1839 = vmax.f32 %v1808, 1e-20
  %v1840 = vmax.f32 %v1810, 1e-20
  %v1841 = vmax.f32 %v1812, 1e-20
  %v1842 = vmax.f32 %v1814, 1e-20
  %v1843 = vmax.f32 %v1816, 1e-20
  %v1844 = vmax.f32 %v1818, 1e-20
  %v1845 = vmax.f32 %v1820, 1e-20
  %v1846 = vmax.f32 %v1822, 1e-20
  %v1847 = vmax.f32 %v1824, 1e-20
  %v1848 = vmax.f32 %v1826, 1e-20
  %v1849 = vmax.f32 %v1828, 1e-20
  %v1850 = vmax.f32 %v1830, 1e-20
  %v1851 = vmax.f32 %v1832, 1e-20
  %v1852 = vmax.f32 %v1834, 1e-20
  %v1853 = vmax.f32 %v1836, 1e-20
  %v1854 = vmax.f32 %v1838, 1e-20
  %v1855 = vrcp.pop %v1839
  %v1856 = vrcp.pop %v1840
  %v1857 = vrcp.pop %v1841
  %v1858 = vrcp.pop %v1842
  %v1859 = vrcp.pop %v1843
  %v1860 = vrcp.pop %v1844
  %v1861 = vrcp.pop %v1845
  %v1862 = vrcp.pop %v1846
  %v1863 = vrcp.pop %v1847
  %v1864 = vrcp.pop %v1848
  %v1865 = vrcp.pop %v1849
  %v1866 = vrcp.pop %v1850
  %v1867 = vrcp.pop %v1851
  %v1868 = vrcp.pop %v1852
  %v1869 = vrcp.pop %v1853
  %v1870 = vrcp.pop %v1854
  %v1871 = vmul.f32 %v1791, %v1855
  %v1872 = vmul.f32 %v1792, %v1856
  %v1873 = vmul.f32 %v1793, %v1857
  %v1874 = vmul.f32 %v1794, %v1858
  %v1875 = vmul.f32 %v1795, %v1859
  %v1876 = vmul.f32 %v1796, %v1860
  %v1877 = vmul.f32 %v1797, %v1861
  %v1878 = vmul.f32 %v1798, %v1862
  %v1879 = vmul.f32 %v1799, %v1863
  %v1880 = vmul.f32 %v1800, %v1864
  %v1881 = vmul.f32 %v1801, %v1865
  %v1882 = vmul.f32 %v1802, %v1866
  %v1883 = vmul.f32 %v1803, %v1867
  %v1884 = vmul.f32 %v1804, %v1868
  %v1885 = vmul.f32 %v1805, %v1869
  %v1886 = vmul.f32 %v1806, %v1870
  %v1887 = vlaneseq
  %v1888 = vshrl.u32 %v1887, 7
  %v1889 = vsub.s32 6, %v1888
  %v1890 = vrot.slane %v52, %v1889
  %1891 = vrot.lane.b32.xlu0 %v172, 96
  %v1892 = vpop.permute.xlu0 %1891
  %1893 = vrot.lane.b32.xlu0 %v177, 96
  %v1894 = vpop.permute.xlu0 %1893
  %1895 = vrot.lane.b32.xlu0 %v182, 96
  %v1896 = vpop.permute.xlu0 %1895
  %1897 = vrot.lane.b32.xlu0 %v187, 96
  %v1898 = vpop.permute.xlu0 %1897
  %1899 = vrot.lane.b32.xlu0 %v192, 96
  %v1900 = vpop.permute.xlu0 %1899
  %1901 = vrot.lane.b32.xlu0 %v197, 96
  %v1902 = vpop.permute.xlu0 %1901
  %1903 = vrot.lane.b32.xlu0 %v202, 96
  %v1904 = vpop.permute.xlu0 %1903
  %1905 = vrot.lane.b32.xlu0 %v207, 96
  %v1906 = vpop.permute.xlu0 %1905
  %1907 = vrot.lane.b32.xlu0 %v212, 96
  %v1908 = vpop.permute.xlu0 %1907
  %1909 = vrot.lane.b32.xlu0 %v217, 96
  %v1910 = vpop.permute.xlu0 %1909
  %1911 = vrot.lane.b32.xlu0 %v222, 96
  %v1912 = vpop.permute.xlu0 %1911
  %1913 = vrot.lane.b32.xlu0 %v227, 96
  %v1914 = vpop.permute.xlu0 %1913
  %1915 = vrot.lane.b32.xlu0 %v232, 96
  %v1916 = vpop.permute.xlu0 %1915
  %1917 = vrot.lane.b32.xlu0 %v237, 96
  %v1918 = vpop.permute.xlu0 %1917
  %1919 = vrot.lane.b32.xlu0 %v242, 96
  %v1920 = vpop.permute.xlu0 %1919
  %1921 = vrot.lane.b32.xlu0 %v247, 96
  %v1922 = vpop.permute.xlu0 %1921
  %1939 = vmatprep.subr.mxu0 0.0
  %1940 = vmatpush1.msra.mxu0 %v1892
  %1941 = vmatprep.subr.mxu0 0.0
  %1942 = vmatpush1.msra.mxu0 %v1894
  %1943 = vmatprep.subr.mxu0 0.0
  %1944 = vmatpush1.msra.mxu0 %v1896
  %1945 = vmatprep.subr.mxu0 0.0
  %1946 = vmatpush1.msra.mxu0 %v1898
  %1947 = vmatprep.subr.mxu0 0.0
  %1948 = vmatpush1.msra.mxu0 %v1900
  %1949 = vmatprep.subr.mxu0 0.0
  %1950 = vmatpush1.msra.mxu0 %v1902
  %1951 = vmatprep.subr.mxu0 0.0
  %1952 = vmatpush1.msra.mxu0 %v1904
  %1953 = vmatprep.subr.mxu0 0.0
  %1954 = vmatpush1.msra.mxu0 %v1906
  %1955 = vmatprep.subr.mxu0 0.0
  %1956 = vmatpush1.msra.mxu0 %v1908
  %1957 = vmatprep.subr.mxu0 0.0
  %1958 = vmatpush1.msra.mxu0 %v1910
  %1959 = vmatprep.subr.mxu0 0.0
  %1960 = vmatpush1.msra.mxu0 %v1912
  %1961 = vmatprep.subr.mxu0 0.0
  %1962 = vmatpush1.msra.mxu0 %v1914
  %1963 = vmatprep.subr.mxu0 0.0
  %1964 = vmatpush1.msra.mxu0 %v1916
  %1965 = vmatprep.subr.mxu0 0.0
  %1966 = vmatpush1.msra.mxu0 %v1918
  %1967 = vmatprep.subr.mxu0 0.0
  %1968 = vmatpush1.msra.mxu0 %v1920
  %1969 = vmatprep.subr.mxu0 0.0
  %1970 = vmatpush1.msra.mxu0 %v1922
  %1971 = vmatprep.subr.mxu0 0.0
  %1972 = vmatpush1.msra.mxu0 0.0
  %1973 = vmatprep.subr.mxu0 0.0
  %1974 = vmatpush1.msra.mxu0 0.0
  %1975 = vmatprep.subr.mxu0 0.0
  %1976 = vmatpush1.msra.mxu0 0.0
  %1977 = vmatprep.subr.mxu0 0.0
  %1978 = vmatpush1.msra.mxu0 0.0
  %1979 = vmatprep.subr.mxu0 0.0
  %1980 = vmatpush1.msra.mxu0 0.0
  %1981 = vmatprep.subr.mxu0 0.0
  %1982 = vmatpush1.msra.mxu0 0.0
  %1983 = vmatprep.subr.mxu0 0.0
  %1984 = vmatpush1.msra.mxu0 0.0
  %1985 = vmatprep.subr.mxu0 0.0
  %1986 = vmatpush1.msra.mxu0 0.0
  %1987 = vmatprep.subr.mxu0 0.0
  %1988 = vmatpush1.msra.mxu0 0.0
  %1989 = vmatprep.subr.mxu0 0.0
  %1990 = vmatpush1.msra.mxu0 0.0
  %1991 = vmatprep.subr.mxu0 0.0
  %1992 = vmatpush1.msra.mxu0 0.0
  %1993 = vmatprep.subr.mxu0 0.0
  %1994 = vmatpush1.msra.mxu0 0.0
  %1995 = vmatprep.subr.mxu0 0.0
  %1996 = vmatpush1.msra.mxu0 0.0
  %1997 = vmatprep.subr.mxu0 0.0
  %1998 = vmatpush1.msra.mxu0 0.0
  %1999 = vmatprep.subr.mxu0 0.0
  %2000 = vmatpush1.msra.mxu0 0.0
  %2001 = vmatprep.subr.mxu0 0.0
  %2002 = vmatpush1.msra.mxu0 0.0
  %2003 = vmatprep.mubr.f32.mxu0 0.0
  %2004 = vmatmul.mubr.f32.gmra.mrb[0].mxu0 %v1871
  %v2005 = vpop.f32.mrb[0].mxu0
  %v2006 = vadd.f32 %v1890, %v2005
  %v2007 = vpop.f32.mrb[0].mxu0
  %2008 = vmatprep.mubr.f32.mxu0 0.0
  %2009 = vmatmul.mubr.f32.gmra.mrb[0].mxu0 %v1872
  %v2010 = vpop.f32.mrb[0].mxu0
  %v2011 = vadd.f32 %v1890, %v2010
  %v2012 = vpop.f32.mrb[0].mxu0
  %2013 = vmatprep.mubr.f32.mxu0 0.0
  %2014 = vmatmul.mubr.f32.gmra.mrb[0].mxu0 %v1873
  %v2015 = vpop.f32.mrb[0].mxu0
  %v2016 = vadd.f32 %v1890, %v2015
  %v2017 = vpop.f32.mrb[0].mxu0
  %2018 = vmatprep.mubr.f32.mxu0 0.0
  %2019 = vmatmul.mubr.f32.gmra.mrb[0].mxu0 %v1874
  %v2020 = vpop.f32.mrb[0].mxu0
  %v2021 = vadd.f32 %v1890, %v2020
  %v2022 = vpop.f32.mrb[0].mxu0
  %2023 = vmatprep.mubr.f32.mxu0 0.0
  %2024 = vmatmul.mubr.f32.gmra.mrb[0].mxu0 %v1875
  %v2025 = vpop.f32.mrb[0].mxu0
  %v2026 = vadd.f32 %v1890, %v2025
  %v2027 = vpop.f32.mrb[0].mxu0
  %2028 = vmatprep.mubr.f32.mxu0 0.0
  %2029 = vmatmul.mubr.f32.gmra.mrb[0].mxu0 %v1876
  %v2030 = vpop.f32.mrb[0].mxu0
  %v2031 = vadd.f32 %v1890, %v2030
  %v2032 = vpop.f32.mrb[0].mxu0
  %2033 = vmatprep.mubr.f32.mxu0 0.0
  %2034 = vmatmul.mubr.f32.gmra.mrb[0].mxu0 %v1877
  %v2035 = vpop.f32.mrb[0].mxu0
  %v2036 = vadd.f32 %v1890, %v2035
  %v2037 = vpop.f32.mrb[0].mxu0
  %2038 = vmatprep.mubr.f32.mxu0 0.0
  %2039 = vmatmul.mubr.f32.gmra.mrb[0].mxu0 %v1878
  %v2040 = vpop.f32.mrb[0].mxu0
  %v2041 = vadd.f32 %v1890, %v2040
  %v2042 = vpop.f32.mrb[0].mxu0
  %2043 = vmatprep.mubr.f32.mxu0 0.0
  %2044 = vmatmul.mubr.f32.gmra.mrb[0].mxu0 %v1879
  %v2045 = vpop.f32.mrb[0].mxu0
  %v2046 = vadd.f32 %v1890, %v2045
  %v2047 = vpop.f32.mrb[0].mxu0
  %2048 = vmatprep.mubr.f32.mxu0 0.0
  %2049 = vmatmul.mubr.f32.gmra.mrb[0].mxu0 %v1880
  %v2050 = vpop.f32.mrb[0].mxu0
  %v2051 = vadd.f32 %v1890, %v2050
  %v2052 = vpop.f32.mrb[0].mxu0
  %2053 = vmatprep.mubr.f32.mxu0 0.0
  %2054 = vmatmul.mubr.f32.gmra.mrb[0].mxu0 %v1881
  %v2055 = vpop.f32.mrb[0].mxu0
  %v2056 = vadd.f32 %v1890, %v2055
  %v2057 = vpop.f32.mrb[0].mxu0
  %2058 = vmatprep.mubr.f32.mxu0 0.0
  %2059 = vmatmul.mubr.f32.gmra.mrb[0].mxu0 %v1882
  %v2060 = vpop.f32.mrb[0].mxu0
  %v2061 = vadd.f32 %v1890, %v2060
  %v2062 = vpop.f32.mrb[0].mxu0
  %2063 = vmatprep.mubr.f32.mxu0 0.0
  %2064 = vmatmul.mubr.f32.gmra.mrb[0].mxu0 %v1883
  %v2065 = vpop.f32.mrb[0].mxu0
  %v2066 = vadd.f32 %v1890, %v2065
  %v2067 = vpop.f32.mrb[0].mxu0
  %2068 = vmatprep.mubr.f32.mxu0 0.0
  %2069 = vmatmul.mubr.f32.gmra.mrb[0].mxu0 %v1884
  %v2070 = vpop.f32.mrb[0].mxu0
  %v2071 = vadd.f32 %v1890, %v2070
  %v2072 = vpop.f32.mrb[0].mxu0
  %2073 = vmatprep.mubr.f32.mxu0 0.0
  %2074 = vmatmul.mubr.f32.gmra.mrb[0].mxu0 %v1885
  %v2075 = vpop.f32.mrb[0].mxu0
  %v2076 = vadd.f32 %v1890, %v2075
  %v2077 = vpop.f32.mrb[0].mxu0
  %2078 = vmatprep.mubr.f32.mxu0 0.0
  %2079 = vmatmul.mubr.f32.gmra.mrb[0].mxu0 %v1886
  %v2080 = vpop.f32.mrb[0].mxu0
  %v2081 = vadd.f32 %v1890, %v2080
  %v2082 = vpop.f32.mrb[0].mxu0
  %2083 = vdwg.mxu0
  %v2084 = vmax.f32 %v2006, 0.0
  %v2085 = vmax.f32 %v2011, 0.0
  %v2086 = vmax.f32 %v2016, 0.0
  %v2087 = vmax.f32 %v2021, 0.0
  %v2088 = vmax.f32 %v2026, 0.0
  %v2089 = vmax.f32 %v2031, 0.0
  %v2090 = vmax.f32 %v2036, 0.0
  %v2091 = vmax.f32 %v2041, 0.0
  %v2092 = vmax.f32 %v2046, 0.0
  %v2093 = vmax.f32 %v2051, 0.0
  %v2094 = vmax.f32 %v2056, 0.0
  %v2095 = vmax.f32 %v2061, 0.0
  %v2096 = vmax.f32 %v2066, 0.0
  %v2097 = vmax.f32 %v2071, 0.0
  %v2098 = vmax.f32 %v2076, 0.0
  %v2099 = vmax.f32 %v2081, 0.0
  %v2100 = vlaneseq
  %v2101 = vshrl.u32 %v2100, 7
  %v2102 = vsub.s32 3, %v2101
  %v2103 = vrot.slane %v52, %v2102
  %2105 = vrot.lane.b32.xlu0 %v2103, 48
  %v2106 = vpop.permute.xlu0 %2105
  %v2108 = vmul.f32 %v172, %v2106
  %v2109 = vmul.f32 %v177, %v2106
  %v2110 = vmul.f32 %v182, %v2106
  %v2111 = vmul.f32 %v187, %v2106
  %v2112 = vmul.f32 %v192, %v2106
  %v2113 = vmul.f32 %v197, %v2106
  %v2114 = vmul.f32 %v202, %v2106
  %v2115 = vmul.f32 %v207, %v2106
  %v2116 = vmul.f32 %v212, %v2106
  %v2117 = vmul.f32 %v217, %v2106
  %v2118 = vmul.f32 %v222, %v2106
  %v2119 = vmul.f32 %v227, %v2106
  %v2120 = vmul.f32 %v232, %v2106
  %v2121 = vmul.f32 %v237, %v2106
  %v2122 = vmul.f32 %v242, %v2106
  %v2123 = vmul.f32 %v247, %v2106
  %2140 = vrot.lane.b32.xlu0 %v2108, 80
  %v2141 = vpop.permute.xlu0 %2140
  %2142 = vrot.lane.b32.xlu0 %v2109, 80
  %v2143 = vpop.permute.xlu0 %2142
  %2144 = vrot.lane.b32.xlu0 %v2110, 80
  %v2145 = vpop.permute.xlu0 %2144
  %2146 = vrot.lane.b32.xlu0 %v2111, 80
  %v2147 = vpop.permute.xlu0 %2146
  %2148 = vrot.lane.b32.xlu0 %v2112, 80
  %v2149 = vpop.permute.xlu0 %2148
  %2150 = vrot.lane.b32.xlu0 %v2113, 80
  %v2151 = vpop.permute.xlu0 %2150
  %2152 = vrot.lane.b32.xlu0 %v2114, 80
  %v2153 = vpop.permute.xlu0 %2152
  %2154 = vrot.lane.b32.xlu0 %v2115, 80
  %v2155 = vpop.permute.xlu0 %2154
  %2156 = vrot.lane.b32.xlu0 %v2116, 80
  %v2157 = vpop.permute.xlu0 %2156
  %2158 = vrot.lane.b32.xlu0 %v2117, 80
  %v2159 = vpop.permute.xlu0 %2158
  %2160 = vrot.lane.b32.xlu0 %v2118, 80
  %v2161 = vpop.permute.xlu0 %2160
  %2162 = vrot.lane.b32.xlu0 %v2119, 80
  %v2163 = vpop.permute.xlu0 %2162
  %2164 = vrot.lane.b32.xlu0 %v2120, 80
  %v2165 = vpop.permute.xlu0 %2164
  %2166 = vrot.lane.b32.xlu0 %v2121, 80
  %v2167 = vpop.permute.xlu0 %2166
  %2168 = vrot.lane.b32.xlu0 %v2122, 80
  %v2169 = vpop.permute.xlu0 %2168
  %2170 = vrot.lane.b32.xlu0 %v2123, 80
  %v2171 = vpop.permute.xlu0 %2170
  %v2188 = vsel %vm56, %v2141, 0.0
  %2189 = vadd.xlane.f32.xlu0 %v2188
  %v2190 = vpop.xlane.xlu0 %2189
  %v2191 = vsel %vm56, %v2143, 0.0
  %2192 = vadd.xlane.f32.xlu0 %v2191
  %v2193 = vpop.xlane.xlu0 %2192
  %v2194 = vsel %vm56, %v2145, 0.0
  %2195 = vadd.xlane.f32.xlu0 %v2194
  %v2196 = vpop.xlane.xlu0 %2195
  %v2197 = vsel %vm56, %v2147, 0.0
  %2198 = vadd.xlane.f32.xlu0 %v2197
  %v2199 = vpop.xlane.xlu0 %2198
  %v2200 = vsel %vm56, %v2149, 0.0
  %2201 = vadd.xlane.f32.xlu0 %v2200
  %v2202 = vpop.xlane.xlu0 %2201
  %v2203 = vsel %vm56, %v2151, 0.0
  %2204 = vadd.xlane.f32.xlu0 %v2203
  %v2205 = vpop.xlane.xlu0 %2204
  %v2206 = vsel %vm56, %v2153, 0.0
  %2207 = vadd.xlane.f32.xlu0 %v2206
  %v2208 = vpop.xlane.xlu0 %2207
  %v2209 = vsel %vm56, %v2155, 0.0
  %2210 = vadd.xlane.f32.xlu0 %v2209
  %v2211 = vpop.xlane.xlu0 %2210
  %v2212 = vsel %vm56, %v2157, 0.0
  %2213 = vadd.xlane.f32.xlu0 %v2212
  %v2214 = vpop.xlane.xlu0 %2213
  %v2215 = vsel %vm56, %v2159, 0.0
  %2216 = vadd.xlane.f32.xlu0 %v2215
  %v2217 = vpop.xlane.xlu0 %2216
  %v2218 = vsel %vm56, %v2161, 0.0
  %2219 = vadd.xlane.f32.xlu0 %v2218
  %v2220 = vpop.xlane.xlu0 %2219
  %v2221 = vsel %vm56, %v2163, 0.0
  %2222 = vadd.xlane.f32.xlu0 %v2221
  %v2223 = vpop.xlane.xlu0 %2222
  %v2224 = vsel %vm56, %v2165, 0.0
  %2225 = vadd.xlane.f32.xlu0 %v2224
  %v2226 = vpop.xlane.xlu0 %2225
  %v2227 = vsel %vm56, %v2167, 0.0
  %2228 = vadd.xlane.f32.xlu0 %v2227
  %v2229 = vpop.xlane.xlu0 %2228
  %v2230 = vsel %vm56, %v2169, 0.0
  %2231 = vadd.xlane.f32.xlu0 %v2230
  %v2232 = vpop.xlane.xlu0 %2231
  %v2233 = vsel %vm56, %v2171, 0.0
  %2234 = vadd.xlane.f32.xlu0 %v2233
  %v2235 = vpop.xlane.xlu0 %2234
  %v2236 = vlaneseq
  %v2237 = vshrl.u32 %v2236, 7
  %v2238 = vsub.s32 3, %v2237
  %v2239 = vrot.slane %v370, %v2238
  %v2240 = vadd.f32 %v2190, %v2239
  %v2241 = vadd.f32 %v2193, %v2239
  %v2242 = vadd.f32 %v2196, %v2239
  %v2243 = vadd.f32 %v2199, %v2239
  %v2244 = vadd.f32 %v2202, %v2239
  %v2245 = vadd.f32 %v2205, %v2239
  %v2246 = vadd.f32 %v2208, %v2239
  %v2247 = vadd.f32 %v2211, %v2239
  %v2248 = vadd.f32 %v2214, %v2239
  %v2249 = vadd.f32 %v2217, %v2239
  %v2250 = vadd.f32 %v2220, %v2239
  %v2251 = vadd.f32 %v2223, %v2239
  %v2252 = vadd.f32 %v2226, %v2239
  %v2253 = vadd.f32 %v2229, %v2239
  %v2254 = vadd.f32 %v2232, %v2239
  %v2255 = vadd.f32 %v2235, %v2239
  %vm2256 = vcmp.gt.f32.partialorder %v2240, 0.0
  %vm2257 = vcmp.gt.f32.partialorder %v2241, 0.0
  %vm2258 = vcmp.gt.f32.partialorder %v2242, 0.0
  %vm2259 = vcmp.gt.f32.partialorder %v2243, 0.0
  %vm2260 = vcmp.gt.f32.partialorder %v2244, 0.0
  %vm2261 = vcmp.gt.f32.partialorder %v2245, 0.0
  %vm2262 = vcmp.gt.f32.partialorder %v2246, 0.0
  %vm2263 = vcmp.gt.f32.partialorder %v2247, 0.0
  %vm2264 = vcmp.gt.f32.partialorder %v2248, 0.0
  %vm2265 = vcmp.gt.f32.partialorder %v2249, 0.0
  %vm2266 = vcmp.gt.f32.partialorder %v2250, 0.0
  %vm2267 = vcmp.gt.f32.partialorder %v2251, 0.0
  %vm2268 = vcmp.gt.f32.partialorder %v2252, 0.0
  %vm2269 = vcmp.gt.f32.partialorder %v2253, 0.0
  %vm2270 = vcmp.gt.f32.partialorder %v2254, 0.0
  %vm2271 = vcmp.gt.f32.partialorder %v2255, 0.0
  %v2272 = vmul.f32 %v2240, 0.2
  %v2273 = vmul.f32 %v2241, 0.2
  %v2274 = vmul.f32 %v2242, 0.2
  %v2275 = vmul.f32 %v2243, 0.2
  %v2276 = vmul.f32 %v2244, 0.2
  %v2277 = vmul.f32 %v2245, 0.2
  %v2278 = vmul.f32 %v2246, 0.2
  %v2279 = vmul.f32 %v2247, 0.2
  %v2280 = vmul.f32 %v2248, 0.2
  %v2281 = vmul.f32 %v2249, 0.2
  %v2282 = vmul.f32 %v2250, 0.2
  %v2283 = vmul.f32 %v2251, 0.2
  %v2284 = vmul.f32 %v2252, 0.2
  %v2285 = vmul.f32 %v2253, 0.2
  %v2286 = vmul.f32 %v2254, 0.2
  %v2287 = vmul.f32 %v2255, 0.2
  %v2288 = vsel %vm2256, %v2240, %v2272
  %v2289 = vsel %vm2257, %v2241, %v2273
  %v2290 = vsel %vm2258, %v2242, %v2274
  %v2291 = vsel %vm2259, %v2243, %v2275
  %v2292 = vsel %vm2260, %v2244, %v2276
  %v2293 = vsel %vm2261, %v2245, %v2277
  %v2294 = vsel %vm2262, %v2246, %v2278
  %v2295 = vsel %vm2263, %v2247, %v2279
  %v2296 = vsel %vm2264, %v2248, %v2280
  %v2297 = vsel %vm2265, %v2249, %v2281
  %v2298 = vsel %vm2266, %v2250, %v2282
  %v2299 = vsel %vm2267, %v2251, %v2283
  %v2300 = vsel %vm2268, %v2252, %v2284
  %v2301 = vsel %vm2269, %v2253, %v2285
  %v2302 = vsel %vm2270, %v2254, %v2286
  %v2303 = vsel %vm2271, %v2255, %v2287
  %v2304 = vsel %vm509, %v2288, -1e+30
  %v2305 = vsel %vm510, %v2289, -1e+30
  %v2306 = vsel %vm511, %v2290, -1e+30
  %v2307 = vsel %vm512, %v2291, -1e+30
  %v2308 = vsel %vm513, %v2292, -1e+30
  %v2309 = vsel %vm514, %v2293, -1e+30
  %v2310 = vsel %vm515, %v2294, -1e+30
  %v2311 = vsel %vm516, %v2295, -1e+30
  %v2312 = vsel %vm517, %v2296, -1e+30
  %v2313 = vsel %vm518, %v2297, -1e+30
  %v2314 = vsel %vm519, %v2298, -1e+30
  %v2315 = vsel %vm520, %v2299, -1e+30
  %v2316 = vsel %vm521, %v2300, -1e+30
  %v2317 = vsel %vm522, %v2301, -1e+30
  %v2318 = vsel %vm523, %v2302, -1e+30
  %v2319 = vsel %vm524, %v2303, -1e+30
  %2320 = vmax.xlane.f32.xlu0 %v2304
  %v2321 = vpop.xlane.xlu0 %2320
  %2322 = vmax.xlane.f32.xlu0 %v2305
  %v2323 = vpop.xlane.xlu0 %2322
  %2324 = vmax.xlane.f32.xlu0 %v2306
  %v2325 = vpop.xlane.xlu0 %2324
  %2326 = vmax.xlane.f32.xlu0 %v2307
  %v2327 = vpop.xlane.xlu0 %2326
  %2328 = vmax.xlane.f32.xlu0 %v2308
  %v2329 = vpop.xlane.xlu0 %2328
  %2330 = vmax.xlane.f32.xlu0 %v2309
  %v2331 = vpop.xlane.xlu0 %2330
  %2332 = vmax.xlane.f32.xlu0 %v2310
  %v2333 = vpop.xlane.xlu0 %2332
  %2334 = vmax.xlane.f32.xlu0 %v2311
  %v2335 = vpop.xlane.xlu0 %2334
  %2336 = vmax.xlane.f32.xlu0 %v2312
  %v2337 = vpop.xlane.xlu0 %2336
  %2338 = vmax.xlane.f32.xlu0 %v2313
  %v2339 = vpop.xlane.xlu0 %2338
  %2340 = vmax.xlane.f32.xlu0 %v2314
  %v2341 = vpop.xlane.xlu0 %2340
  %2342 = vmax.xlane.f32.xlu0 %v2315
  %v2343 = vpop.xlane.xlu0 %2342
  %2344 = vmax.xlane.f32.xlu0 %v2316
  %v2345 = vpop.xlane.xlu0 %2344
  %2346 = vmax.xlane.f32.xlu0 %v2317
  %v2347 = vpop.xlane.xlu0 %2346
  %2348 = vmax.xlane.f32.xlu0 %v2318
  %v2349 = vpop.xlane.xlu0 %2348
  %2350 = vmax.xlane.f32.xlu0 %v2319
  %v2351 = vpop.xlane.xlu0 %2350
  %v2352 = vsub.f32 %v2304, %v2321
  %v2353 = vsub.f32 %v2305, %v2323
  %v2354 = vsub.f32 %v2306, %v2325
  %v2355 = vsub.f32 %v2307, %v2327
  %v2356 = vsub.f32 %v2308, %v2329
  %v2357 = vsub.f32 %v2309, %v2331
  %v2358 = vsub.f32 %v2310, %v2333
  %v2359 = vsub.f32 %v2311, %v2335
  %v2360 = vsub.f32 %v2312, %v2337
  %v2361 = vsub.f32 %v2313, %v2339
  %v2362 = vsub.f32 %v2314, %v2341
  %v2363 = vsub.f32 %v2315, %v2343
  %v2364 = vsub.f32 %v2316, %v2345
  %v2365 = vsub.f32 %v2317, %v2347
  %v2366 = vsub.f32 %v2318, %v2349
  %v2367 = vsub.f32 %v2319, %v2351
  %v2368 = vmul.f32 %v2352, 1.442695
  %v2369 = vpow.pop %v2368
  %v2370 = vmul.f32 %v2353, 1.442695
  %v2371 = vpow.pop %v2370
  %v2372 = vmul.f32 %v2354, 1.442695
  %v2373 = vpow.pop %v2372
  %v2374 = vmul.f32 %v2355, 1.442695
  %v2375 = vpow.pop %v2374
  %v2376 = vmul.f32 %v2356, 1.442695
  %v2377 = vpow.pop %v2376
  %v2378 = vmul.f32 %v2357, 1.442695
  %v2379 = vpow.pop %v2378
  %v2380 = vmul.f32 %v2358, 1.442695
  %v2381 = vpow.pop %v2380
  %v2382 = vmul.f32 %v2359, 1.442695
  %v2383 = vpow.pop %v2382
  %v2384 = vmul.f32 %v2360, 1.442695
  %v2385 = vpow.pop %v2384
  %v2386 = vmul.f32 %v2361, 1.442695
  %v2387 = vpow.pop %v2386
  %v2388 = vmul.f32 %v2362, 1.442695
  %v2389 = vpow.pop %v2388
  %v2390 = vmul.f32 %v2363, 1.442695
  %v2391 = vpow.pop %v2390
  %v2392 = vmul.f32 %v2364, 1.442695
  %v2393 = vpow.pop %v2392
  %v2394 = vmul.f32 %v2365, 1.442695
  %v2395 = vpow.pop %v2394
  %v2396 = vmul.f32 %v2366, 1.442695
  %v2397 = vpow.pop %v2396
  %v2398 = vmul.f32 %v2367, 1.442695
  %v2399 = vpow.pop %v2398
  %v2400 = vmul.f32 %v2369, %v36
  %v2401 = vmul.f32 %v2371, %v37
  %v2402 = vmul.f32 %v2373, %v38
  %v2403 = vmul.f32 %v2375, %v39
  %v2404 = vmul.f32 %v2377, %v40
  %v2405 = vmul.f32 %v2379, %v41
  %v2406 = vmul.f32 %v2381, %v42
  %v2407 = vmul.f32 %v2383, %v43
  %v2408 = vmul.f32 %v2385, %v44
  %v2409 = vmul.f32 %v2387, %v45
  %v2410 = vmul.f32 %v2389, %v46
  %v2411 = vmul.f32 %v2391, %v47
  %v2412 = vmul.f32 %v2393, %v48
  %v2413 = vmul.f32 %v2395, %v49
  %v2414 = vmul.f32 %v2397, %v50
  %v2415 = vmul.f32 %v2399, %v51
  %2416 = vadd.xlane.f32.xlu0 %v2400
  %v2417 = vpop.xlane.xlu0 %2416
  %2418 = vadd.xlane.f32.xlu0 %v2401
  %v2419 = vpop.xlane.xlu0 %2418
  %2420 = vadd.xlane.f32.xlu0 %v2402
  %v2421 = vpop.xlane.xlu0 %2420
  %2422 = vadd.xlane.f32.xlu0 %v2403
  %v2423 = vpop.xlane.xlu0 %2422
  %2424 = vadd.xlane.f32.xlu0 %v2404
  %v2425 = vpop.xlane.xlu0 %2424
  %2426 = vadd.xlane.f32.xlu0 %v2405
  %v2427 = vpop.xlane.xlu0 %2426
  %2428 = vadd.xlane.f32.xlu0 %v2406
  %v2429 = vpop.xlane.xlu0 %2428
  %2430 = vadd.xlane.f32.xlu0 %v2407
  %v2431 = vpop.xlane.xlu0 %2430
  %2432 = vadd.xlane.f32.xlu0 %v2408
  %v2433 = vpop.xlane.xlu0 %2432
  %2434 = vadd.xlane.f32.xlu0 %v2409
  %v2435 = vpop.xlane.xlu0 %2434
  %2436 = vadd.xlane.f32.xlu0 %v2410
  %v2437 = vpop.xlane.xlu0 %2436
  %2438 = vadd.xlane.f32.xlu0 %v2411
  %v2439 = vpop.xlane.xlu0 %2438
  %2440 = vadd.xlane.f32.xlu0 %v2412
  %v2441 = vpop.xlane.xlu0 %2440
  %2442 = vadd.xlane.f32.xlu0 %v2413
  %v2443 = vpop.xlane.xlu0 %2442
  %2444 = vadd.xlane.f32.xlu0 %v2414
  %v2445 = vpop.xlane.xlu0 %2444
  %2446 = vadd.xlane.f32.xlu0 %v2415
  %v2447 = vpop.xlane.xlu0 %2446
  %v2448 = vmax.f32 %v2417, 1e-20
  %v2449 = vmax.f32 %v2419, 1e-20
  %v2450 = vmax.f32 %v2421, 1e-20
  %v2451 = vmax.f32 %v2423, 1e-20
  %v2452 = vmax.f32 %v2425, 1e-20
  %v2453 = vmax.f32 %v2427, 1e-20
  %v2454 = vmax.f32 %v2429, 1e-20
  %v2455 = vmax.f32 %v2431, 1e-20
  %v2456 = vmax.f32 %v2433, 1e-20
  %v2457 = vmax.f32 %v2435, 1e-20
  %v2458 = vmax.f32 %v2437, 1e-20
  %v2459 = vmax.f32 %v2439, 1e-20
  %v2460 = vmax.f32 %v2441, 1e-20
  %v2461 = vmax.f32 %v2443, 1e-20
  %v2462 = vmax.f32 %v2445, 1e-20
  %v2463 = vmax.f32 %v2447, 1e-20
  %v2464 = vrcp.pop %v2448
  %v2465 = vrcp.pop %v2449
  %v2466 = vrcp.pop %v2450
  %v2467 = vrcp.pop %v2451
  %v2468 = vrcp.pop %v2452
  %v2469 = vrcp.pop %v2453
  %v2470 = vrcp.pop %v2454
  %v2471 = vrcp.pop %v2455
  %v2472 = vrcp.pop %v2456
  %v2473 = vrcp.pop %v2457
  %v2474 = vrcp.pop %v2458
  %v2475 = vrcp.pop %v2459
  %v2476 = vrcp.pop %v2460
  %v2477 = vrcp.pop %v2461
  %v2478 = vrcp.pop %v2462
  %v2479 = vrcp.pop %v2463
  %v2480 = vmul.f32 %v2400, %v2464
  %v2481 = vmul.f32 %v2401, %v2465
  %v2482 = vmul.f32 %v2402, %v2466
  %v2483 = vmul.f32 %v2403, %v2467
  %v2484 = vmul.f32 %v2404, %v2468
  %v2485 = vmul.f32 %v2405, %v2469
  %v2486 = vmul.f32 %v2406, %v2470
  %v2487 = vmul.f32 %v2407, %v2471
  %v2488 = vmul.f32 %v2408, %v2472
  %v2489 = vmul.f32 %v2409, %v2473
  %v2490 = vmul.f32 %v2410, %v2474
  %v2491 = vmul.f32 %v2411, %v2475
  %v2492 = vmul.f32 %v2412, %v2476
  %v2493 = vmul.f32 %v2413, %v2477
  %v2494 = vmul.f32 %v2414, %v2478
  %v2495 = vmul.f32 %v2415, %v2479
  %v2496 = vlaneseq
  %v2497 = vshrl.u32 %v2496, 7
  %v2498 = vsub.s32 7, %v2497
  %v2499 = vrot.slane %v52, %v2498
  %2500 = vrot.lane.b32.xlu0 %v172, 80
  %v2501 = vpop.permute.xlu0 %2500
  %2502 = vrot.lane.b32.xlu0 %v177, 80
  %v2503 = vpop.permute.xlu0 %2502
  %2504 = vrot.lane.b32.xlu0 %v182, 80
  %v2505 = vpop.permute.xlu0 %2504
  %2506 = vrot.lane.b32.xlu0 %v187, 80
  %v2507 = vpop.permute.xlu0 %2506
  %2508 = vrot.lane.b32.xlu0 %v192, 80
  %v2509 = vpop.permute.xlu0 %2508
  %2510 = vrot.lane.b32.xlu0 %v197, 80
  %v2511 = vpop.permute.xlu0 %2510
  %2512 = vrot.lane.b32.xlu0 %v202, 80
  %v2513 = vpop.permute.xlu0 %2512
  %2514 = vrot.lane.b32.xlu0 %v207, 80
  %v2515 = vpop.permute.xlu0 %2514
  %2516 = vrot.lane.b32.xlu0 %v212, 80
  %v2517 = vpop.permute.xlu0 %2516
  %2518 = vrot.lane.b32.xlu0 %v217, 80
  %v2519 = vpop.permute.xlu0 %2518
  %2520 = vrot.lane.b32.xlu0 %v222, 80
  %v2521 = vpop.permute.xlu0 %2520
  %2522 = vrot.lane.b32.xlu0 %v227, 80
  %v2523 = vpop.permute.xlu0 %2522
  %2524 = vrot.lane.b32.xlu0 %v232, 80
  %v2525 = vpop.permute.xlu0 %2524
  %2526 = vrot.lane.b32.xlu0 %v237, 80
  %v2527 = vpop.permute.xlu0 %2526
  %2528 = vrot.lane.b32.xlu0 %v242, 80
  %v2529 = vpop.permute.xlu0 %2528
  %2530 = vrot.lane.b32.xlu0 %v247, 80
  %v2531 = vpop.permute.xlu0 %2530
  %2548 = vmatprep.subr.mxu0 0.0
  %2549 = vmatpush1.msra.mxu0 %v2501
  %2550 = vmatprep.subr.mxu0 0.0
  %2551 = vmatpush1.msra.mxu0 %v2503
  %2552 = vmatprep.subr.mxu0 0.0
  %2553 = vmatpush1.msra.mxu0 %v2505
  %2554 = vmatprep.subr.mxu0 0.0
  %2555 = vmatpush1.msra.mxu0 %v2507
  %2556 = vmatprep.subr.mxu0 0.0
  %2557 = vmatpush1.msra.mxu0 %v2509
  %2558 = vmatprep.subr.mxu0 0.0
  %2559 = vmatpush1.msra.mxu0 %v2511
  %2560 = vmatprep.subr.mxu0 0.0
  %2561 = vmatpush1.msra.mxu0 %v2513
  %2562 = vmatprep.subr.mxu0 0.0
  %2563 = vmatpush1.msra.mxu0 %v2515
  %2564 = vmatprep.subr.mxu0 0.0
  %2565 = vmatpush1.msra.mxu0 %v2517
  %2566 = vmatprep.subr.mxu0 0.0
  %2567 = vmatpush1.msra.mxu0 %v2519
  %2568 = vmatprep.subr.mxu0 0.0
  %2569 = vmatpush1.msra.mxu0 %v2521
  %2570 = vmatprep.subr.mxu0 0.0
  %2571 = vmatpush1.msra.mxu0 %v2523
  %2572 = vmatprep.subr.mxu0 0.0
  %2573 = vmatpush1.msra.mxu0 %v2525
  %2574 = vmatprep.subr.mxu0 0.0
  %2575 = vmatpush1.msra.mxu0 %v2527
  %2576 = vmatprep.subr.mxu0 0.0
  %2577 = vmatpush1.msra.mxu0 %v2529
  %2578 = vmatprep.subr.mxu0 0.0
  %2579 = vmatpush1.msra.mxu0 %v2531
  %2580 = vmatprep.subr.mxu0 0.0
  %2581 = vmatpush1.msra.mxu0 0.0
  %2582 = vmatprep.subr.mxu0 0.0
  %2583 = vmatpush1.msra.mxu0 0.0
  %2584 = vmatprep.subr.mxu0 0.0
  %2585 = vmatpush1.msra.mxu0 0.0
  %2586 = vmatprep.subr.mxu0 0.0
  %2587 = vmatpush1.msra.mxu0 0.0
  %2588 = vmatprep.subr.mxu0 0.0
  %2589 = vmatpush1.msra.mxu0 0.0
  %2590 = vmatprep.subr.mxu0 0.0
  %2591 = vmatpush1.msra.mxu0 0.0
  %2592 = vmatprep.subr.mxu0 0.0
  %2593 = vmatpush1.msra.mxu0 0.0
  %2594 = vmatprep.subr.mxu0 0.0
  %2595 = vmatpush1.msra.mxu0 0.0
  %2596 = vmatprep.subr.mxu0 0.0
  %2597 = vmatpush1.msra.mxu0 0.0
  %2598 = vmatprep.subr.mxu0 0.0
  %2599 = vmatpush1.msra.mxu0 0.0
  %2600 = vmatprep.subr.mxu0 0.0
  %2601 = vmatpush1.msra.mxu0 0.0
  %2602 = vmatprep.subr.mxu0 0.0
  %2603 = vmatpush1.msra.mxu0 0.0
  %2604 = vmatprep.subr.mxu0 0.0
  %2605 = vmatpush1.msra.mxu0 0.0
  %2606 = vmatprep.subr.mxu0 0.0
  %2607 = vmatpush1.msra.mxu0 0.0
  %2608 = vmatprep.subr.mxu0 0.0
  %2609 = vmatpush1.msra.mxu0 0.0
  %2610 = vmatprep.subr.mxu0 0.0
  %2611 = vmatpush1.msra.mxu0 0.0
  %2612 = vmatprep.mubr.f32.mxu0 0.0
  %2613 = vmatmul.mubr.f32.gmra.mrb[0].mxu0 %v2480
  %v2614 = vpop.f32.mrb[0].mxu0
  %v2615 = vadd.f32 %v2499, %v2614
  %v2616 = vpop.f32.mrb[0].mxu0
  %2617 = vmatprep.mubr.f32.mxu0 0.0
  %2618 = vmatmul.mubr.f32.gmra.mrb[0].mxu0 %v2481
  %v2619 = vpop.f32.mrb[0].mxu0
  %v2620 = vadd.f32 %v2499, %v2619
  %v2621 = vpop.f32.mrb[0].mxu0
  %2622 = vmatprep.mubr.f32.mxu0 0.0
  %2623 = vmatmul.mubr.f32.gmra.mrb[0].mxu0 %v2482
  %v2624 = vpop.f32.mrb[0].mxu0
  %v2625 = vadd.f32 %v2499, %v2624
  %v2626 = vpop.f32.mrb[0].mxu0
  %2627 = vmatprep.mubr.f32.mxu0 0.0
  %2628 = vmatmul.mubr.f32.gmra.mrb[0].mxu0 %v2483
  %v2629 = vpop.f32.mrb[0].mxu0
  %v2630 = vadd.f32 %v2499, %v2629
  %v2631 = vpop.f32.mrb[0].mxu0
  %2632 = vmatprep.mubr.f32.mxu0 0.0
  %2633 = vmatmul.mubr.f32.gmra.mrb[0].mxu0 %v2484
  %v2634 = vpop.f32.mrb[0].mxu0
  %v2635 = vadd.f32 %v2499, %v2634
  %v2636 = vpop.f32.mrb[0].mxu0
  %2637 = vmatprep.mubr.f32.mxu0 0.0
  %2638 = vmatmul.mubr.f32.gmra.mrb[0].mxu0 %v2485
  %v2639 = vpop.f32.mrb[0].mxu0
  %v2640 = vadd.f32 %v2499, %v2639
  %v2641 = vpop.f32.mrb[0].mxu0
  %2642 = vmatprep.mubr.f32.mxu0 0.0
  %2643 = vmatmul.mubr.f32.gmra.mrb[0].mxu0 %v2486
  %v2644 = vpop.f32.mrb[0].mxu0
  %v2645 = vadd.f32 %v2499, %v2644
  %v2646 = vpop.f32.mrb[0].mxu0
  %2647 = vmatprep.mubr.f32.mxu0 0.0
  %2648 = vmatmul.mubr.f32.gmra.mrb[0].mxu0 %v2487
  %v2649 = vpop.f32.mrb[0].mxu0
  %v2650 = vadd.f32 %v2499, %v2649
  %v2651 = vpop.f32.mrb[0].mxu0
  %2652 = vmatprep.mubr.f32.mxu0 0.0
  %2653 = vmatmul.mubr.f32.gmra.mrb[0].mxu0 %v2488
  %v2654 = vpop.f32.mrb[0].mxu0
  %v2655 = vadd.f32 %v2499, %v2654
  %v2656 = vpop.f32.mrb[0].mxu0
  %2657 = vmatprep.mubr.f32.mxu0 0.0
  %2658 = vmatmul.mubr.f32.gmra.mrb[0].mxu0 %v2489
  %v2659 = vpop.f32.mrb[0].mxu0
  %v2660 = vadd.f32 %v2499, %v2659
  %v2661 = vpop.f32.mrb[0].mxu0
  %2662 = vmatprep.mubr.f32.mxu0 0.0
  %2663 = vmatmul.mubr.f32.gmra.mrb[0].mxu0 %v2490
  %v2664 = vpop.f32.mrb[0].mxu0
  %v2665 = vadd.f32 %v2499, %v2664
  %v2666 = vpop.f32.mrb[0].mxu0
  %2667 = vmatprep.mubr.f32.mxu0 0.0
  %2668 = vmatmul.mubr.f32.gmra.mrb[0].mxu0 %v2491
  %v2669 = vpop.f32.mrb[0].mxu0
  %v2670 = vadd.f32 %v2499, %v2669
  %v2671 = vpop.f32.mrb[0].mxu0
  %2672 = vmatprep.mubr.f32.mxu0 0.0
  %2673 = vmatmul.mubr.f32.gmra.mrb[0].mxu0 %v2492
  %v2674 = vpop.f32.mrb[0].mxu0
  %v2675 = vadd.f32 %v2499, %v2674
  %v2676 = vpop.f32.mrb[0].mxu0
  %2677 = vmatprep.mubr.f32.mxu0 0.0
  %2678 = vmatmul.mubr.f32.gmra.mrb[0].mxu0 %v2493
  %v2679 = vpop.f32.mrb[0].mxu0
  %v2680 = vadd.f32 %v2499, %v2679
  %v2681 = vpop.f32.mrb[0].mxu0
  %2682 = vmatprep.mubr.f32.mxu0 0.0
  %2683 = vmatmul.mubr.f32.gmra.mrb[0].mxu0 %v2494
  %v2684 = vpop.f32.mrb[0].mxu0
  %v2685 = vadd.f32 %v2499, %v2684
  %v2686 = vpop.f32.mrb[0].mxu0
  %2687 = vmatprep.mubr.f32.mxu0 0.0
  %2688 = vmatmul.mubr.f32.gmra.mrb[0].mxu0 %v2495
  %v2689 = vpop.f32.mrb[0].mxu0
  %v2690 = vadd.f32 %v2499, %v2689
  %v2691 = vpop.f32.mrb[0].mxu0
  %2692 = vdwg.mxu0
  %v2693 = vmax.f32 %v2615, 0.0
  %v2694 = vmax.f32 %v2620, 0.0
  %v2695 = vmax.f32 %v2625, 0.0
  %v2696 = vmax.f32 %v2630, 0.0
  %v2697 = vmax.f32 %v2635, 0.0
  %v2698 = vmax.f32 %v2640, 0.0
  %v2699 = vmax.f32 %v2645, 0.0
  %v2700 = vmax.f32 %v2650, 0.0
  %v2701 = vmax.f32 %v2655, 0.0
  %v2702 = vmax.f32 %v2660, 0.0
  %v2703 = vmax.f32 %v2665, 0.0
  %v2704 = vmax.f32 %v2670, 0.0
  %v2705 = vmax.f32 %v2675, 0.0
  %v2706 = vmax.f32 %v2680, 0.0
  %v2707 = vmax.f32 %v2685, 0.0
  %v2708 = vmax.f32 %v2690, 0.0
  %2725 = vrot.lane.b32.xlu0 %v1475, 16
  %v2726 = vpop.permute.xlu0 %2725
  %2727 = vrot.lane.b32.xlu0 %v1476, 16
  %v2728 = vpop.permute.xlu0 %2727
  %2729 = vrot.lane.b32.xlu0 %v1477, 16
  %v2730 = vpop.permute.xlu0 %2729
  %2731 = vrot.lane.b32.xlu0 %v1478, 16
  %v2732 = vpop.permute.xlu0 %2731
  %2733 = vrot.lane.b32.xlu0 %v1479, 16
  %v2734 = vpop.permute.xlu0 %2733
  %2735 = vrot.lane.b32.xlu0 %v1480, 16
  %v2736 = vpop.permute.xlu0 %2735
  %2737 = vrot.lane.b32.xlu0 %v1481, 16
  %v2738 = vpop.permute.xlu0 %2737
  %2739 = vrot.lane.b32.xlu0 %v1482, 16
  %v2740 = vpop.permute.xlu0 %2739
  %2741 = vrot.lane.b32.xlu0 %v1483, 16
  %v2742 = vpop.permute.xlu0 %2741
  %2743 = vrot.lane.b32.xlu0 %v1484, 16
  %v2744 = vpop.permute.xlu0 %2743
  %2745 = vrot.lane.b32.xlu0 %v1485, 16
  %v2746 = vpop.permute.xlu0 %2745
  %2747 = vrot.lane.b32.xlu0 %v1486, 16
  %v2748 = vpop.permute.xlu0 %2747
  %2749 = vrot.lane.b32.xlu0 %v1487, 16
  %v2750 = vpop.permute.xlu0 %2749
  %2751 = vrot.lane.b32.xlu0 %v1488, 16
  %v2752 = vpop.permute.xlu0 %2751
  %2753 = vrot.lane.b32.xlu0 %v1489, 16
  %v2754 = vpop.permute.xlu0 %2753
  %2755 = vrot.lane.b32.xlu0 %v1490, 16
  %v2756 = vpop.permute.xlu0 %2755
  %2789 = vrot.lane.b32.xlu0 %v2084, 32
  %v2790 = vpop.permute.xlu0 %2789
  %2791 = vrot.lane.b32.xlu0 %v2085, 32
  %v2792 = vpop.permute.xlu0 %2791
  %2793 = vrot.lane.b32.xlu0 %v2086, 32
  %v2794 = vpop.permute.xlu0 %2793
  %2795 = vrot.lane.b32.xlu0 %v2087, 32
  %v2796 = vpop.permute.xlu0 %2795
  %2797 = vrot.lane.b32.xlu0 %v2088, 32
  %v2798 = vpop.permute.xlu0 %2797
  %2799 = vrot.lane.b32.xlu0 %v2089, 32
  %v2800 = vpop.permute.xlu0 %2799
  %2801 = vrot.lane.b32.xlu0 %v2090, 32
  %v2802 = vpop.permute.xlu0 %2801
  %2803 = vrot.lane.b32.xlu0 %v2091, 32
  %v2804 = vpop.permute.xlu0 %2803
  %2805 = vrot.lane.b32.xlu0 %v2092, 32
  %v2806 = vpop.permute.xlu0 %2805
  %2807 = vrot.lane.b32.xlu0 %v2093, 32
  %v2808 = vpop.permute.xlu0 %2807
  %2809 = vrot.lane.b32.xlu0 %v2094, 32
  %v2810 = vpop.permute.xlu0 %2809
  %2811 = vrot.lane.b32.xlu0 %v2095, 32
  %v2812 = vpop.permute.xlu0 %2811
  %2813 = vrot.lane.b32.xlu0 %v2096, 32
  %v2814 = vpop.permute.xlu0 %2813
  %2815 = vrot.lane.b32.xlu0 %v2097, 32
  %v2816 = vpop.permute.xlu0 %2815
  %2817 = vrot.lane.b32.xlu0 %v2098, 32
  %v2818 = vpop.permute.xlu0 %2817
  %2819 = vrot.lane.b32.xlu0 %v2099, 32
  %v2820 = vpop.permute.xlu0 %2819
  %2853 = vrot.lane.b32.xlu0 %v2693, 48
  %v2854 = vpop.permute.xlu0 %2853
  %2855 = vrot.lane.b32.xlu0 %v2694, 48
  %v2856 = vpop.permute.xlu0 %2855
  %2857 = vrot.lane.b32.xlu0 %v2695, 48
  %v2858 = vpop.permute.xlu0 %2857
  %2859 = vrot.lane.b32.xlu0 %v2696, 48
  %v2860 = vpop.permute.xlu0 %2859
  %2861 = vrot.lane.b32.xlu0 %v2697, 48
  %v2862 = vpop.permute.xlu0 %2861
  %2863 = vrot.lane.b32.xlu0 %v2698, 48
  %v2864 = vpop.permute.xlu0 %2863
  %2865 = vrot.lane.b32.xlu0 %v2699, 48
  %v2866 = vpop.permute.xlu0 %2865
  %2867 = vrot.lane.b32.xlu0 %v2700, 48
  %v2868 = vpop.permute.xlu0 %2867
  %2869 = vrot.lane.b32.xlu0 %v2701, 48
  %v2870 = vpop.permute.xlu0 %2869
  %2871 = vrot.lane.b32.xlu0 %v2702, 48
  %v2872 = vpop.permute.xlu0 %2871
  %2873 = vrot.lane.b32.xlu0 %v2703, 48
  %v2874 = vpop.permute.xlu0 %2873
  %2875 = vrot.lane.b32.xlu0 %v2704, 48
  %v2876 = vpop.permute.xlu0 %2875
  %2877 = vrot.lane.b32.xlu0 %v2705, 48
  %v2878 = vpop.permute.xlu0 %2877
  %2879 = vrot.lane.b32.xlu0 %v2706, 48
  %v2880 = vpop.permute.xlu0 %2879
  %2881 = vrot.lane.b32.xlu0 %v2707, 48
  %v2882 = vpop.permute.xlu0 %2881
  %2883 = vrot.lane.b32.xlu0 %v2708, 48
  %v2884 = vpop.permute.xlu0 %2883
  %v2901 = vsel %vm56, %v866, %v2726
  %v2902 = vsel %vm56, %v867, %v2728
  %v2903 = vsel %vm56, %v868, %v2730
  %v2904 = vsel %vm56, %v869, %v2732
  %v2905 = vsel %vm56, %v870, %v2734
  %v2906 = vsel %vm56, %v871, %v2736
  %v2907 = vsel %vm56, %v872, %v2738
  %v2908 = vsel %vm56, %v873, %v2740
  %v2909 = vsel %vm56, %v874, %v2742
  %v2910 = vsel %vm56, %v875, %v2744
  %v2911 = vsel %vm56, %v876, %v2746
  %v2912 = vsel %vm56, %v877, %v2748
  %v2913 = vsel %vm56, %v878, %v2750
  %v2914 = vsel %vm56, %v879, %v2752
  %v2915 = vsel %vm56, %v880, %v2754
  %v2916 = vsel %vm56, %v881, %v2756
  %vm2917 = vcmask 261120
  %v2918 = vsel %vm2917, %v2901, %v2790
  %v2919 = vsel %vm2917, %v2902, %v2792
  %v2920 = vsel %vm2917, %v2903, %v2794
  %v2921 = vsel %vm2917, %v2904, %v2796
  %v2922 = vsel %vm2917, %v2905, %v2798
  %v2923 = vsel %vm2917, %v2906, %v2800
  %v2924 = vsel %vm2917, %v2907, %v2802
  %v2925 = vsel %vm2917, %v2908, %v2804
  %v2926 = vsel %vm2917, %v2909, %v2806
  %v2927 = vsel %vm2917, %v2910, %v2808
  %v2928 = vsel %vm2917, %v2911, %v2810
  %v2929 = vsel %vm2917, %v2912, %v2812
  %v2930 = vsel %vm2917, %v2913, %v2814
  %v2931 = vsel %vm2917, %v2914, %v2816
  %v2932 = vsel %vm2917, %v2915, %v2818
  %v2933 = vsel %vm2917, %v2916, %v2820
  %vm2934 = vcmask 392192
  %v2935 = vsel %vm2934, %v2918, %v2854
  %v2936 = vsel %vm2934, %v2919, %v2856
  %v2937 = vsel %vm2934, %v2920, %v2858
  %v2938 = vsel %vm2934, %v2921, %v2860
  %v2939 = vsel %vm2934, %v2922, %v2862
  %v2940 = vsel %vm2934, %v2923, %v2864
  %v2941 = vsel %vm2934, %v2924, %v2866
  %v2942 = vsel %vm2934, %v2925, %v2868
  %v2943 = vsel %vm2934, %v2926, %v2870
  %v2944 = vsel %vm2934, %v2927, %v2872
  %v2945 = vsel %vm2934, %v2928, %v2874
  %v2946 = vsel %vm2934, %v2929, %v2876
  %v2947 = vsel %vm2934, %v2930, %v2878
  %v2948 = vsel %vm2934, %v2931, %v2880
  %v2949 = vsel %vm2934, %v2932, %v2882
  %v2950 = vsel %vm2934, %v2933, %v2884
  %v2951 = vld [vmem:[%s3] sm:$0xff]
  %v2952 = vld [vmem:[%s3 + $0x8] sm:$0xff]
  %v2953 = vld [vmem:[%s3 + $0x10] sm:$0xff]
  %v2954 = vld [vmem:[%s3 + $0x18] sm:$0xff]
  %v2955 = vld [vmem:[%s3 + $0x20] sm:$0xff]
  %v2956 = vld [vmem:[%s3 + $0x28] sm:$0xff]
  %v2957 = vld [vmem:[%s3 + $0x30] sm:$0xff]
  %v2958 = vld [vmem:[%s3 + $0x38] sm:$0xff]
  %v2960 = vsel %vm251, %v2935, 0
  %v2963 = vsel %vm251, %v2936, 0
  %v2966 = vsel %vm251, %v2937, 0
  %v2969 = vsel %vm251, %v2938, 0
  %v2972 = vsel %vm251, %v2939, 0
  %v2975 = vsel %vm251, %v2940, 0
  %v2978 = vsel %vm251, %v2941, 0
  %v2981 = vsel %vm251, %v2942, 0
  %v2984 = vsel %vm251, %v2943, 0
  %v2987 = vsel %vm251, %v2944, 0
  %v2990 = vsel %vm251, %v2945, 0
  %v2993 = vsel %vm251, %v2946, 0
  %v2996 = vsel %vm251, %v2947, 0
  %v2999 = vsel %vm251, %v2948, 0
  %v3002 = vsel %vm251, %v2949, 0
  %v3005 = vsel %vm251, %v2950, 0
  %3007 = vmatprep.subr.mxu0 0.0
  %3008 = vmatpush1.msra.mxu0 %v2951
  %3009 = vmatprep.subr.mxu0 0.0
  %3010 = vmatpush1.msra.mxu0 %v2952
  %3011 = vmatprep.subr.mxu0 0.0
  %3012 = vmatpush1.msra.mxu0 %v2953
  %3013 = vmatprep.subr.mxu0 0.0
  %3014 = vmatpush1.msra.mxu0 %v2954
  %3015 = vmatprep.subr.mxu0 0.0
  %3016 = vmatpush1.msra.mxu0 %v2955
  %3017 = vmatprep.subr.mxu0 0.0
  %3018 = vmatpush1.msra.mxu0 %v2956
  %3019 = vmatprep.subr.mxu0 0.0
  %3020 = vmatpush1.msra.mxu0 %v2957
  %3021 = vmatprep.subr.mxu0 0.0
  %3022 = vmatpush1.msra.mxu0 %v2958
  %3023 = vmatprep.subr.mxu0 0.0
  %3024 = vmatpush1.msra.mxu0 0.0
  %3025 = vmatprep.subr.mxu0 0.0
  %3026 = vmatpush1.msra.mxu0 0.0
  %3027 = vmatprep.subr.mxu0 0.0
  %3028 = vmatpush1.msra.mxu0 0.0
  %3029 = vmatprep.subr.mxu0 0.0
  %3030 = vmatpush1.msra.mxu0 0.0
  %3031 = vmatprep.subr.mxu0 0.0
  %3032 = vmatpush1.msra.mxu0 0.0
  %3033 = vmatprep.subr.mxu0 0.0
  %3034 = vmatpush1.msra.mxu0 0.0
  %3035 = vmatprep.subr.mxu0 0.0
  %3036 = vmatpush1.msra.mxu0 0.0
  %3037 = vmatprep.subr.mxu0 0.0
  %3038 = vmatpush1.msra.mxu0 0.0
  %3039 = vmatprep.subr.mxu0 0.0
  %3040 = vmatpush1.msra.mxu0 0.0
  %3041 = vmatprep.subr.mxu0 0.0
  %3042 = vmatpush1.msra.mxu0 0.0
  %3043 = vmatprep.subr.mxu0 0.0
  %3044 = vmatpush1.msra.mxu0 0.0
  %3045 = vmatprep.subr.mxu0 0.0
  %3046 = vmatpush1.msra.mxu0 0.0
  %3047 = vmatprep.subr.mxu0 0.0
  %3048 = vmatpush1.msra.mxu0 0.0
  %3049 = vmatprep.subr.mxu0 0.0
  %3050 = vmatpush1.msra.mxu0 0.0
  %3051 = vmatprep.subr.mxu0 0.0
  %3052 = vmatpush1.msra.mxu0 0.0
  %3053 = vmatprep.subr.mxu0 0.0
  %3054 = vmatpush1.msra.mxu0 0.0
  %3055 = vmatprep.subr.mxu0 0.0
  %3056 = vmatpush1.msra.mxu0 0.0
  %3057 = vmatprep.subr.mxu0 0.0
  %3058 = vmatpush1.msra.mxu0 0.0
  %3059 = vmatprep.subr.mxu0 0.0
  %3060 = vmatpush1.msra.mxu0 0.0
  %3061 = vmatprep.subr.mxu0 0.0
  %3062 = vmatpush1.msra.mxu0 0.0
  %3063 = vmatprep.subr.mxu0 0.0
  %3064 = vmatpush1.msra.mxu0 0.0
  %3065 = vmatprep.subr.mxu0 0.0
  %3066 = vmatpush1.msra.mxu0 0.0
  %3067 = vmatprep.subr.mxu0 0.0
  %3068 = vmatpush1.msra.mxu0 0.0
  %3069 = vmatprep.subr.mxu0 0.0
  %3070 = vmatpush1.msra.mxu0 0.0
  %3071 = vmatprep.mubr.f32.mxu0 0.0
  %3072 = vmatmul.mubr.f32.gmra.mrb[0].mxu0 %v2960
  %v3073 = vpop.f32.mrb[0].mxu0
  %v3074 = vadd.f32 0.0, %v3073
  %v3075 = vpop.f32.mrb[0].mxu0
  %3076 = vmatprep.mubr.f32.mxu0 0.0
  %3077 = vmatmul.mubr.f32.gmra.mrb[0].mxu0 %v2963
  %v3078 = vpop.f32.mrb[0].mxu0
  %v3079 = vadd.f32 0.0, %v3078
  %v3080 = vpop.f32.mrb[0].mxu0
  %3081 = vmatprep.mubr.f32.mxu0 0.0
  %3082 = vmatmul.mubr.f32.gmra.mrb[0].mxu0 %v2966
  %v3083 = vpop.f32.mrb[0].mxu0
  %v3084 = vadd.f32 0.0, %v3083
  %v3085 = vpop.f32.mrb[0].mxu0
  %3086 = vmatprep.mubr.f32.mxu0 0.0
  %3087 = vmatmul.mubr.f32.gmra.mrb[0].mxu0 %v2969
  %v3088 = vpop.f32.mrb[0].mxu0
  %v3089 = vadd.f32 0.0, %v3088
  %v3090 = vpop.f32.mrb[0].mxu0
  %3091 = vmatprep.mubr.f32.mxu0 0.0
  %3092 = vmatmul.mubr.f32.gmra.mrb[0].mxu0 %v2972
  %v3093 = vpop.f32.mrb[0].mxu0
  %v3094 = vadd.f32 0.0, %v3093
  %v3095 = vpop.f32.mrb[0].mxu0
  %3096 = vmatprep.mubr.f32.mxu0 0.0
  %3097 = vmatmul.mubr.f32.gmra.mrb[0].mxu0 %v2975
  %v3098 = vpop.f32.mrb[0].mxu0
  %v3099 = vadd.f32 0.0, %v3098
  %v3100 = vpop.f32.mrb[0].mxu0
  %3101 = vmatprep.mubr.f32.mxu0 0.0
  %3102 = vmatmul.mubr.f32.gmra.mrb[0].mxu0 %v2978
  %v3103 = vpop.f32.mrb[0].mxu0
  %v3104 = vadd.f32 0.0, %v3103
  %v3105 = vpop.f32.mrb[0].mxu0
  %3106 = vmatprep.mubr.f32.mxu0 0.0
  %3107 = vmatmul.mubr.f32.gmra.mrb[0].mxu0 %v2981
  %v3108 = vpop.f32.mrb[0].mxu0
  %v3109 = vadd.f32 0.0, %v3108
  %v3110 = vpop.f32.mrb[0].mxu0
  %3111 = vmatprep.mubr.f32.mxu0 0.0
  %3112 = vmatmul.mubr.f32.gmra.mrb[0].mxu0 %v2984
  %v3113 = vpop.f32.mrb[0].mxu0
  %v3114 = vadd.f32 0.0, %v3113
  %v3115 = vpop.f32.mrb[0].mxu0
  %3116 = vmatprep.mubr.f32.mxu0 0.0
  %3117 = vmatmul.mubr.f32.gmra.mrb[0].mxu0 %v2987
  %v3118 = vpop.f32.mrb[0].mxu0
  %v3119 = vadd.f32 0.0, %v3118
  %v3120 = vpop.f32.mrb[0].mxu0
  %3121 = vmatprep.mubr.f32.mxu0 0.0
  %3122 = vmatmul.mubr.f32.gmra.mrb[0].mxu0 %v2990
  %v3123 = vpop.f32.mrb[0].mxu0
  %v3124 = vadd.f32 0.0, %v3123
  %v3125 = vpop.f32.mrb[0].mxu0
  %3126 = vmatprep.mubr.f32.mxu0 0.0
  %3127 = vmatmul.mubr.f32.gmra.mrb[0].mxu0 %v2993
  %v3128 = vpop.f32.mrb[0].mxu0
  %v3129 = vadd.f32 0.0, %v3128
  %v3130 = vpop.f32.mrb[0].mxu0
  %3131 = vmatprep.mubr.f32.mxu0 0.0
  %3132 = vmatmul.mubr.f32.gmra.mrb[0].mxu0 %v2996
  %v3133 = vpop.f32.mrb[0].mxu0
  %v3134 = vadd.f32 0.0, %v3133
  %v3135 = vpop.f32.mrb[0].mxu0
  %3136 = vmatprep.mubr.f32.mxu0 0.0
  %3137 = vmatmul.mubr.f32.gmra.mrb[0].mxu0 %v2999
  %v3138 = vpop.f32.mrb[0].mxu0
  %v3139 = vadd.f32 0.0, %v3138
  %v3140 = vpop.f32.mrb[0].mxu0
  %3141 = vmatprep.mubr.f32.mxu0 0.0
  %3142 = vmatmul.mubr.f32.gmra.mrb[0].mxu0 %v3002
  %v3143 = vpop.f32.mrb[0].mxu0
  %v3144 = vadd.f32 0.0, %v3143
  %v3145 = vpop.f32.mrb[0].mxu0
  %3146 = vmatprep.mubr.f32.mxu0 0.0
  %3147 = vmatmul.mubr.f32.gmra.mrb[0].mxu0 %v3005
  %v3148 = vpop.f32.mrb[0].mxu0
  %v3149 = vadd.f32 0.0, %v3148
  %v3150 = vpop.f32.mrb[0].mxu0
  %3151 = vdwg.mxu0
  %v3152 = vlaneseq
  %v3153 = vshrl.u32 %v3152, 7
  %v3154 = vsub.s32 1, %v3153
  %v3155 = vrot.slane %v53, %v3154
  %v3156 = vmul.f32 %v3074, %v3155
  %v3157 = vmul.f32 %v3079, %v3155
  %v3158 = vmul.f32 %v3084, %v3155
  %v3159 = vmul.f32 %v3089, %v3155
  %v3160 = vmul.f32 %v3094, %v3155
  %v3161 = vmul.f32 %v3099, %v3155
  %v3162 = vmul.f32 %v3104, %v3155
  %v3163 = vmul.f32 %v3109, %v3155
  %v3164 = vmul.f32 %v3114, %v3155
  %v3165 = vmul.f32 %v3119, %v3155
  %v3166 = vmul.f32 %v3124, %v3155
  %v3167 = vmul.f32 %v3129, %v3155
  %v3168 = vmul.f32 %v3134, %v3155
  %v3169 = vmul.f32 %v3139, %v3155
  %v3170 = vmul.f32 %v3144, %v3155
  %v3171 = vmul.f32 %v3149, %v3155
  %v3172 = vsel %vm56, %v3156, 0.0
  %3173 = vadd.xlane.f32.xlu0 %v3172
  %v3174 = vpop.xlane.xlu0 %3173
  %v3175 = vsel %vm56, %v3157, 0.0
  %3176 = vadd.xlane.f32.xlu0 %v3175
  %v3177 = vpop.xlane.xlu0 %3176
  %v3178 = vsel %vm56, %v3158, 0.0
  %3179 = vadd.xlane.f32.xlu0 %v3178
  %v3180 = vpop.xlane.xlu0 %3179
  %v3181 = vsel %vm56, %v3159, 0.0
  %3182 = vadd.xlane.f32.xlu0 %v3181
  %v3183 = vpop.xlane.xlu0 %3182
  %v3184 = vsel %vm56, %v3160, 0.0
  %3185 = vadd.xlane.f32.xlu0 %v3184
  %v3186 = vpop.xlane.xlu0 %3185
  %v3187 = vsel %vm56, %v3161, 0.0
  %3188 = vadd.xlane.f32.xlu0 %v3187
  %v3189 = vpop.xlane.xlu0 %3188
  %v3190 = vsel %vm56, %v3162, 0.0
  %3191 = vadd.xlane.f32.xlu0 %v3190
  %v3192 = vpop.xlane.xlu0 %3191
  %v3193 = vsel %vm56, %v3163, 0.0
  %3194 = vadd.xlane.f32.xlu0 %v3193
  %v3195 = vpop.xlane.xlu0 %3194
  %v3196 = vsel %vm56, %v3164, 0.0
  %3197 = vadd.xlane.f32.xlu0 %v3196
  %v3198 = vpop.xlane.xlu0 %3197
  %v3199 = vsel %vm56, %v3165, 0.0
  %3200 = vadd.xlane.f32.xlu0 %v3199
  %v3201 = vpop.xlane.xlu0 %3200
  %v3202 = vsel %vm56, %v3166, 0.0
  %3203 = vadd.xlane.f32.xlu0 %v3202
  %v3204 = vpop.xlane.xlu0 %3203
  %v3205 = vsel %vm56, %v3167, 0.0
  %3206 = vadd.xlane.f32.xlu0 %v3205
  %v3207 = vpop.xlane.xlu0 %3206
  %v3208 = vsel %vm56, %v3168, 0.0
  %3209 = vadd.xlane.f32.xlu0 %v3208
  %v3210 = vpop.xlane.xlu0 %3209
  %v3211 = vsel %vm56, %v3169, 0.0
  %3212 = vadd.xlane.f32.xlu0 %v3211
  %v3213 = vpop.xlane.xlu0 %3212
  %v3214 = vsel %vm56, %v3170, 0.0
  %3215 = vadd.xlane.f32.xlu0 %v3214
  %v3216 = vpop.xlane.xlu0 %3215
  %v3217 = vsel %vm56, %v3171, 0.0
  %3218 = vadd.xlane.f32.xlu0 %v3217
  %v3219 = vpop.xlane.xlu0 %3218
  %v3221 = vsel %vm56, %v53, 0
  %v3224 = vsel %vm56, %v3074, 0
  %v3227 = vsel %vm56, %v3079, 0
  %v3230 = vsel %vm56, %v3084, 0
  %v3233 = vsel %vm56, %v3089, 0
  %v3236 = vsel %vm56, %v3094, 0
  %v3239 = vsel %vm56, %v3099, 0
  %v3242 = vsel %vm56, %v3104, 0
  %v3245 = vsel %vm56, %v3109, 0
  %v3248 = vsel %vm56, %v3114, 0
  %v3251 = vsel %vm56, %v3119, 0
  %v3254 = vsel %vm56, %v3124, 0
  %v3257 = vsel %vm56, %v3129, 0
  %v3260 = vsel %vm56, %v3134, 0
  %v3263 = vsel %vm56, %v3139, 0
  %v3266 = vsel %vm56, %v3144, 0
  %v3269 = vsel %vm56, %v3149, 0
  %3271 = vmatprep.subr.mxu0 0.0
  %3272 = vmatpush1.xpose.msra.mxu0 %v3224
  %3273 = vmatprep.subr.mxu0 0.0
  %3274 = vmatpush1.xpose.msra.mxu0 %v3227
  %3275 = vmatprep.subr.mxu0 0.0
  %3276 = vmatpush1.xpose.msra.mxu0 %v3230
  %3277 = vmatprep.subr.mxu0 0.0
  %3278 = vmatpush1.xpose.msra.mxu0 %v3233
  %3279 = vmatprep.subr.mxu0 0.0
  %3280 = vmatpush1.xpose.msra.mxu0 %v3236
  %3281 = vmatprep.subr.mxu0 0.0
  %3282 = vmatpush1.xpose.msra.mxu0 %v3239
  %3283 = vmatprep.subr.mxu0 0.0
  %3284 = vmatpush1.xpose.msra.mxu0 %v3242
  %3285 = vmatprep.subr.mxu0 0.0
  %3286 = vmatpush1.xpose.msra.mxu0 %v3245
  %3287 = vmatprep.subr.mxu0 0.0
  %3288 = vmatpush1.xpose.msra.mxu0 %v3248
  %3289 = vmatprep.subr.mxu0 0.0
  %3290 = vmatpush1.xpose.msra.mxu0 %v3251
  %3291 = vmatprep.subr.mxu0 0.0
  %3292 = vmatpush1.xpose.msra.mxu0 %v3254
  %3293 = vmatprep.subr.mxu0 0.0
  %3294 = vmatpush1.xpose.msra.mxu0 %v3257
  %3295 = vmatprep.subr.mxu0 0.0
  %3296 = vmatpush1.xpose.msra.mxu0 %v3260
  %3297 = vmatprep.subr.mxu0 0.0
  %3298 = vmatpush1.xpose.msra.mxu0 %v3263
  %3299 = vmatprep.subr.mxu0 0.0
  %3300 = vmatpush1.xpose.msra.mxu0 %v3266
  %3301 = vmatprep.subr.mxu0 0.0
  %3302 = vmatpush1.xpose.msra.mxu0 %v3269
  %3303 = vmatprep.subr.mxu0 0.0
  %3304 = vmatpush1.xpose.msra.mxu0 0.0
  %3305 = vmatprep.subr.mxu0 0.0
  %3306 = vmatpush1.xpose.msra.mxu0 0.0
  %3307 = vmatprep.subr.mxu0 0.0
  %3308 = vmatpush1.xpose.msra.mxu0 0.0
  %3309 = vmatprep.subr.mxu0 0.0
  %3310 = vmatpush1.xpose.msra.mxu0 0.0
  %3311 = vmatprep.subr.mxu0 0.0
  %3312 = vmatpush1.xpose.msra.mxu0 0.0
  %3313 = vmatprep.subr.mxu0 0.0
  %3314 = vmatpush1.xpose.msra.mxu0 0.0
  %3315 = vmatprep.subr.mxu0 0.0
  %3316 = vmatpush1.xpose.msra.mxu0 0.0
  %3317 = vmatprep.subr.mxu0 0.0
  %3318 = vmatpush1.xpose.msra.mxu0 0.0
  %3319 = vmatprep.subr.mxu0 0.0
  %3320 = vmatpush1.xpose.msra.mxu0 0.0
  %3321 = vmatprep.subr.mxu0 0.0
  %3322 = vmatpush1.xpose.msra.mxu0 0.0
  %3323 = vmatprep.subr.mxu0 0.0
  %3324 = vmatpush1.xpose.msra.mxu0 0.0
  %3325 = vmatprep.subr.mxu0 0.0
  %3326 = vmatpush1.xpose.msra.mxu0 0.0
  %3327 = vmatprep.subr.mxu0 0.0
  %3328 = vmatpush1.xpose.msra.mxu0 0.0
  %3329 = vmatprep.subr.mxu0 0.0
  %3330 = vmatpush1.xpose.msra.mxu0 0.0
  %3331 = vmatprep.subr.mxu0 0.0
  %3332 = vmatpush1.xpose.msra.mxu0 0.0
  %3333 = vmatprep.subr.mxu0 0.0
  %3334 = vmatpush1.xpose.msra.mxu0 0.0
  %3335 = vmatprep.mubr.f32.mxu0 0.0
  %3336 = vmatmul.mubr.f32.gmra.mrb[0].mxu0 %v3221
  %v3337 = vpop.f32.mrb[0].mxu0
  %v3338 = vadd.f32 0.0, %v3337
  %v3339 = vpop.f32.mrb[0].mxu0
  %3340 = vdwg.mxu0
  %v3341 = vlaneseq
  %v3342 = vshrl.u32 %v3341, 7
  %v3343 = vsub.s32 0, %v3342
  %v3344 = vrot.slane %v3338, %v3343
  %v3345 = vadd.f32 %v3174, %v3344
  %v3346 = vadd.f32 %v3177, %v3344
  %v3347 = vadd.f32 %v3180, %v3344
  %v3348 = vadd.f32 %v3183, %v3344
  %v3349 = vadd.f32 %v3186, %v3344
  %v3350 = vadd.f32 %v3189, %v3344
  %v3351 = vadd.f32 %v3192, %v3344
  %v3352 = vadd.f32 %v3195, %v3344
  %v3353 = vadd.f32 %v3198, %v3344
  %v3354 = vadd.f32 %v3201, %v3344
  %v3355 = vadd.f32 %v3204, %v3344
  %v3356 = vadd.f32 %v3207, %v3344
  %v3357 = vadd.f32 %v3210, %v3344
  %v3358 = vadd.f32 %v3213, %v3344
  %v3359 = vadd.f32 %v3216, %v3344
  %v3360 = vadd.f32 %v3219, %v3344
  %vm3361 = vcmp.gt.f32.partialorder %v3345, 0.0
  %vm3362 = vcmp.gt.f32.partialorder %v3346, 0.0
  %vm3363 = vcmp.gt.f32.partialorder %v3347, 0.0
  %vm3364 = vcmp.gt.f32.partialorder %v3348, 0.0
  %vm3365 = vcmp.gt.f32.partialorder %v3349, 0.0
  %vm3366 = vcmp.gt.f32.partialorder %v3350, 0.0
  %vm3367 = vcmp.gt.f32.partialorder %v3351, 0.0
  %vm3368 = vcmp.gt.f32.partialorder %v3352, 0.0
  %vm3369 = vcmp.gt.f32.partialorder %v3353, 0.0
  %vm3370 = vcmp.gt.f32.partialorder %v3354, 0.0
  %vm3371 = vcmp.gt.f32.partialorder %v3355, 0.0
  %vm3372 = vcmp.gt.f32.partialorder %v3356, 0.0
  %vm3373 = vcmp.gt.f32.partialorder %v3357, 0.0
  %vm3374 = vcmp.gt.f32.partialorder %v3358, 0.0
  %vm3375 = vcmp.gt.f32.partialorder %v3359, 0.0
  %vm3376 = vcmp.gt.f32.partialorder %v3360, 0.0
  %v3377 = vmul.f32 %v3345, 0.2
  %v3378 = vmul.f32 %v3346, 0.2
  %v3379 = vmul.f32 %v3347, 0.2
  %v3380 = vmul.f32 %v3348, 0.2
  %v3381 = vmul.f32 %v3349, 0.2
  %v3382 = vmul.f32 %v3350, 0.2
  %v3383 = vmul.f32 %v3351, 0.2
  %v3384 = vmul.f32 %v3352, 0.2
  %v3385 = vmul.f32 %v3353, 0.2
  %v3386 = vmul.f32 %v3354, 0.2
  %v3387 = vmul.f32 %v3355, 0.2
  %v3388 = vmul.f32 %v3356, 0.2
  %v3389 = vmul.f32 %v3357, 0.2
  %v3390 = vmul.f32 %v3358, 0.2
  %v3391 = vmul.f32 %v3359, 0.2
  %v3392 = vmul.f32 %v3360, 0.2
  %v3393 = vsel %vm3361, %v3345, %v3377
  %v3394 = vsel %vm3362, %v3346, %v3378
  %v3395 = vsel %vm3363, %v3347, %v3379
  %v3396 = vsel %vm3364, %v3348, %v3380
  %v3397 = vsel %vm3365, %v3349, %v3381
  %v3398 = vsel %vm3366, %v3350, %v3382
  %v3399 = vsel %vm3367, %v3351, %v3383
  %v3400 = vsel %vm3368, %v3352, %v3384
  %v3401 = vsel %vm3369, %v3353, %v3385
  %v3402 = vsel %vm3370, %v3354, %v3386
  %v3403 = vsel %vm3371, %v3355, %v3387
  %v3404 = vsel %vm3372, %v3356, %v3388
  %v3405 = vsel %vm3373, %v3357, %v3389
  %v3406 = vsel %vm3374, %v3358, %v3390
  %v3407 = vsel %vm3375, %v3359, %v3391
  %v3408 = vsel %vm3376, %v3360, %v3392
  %v3409 = vsel %vm509, %v3393, -1e+30
  %v3410 = vsel %vm510, %v3394, -1e+30
  %v3411 = vsel %vm511, %v3395, -1e+30
  %v3412 = vsel %vm512, %v3396, -1e+30
  %v3413 = vsel %vm513, %v3397, -1e+30
  %v3414 = vsel %vm514, %v3398, -1e+30
  %v3415 = vsel %vm515, %v3399, -1e+30
  %v3416 = vsel %vm516, %v3400, -1e+30
  %v3417 = vsel %vm517, %v3401, -1e+30
  %v3418 = vsel %vm518, %v3402, -1e+30
  %v3419 = vsel %vm519, %v3403, -1e+30
  %v3420 = vsel %vm520, %v3404, -1e+30
  %v3421 = vsel %vm521, %v3405, -1e+30
  %v3422 = vsel %vm522, %v3406, -1e+30
  %v3423 = vsel %vm523, %v3407, -1e+30
  %v3424 = vsel %vm524, %v3408, -1e+30
  %3425 = vmax.xlane.f32.xlu0 %v3409
  %v3426 = vpop.xlane.xlu0 %3425
  %3427 = vmax.xlane.f32.xlu0 %v3410
  %v3428 = vpop.xlane.xlu0 %3427
  %3429 = vmax.xlane.f32.xlu0 %v3411
  %v3430 = vpop.xlane.xlu0 %3429
  %3431 = vmax.xlane.f32.xlu0 %v3412
  %v3432 = vpop.xlane.xlu0 %3431
  %3433 = vmax.xlane.f32.xlu0 %v3413
  %v3434 = vpop.xlane.xlu0 %3433
  %3435 = vmax.xlane.f32.xlu0 %v3414
  %v3436 = vpop.xlane.xlu0 %3435
  %3437 = vmax.xlane.f32.xlu0 %v3415
  %v3438 = vpop.xlane.xlu0 %3437
  %3439 = vmax.xlane.f32.xlu0 %v3416
  %v3440 = vpop.xlane.xlu0 %3439
  %3441 = vmax.xlane.f32.xlu0 %v3417
  %v3442 = vpop.xlane.xlu0 %3441
  %3443 = vmax.xlane.f32.xlu0 %v3418
  %v3444 = vpop.xlane.xlu0 %3443
  %3445 = vmax.xlane.f32.xlu0 %v3419
  %v3446 = vpop.xlane.xlu0 %3445
  %3447 = vmax.xlane.f32.xlu0 %v3420
  %v3448 = vpop.xlane.xlu0 %3447
  %3449 = vmax.xlane.f32.xlu0 %v3421
  %v3450 = vpop.xlane.xlu0 %3449
  %3451 = vmax.xlane.f32.xlu0 %v3422
  %v3452 = vpop.xlane.xlu0 %3451
  %3453 = vmax.xlane.f32.xlu0 %v3423
  %v3454 = vpop.xlane.xlu0 %3453
  %3455 = vmax.xlane.f32.xlu0 %v3424
  %v3456 = vpop.xlane.xlu0 %3455
  %v3457 = vsub.f32 %v3409, %v3426
  %v3458 = vsub.f32 %v3410, %v3428
  %v3459 = vsub.f32 %v3411, %v3430
  %v3460 = vsub.f32 %v3412, %v3432
  %v3461 = vsub.f32 %v3413, %v3434
  %v3462 = vsub.f32 %v3414, %v3436
  %v3463 = vsub.f32 %v3415, %v3438
  %v3464 = vsub.f32 %v3416, %v3440
  %v3465 = vsub.f32 %v3417, %v3442
  %v3466 = vsub.f32 %v3418, %v3444
  %v3467 = vsub.f32 %v3419, %v3446
  %v3468 = vsub.f32 %v3420, %v3448
  %v3469 = vsub.f32 %v3421, %v3450
  %v3470 = vsub.f32 %v3422, %v3452
  %v3471 = vsub.f32 %v3423, %v3454
  %v3472 = vsub.f32 %v3424, %v3456
  %v3473 = vmul.f32 %v3457, 1.442695
  %v3474 = vpow.pop %v3473
  %v3475 = vmul.f32 %v3458, 1.442695
  %v3476 = vpow.pop %v3475
  %v3477 = vmul.f32 %v3459, 1.442695
  %v3478 = vpow.pop %v3477
  %v3479 = vmul.f32 %v3460, 1.442695
  %v3480 = vpow.pop %v3479
  %v3481 = vmul.f32 %v3461, 1.442695
  %v3482 = vpow.pop %v3481
  %v3483 = vmul.f32 %v3462, 1.442695
  %v3484 = vpow.pop %v3483
  %v3485 = vmul.f32 %v3463, 1.442695
  %v3486 = vpow.pop %v3485
  %v3487 = vmul.f32 %v3464, 1.442695
  %v3488 = vpow.pop %v3487
  %v3489 = vmul.f32 %v3465, 1.442695
  %v3490 = vpow.pop %v3489
  %v3491 = vmul.f32 %v3466, 1.442695
  %v3492 = vpow.pop %v3491
  %v3493 = vmul.f32 %v3467, 1.442695
  %v3494 = vpow.pop %v3493
  %v3495 = vmul.f32 %v3468, 1.442695
  %v3496 = vpow.pop %v3495
  %v3497 = vmul.f32 %v3469, 1.442695
  %v3498 = vpow.pop %v3497
  %v3499 = vmul.f32 %v3470, 1.442695
  %v3500 = vpow.pop %v3499
  %v3501 = vmul.f32 %v3471, 1.442695
  %v3502 = vpow.pop %v3501
  %v3503 = vmul.f32 %v3472, 1.442695
  %v3504 = vpow.pop %v3503
  %v3505 = vmul.f32 %v3474, %v36
  %v3506 = vmul.f32 %v3476, %v37
  %v3507 = vmul.f32 %v3478, %v38
  %v3508 = vmul.f32 %v3480, %v39
  %v3509 = vmul.f32 %v3482, %v40
  %v3510 = vmul.f32 %v3484, %v41
  %v3511 = vmul.f32 %v3486, %v42
  %v3512 = vmul.f32 %v3488, %v43
  %v3513 = vmul.f32 %v3490, %v44
  %v3514 = vmul.f32 %v3492, %v45
  %v3515 = vmul.f32 %v3494, %v46
  %v3516 = vmul.f32 %v3496, %v47
  %v3517 = vmul.f32 %v3498, %v48
  %v3518 = vmul.f32 %v3500, %v49
  %v3519 = vmul.f32 %v3502, %v50
  %v3520 = vmul.f32 %v3504, %v51
  %3521 = vadd.xlane.f32.xlu0 %v3505
  %v3522 = vpop.xlane.xlu0 %3521
  %3523 = vadd.xlane.f32.xlu0 %v3506
  %v3524 = vpop.xlane.xlu0 %3523
  %3525 = vadd.xlane.f32.xlu0 %v3507
  %v3526 = vpop.xlane.xlu0 %3525
  %3527 = vadd.xlane.f32.xlu0 %v3508
  %v3528 = vpop.xlane.xlu0 %3527
  %3529 = vadd.xlane.f32.xlu0 %v3509
  %v3530 = vpop.xlane.xlu0 %3529
  %3531 = vadd.xlane.f32.xlu0 %v3510
  %v3532 = vpop.xlane.xlu0 %3531
  %3533 = vadd.xlane.f32.xlu0 %v3511
  %v3534 = vpop.xlane.xlu0 %3533
  %3535 = vadd.xlane.f32.xlu0 %v3512
  %v3536 = vpop.xlane.xlu0 %3535
  %3537 = vadd.xlane.f32.xlu0 %v3513
  %v3538 = vpop.xlane.xlu0 %3537
  %3539 = vadd.xlane.f32.xlu0 %v3514
  %v3540 = vpop.xlane.xlu0 %3539
  %3541 = vadd.xlane.f32.xlu0 %v3515
  %v3542 = vpop.xlane.xlu0 %3541
  %3543 = vadd.xlane.f32.xlu0 %v3516
  %v3544 = vpop.xlane.xlu0 %3543
  %3545 = vadd.xlane.f32.xlu0 %v3517
  %v3546 = vpop.xlane.xlu0 %3545
  %3547 = vadd.xlane.f32.xlu0 %v3518
  %v3548 = vpop.xlane.xlu0 %3547
  %3549 = vadd.xlane.f32.xlu0 %v3519
  %v3550 = vpop.xlane.xlu0 %3549
  %3551 = vadd.xlane.f32.xlu0 %v3520
  %v3552 = vpop.xlane.xlu0 %3551
  %v3553 = vmax.f32 %v3522, 1e-20
  %v3554 = vmax.f32 %v3524, 1e-20
  %v3555 = vmax.f32 %v3526, 1e-20
  %v3556 = vmax.f32 %v3528, 1e-20
  %v3557 = vmax.f32 %v3530, 1e-20
  %v3558 = vmax.f32 %v3532, 1e-20
  %v3559 = vmax.f32 %v3534, 1e-20
  %v3560 = vmax.f32 %v3536, 1e-20
  %v3561 = vmax.f32 %v3538, 1e-20
  %v3562 = vmax.f32 %v3540, 1e-20
  %v3563 = vmax.f32 %v3542, 1e-20
  %v3564 = vmax.f32 %v3544, 1e-20
  %v3565 = vmax.f32 %v3546, 1e-20
  %v3566 = vmax.f32 %v3548, 1e-20
  %v3567 = vmax.f32 %v3550, 1e-20
  %v3568 = vmax.f32 %v3552, 1e-20
  %v3569 = vrcp.pop %v3553
  %v3570 = vrcp.pop %v3554
  %v3571 = vrcp.pop %v3555
  %v3572 = vrcp.pop %v3556
  %v3573 = vrcp.pop %v3557
  %v3574 = vrcp.pop %v3558
  %v3575 = vrcp.pop %v3559
  %v3576 = vrcp.pop %v3560
  %v3577 = vrcp.pop %v3561
  %v3578 = vrcp.pop %v3562
  %v3579 = vrcp.pop %v3563
  %v3580 = vrcp.pop %v3564
  %v3581 = vrcp.pop %v3565
  %v3582 = vrcp.pop %v3566
  %v3583 = vrcp.pop %v3567
  %v3584 = vrcp.pop %v3568
  %v3585 = vmul.f32 %v3505, %v3569
  %v3586 = vmul.f32 %v3506, %v3570
  %v3587 = vmul.f32 %v3507, %v3571
  %v3588 = vmul.f32 %v3508, %v3572
  %v3589 = vmul.f32 %v3509, %v3573
  %v3590 = vmul.f32 %v3510, %v3574
  %v3591 = vmul.f32 %v3511, %v3575
  %v3592 = vmul.f32 %v3512, %v3576
  %v3593 = vmul.f32 %v3513, %v3577
  %v3594 = vmul.f32 %v3514, %v3578
  %v3595 = vmul.f32 %v3515, %v3579
  %v3596 = vmul.f32 %v3516, %v3580
  %v3597 = vmul.f32 %v3517, %v3581
  %v3598 = vmul.f32 %v3518, %v3582
  %v3599 = vmul.f32 %v3519, %v3583
  %v3600 = vmul.f32 %v3520, %v3584
  %v3601 = vlaneseq
  %v3602 = vshrl.u32 %v3601, 7
  %v3603 = vsub.s32 2, %v3602
  %v3604 = vrot.slane %v53, %v3603
  %3605 = vmatprep.subr.mxu0 0.0
  %3606 = vmatpush1.msra.mxu0 %v3074
  %3607 = vmatprep.subr.mxu0 0.0
  %3608 = vmatpush1.msra.mxu0 %v3079
  %3609 = vmatprep.subr.mxu0 0.0
  %3610 = vmatpush1.msra.mxu0 %v3084
  %3611 = vmatprep.subr.mxu0 0.0
  %3612 = vmatpush1.msra.mxu0 %v3089
  %3613 = vmatprep.subr.mxu0 0.0
  %3614 = vmatpush1.msra.mxu0 %v3094
  %3615 = vmatprep.subr.mxu0 0.0
  %3616 = vmatpush1.msra.mxu0 %v3099
  %3617 = vmatprep.subr.mxu0 0.0
  %3618 = vmatpush1.msra.mxu0 %v3104
  %3619 = vmatprep.subr.mxu0 0.0
  %3620 = vmatpush1.msra.mxu0 %v3109
  %3621 = vmatprep.subr.mxu0 0.0
  %3622 = vmatpush1.msra.mxu0 %v3114
  %3623 = vmatprep.subr.mxu0 0.0
  %3624 = vmatpush1.msra.mxu0 %v3119
  %3625 = vmatprep.subr.mxu0 0.0
  %3626 = vmatpush1.msra.mxu0 %v3124
  %3627 = vmatprep.subr.mxu0 0.0
  %3628 = vmatpush1.msra.mxu0 %v3129
  %3629 = vmatprep.subr.mxu0 0.0
  %3630 = vmatpush1.msra.mxu0 %v3134
  %3631 = vmatprep.subr.mxu0 0.0
  %3632 = vmatpush1.msra.mxu0 %v3139
  %3633 = vmatprep.subr.mxu0 0.0
  %3634 = vmatpush1.msra.mxu0 %v3144
  %3635 = vmatprep.subr.mxu0 0.0
  %3636 = vmatpush1.msra.mxu0 %v3149
  %3637 = vmatprep.subr.mxu0 0.0
  %3638 = vmatpush1.msra.mxu0 0.0
  %3639 = vmatprep.subr.mxu0 0.0
  %3640 = vmatpush1.msra.mxu0 0.0
  %3641 = vmatprep.subr.mxu0 0.0
  %3642 = vmatpush1.msra.mxu0 0.0
  %3643 = vmatprep.subr.mxu0 0.0
  %3644 = vmatpush1.msra.mxu0 0.0
  %3645 = vmatprep.subr.mxu0 0.0
  %3646 = vmatpush1.msra.mxu0 0.0
  %3647 = vmatprep.subr.mxu0 0.0
  %3648 = vmatpush1.msra.mxu0 0.0
  %3649 = vmatprep.subr.mxu0 0.0
  %3650 = vmatpush1.msra.mxu0 0.0
  %3651 = vmatprep.subr.mxu0 0.0
  %3652 = vmatpush1.msra.mxu0 0.0
  %3653 = vmatprep.subr.mxu0 0.0
  %3654 = vmatpush1.msra.mxu0 0.0
  %3655 = vmatprep.subr.mxu0 0.0
  %3656 = vmatpush1.msra.mxu0 0.0
  %3657 = vmatprep.subr.mxu0 0.0
  %3658 = vmatpush1.msra.mxu0 0.0
  %3659 = vmatprep.subr.mxu0 0.0
  %3660 = vmatpush1.msra.mxu0 0.0
  %3661 = vmatprep.subr.mxu0 0.0
  %3662 = vmatpush1.msra.mxu0 0.0
  %3663 = vmatprep.subr.mxu0 0.0
  %3664 = vmatpush1.msra.mxu0 0.0
  %3665 = vmatprep.subr.mxu0 0.0
  %3666 = vmatpush1.msra.mxu0 0.0
  %3667 = vmatprep.subr.mxu0 0.0
  %3668 = vmatpush1.msra.mxu0 0.0
  %3669 = vmatprep.mubr.f32.mxu0 0.0
  %3670 = vmatmul.mubr.f32.gmra.mrb[0].mxu0 %v3585
  %v3671 = vpop.f32.mrb[0].mxu0
  %v3672 = vadd.f32 %v3604, %v3671
  %v3673 = vpop.f32.mrb[0].mxu0
  %3674 = vmatprep.mubr.f32.mxu0 0.0
  %3675 = vmatmul.mubr.f32.gmra.mrb[0].mxu0 %v3586
  %v3676 = vpop.f32.mrb[0].mxu0
  %v3677 = vadd.f32 %v3604, %v3676
  %v3678 = vpop.f32.mrb[0].mxu0
  %3679 = vmatprep.mubr.f32.mxu0 0.0
  %3680 = vmatmul.mubr.f32.gmra.mrb[0].mxu0 %v3587
  %v3681 = vpop.f32.mrb[0].mxu0
  %v3682 = vadd.f32 %v3604, %v3681
  %v3683 = vpop.f32.mrb[0].mxu0
  %3684 = vmatprep.mubr.f32.mxu0 0.0
  %3685 = vmatmul.mubr.f32.gmra.mrb[0].mxu0 %v3588
  %v3686 = vpop.f32.mrb[0].mxu0
  %v3687 = vadd.f32 %v3604, %v3686
  %v3688 = vpop.f32.mrb[0].mxu0
  %3689 = vmatprep.mubr.f32.mxu0 0.0
  %3690 = vmatmul.mubr.f32.gmra.mrb[0].mxu0 %v3589
  %v3691 = vpop.f32.mrb[0].mxu0
  %v3692 = vadd.f32 %v3604, %v3691
  %v3693 = vpop.f32.mrb[0].mxu0
  %3694 = vmatprep.mubr.f32.mxu0 0.0
  %3695 = vmatmul.mubr.f32.gmra.mrb[0].mxu0 %v3590
  %v3696 = vpop.f32.mrb[0].mxu0
  %v3697 = vadd.f32 %v3604, %v3696
  %v3698 = vpop.f32.mrb[0].mxu0
  %3699 = vmatprep.mubr.f32.mxu0 0.0
  %3700 = vmatmul.mubr.f32.gmra.mrb[0].mxu0 %v3591
  %v3701 = vpop.f32.mrb[0].mxu0
  %v3702 = vadd.f32 %v3604, %v3701
  %v3703 = vpop.f32.mrb[0].mxu0
  %3704 = vmatprep.mubr.f32.mxu0 0.0
  %3705 = vmatmul.mubr.f32.gmra.mrb[0].mxu0 %v3592
  %v3706 = vpop.f32.mrb[0].mxu0
  %v3707 = vadd.f32 %v3604, %v3706
  %v3708 = vpop.f32.mrb[0].mxu0
  %3709 = vmatprep.mubr.f32.mxu0 0.0
  %3710 = vmatmul.mubr.f32.gmra.mrb[0].mxu0 %v3593
  %v3711 = vpop.f32.mrb[0].mxu0
  %v3712 = vadd.f32 %v3604, %v3711
  %v3713 = vpop.f32.mrb[0].mxu0
  %3714 = vmatprep.mubr.f32.mxu0 0.0
  %3715 = vmatmul.mubr.f32.gmra.mrb[0].mxu0 %v3594
  %v3716 = vpop.f32.mrb[0].mxu0
  %v3717 = vadd.f32 %v3604, %v3716
  %v3718 = vpop.f32.mrb[0].mxu0
  %3719 = vmatprep.mubr.f32.mxu0 0.0
  %3720 = vmatmul.mubr.f32.gmra.mrb[0].mxu0 %v3595
  %v3721 = vpop.f32.mrb[0].mxu0
  %v3722 = vadd.f32 %v3604, %v3721
  %v3723 = vpop.f32.mrb[0].mxu0
  %3724 = vmatprep.mubr.f32.mxu0 0.0
  %3725 = vmatmul.mubr.f32.gmra.mrb[0].mxu0 %v3596
  %v3726 = vpop.f32.mrb[0].mxu0
  %v3727 = vadd.f32 %v3604, %v3726
  %v3728 = vpop.f32.mrb[0].mxu0
  %3729 = vmatprep.mubr.f32.mxu0 0.0
  %3730 = vmatmul.mubr.f32.gmra.mrb[0].mxu0 %v3597
  %v3731 = vpop.f32.mrb[0].mxu0
  %v3732 = vadd.f32 %v3604, %v3731
  %v3733 = vpop.f32.mrb[0].mxu0
  %3734 = vmatprep.mubr.f32.mxu0 0.0
  %3735 = vmatmul.mubr.f32.gmra.mrb[0].mxu0 %v3598
  %v3736 = vpop.f32.mrb[0].mxu0
  %v3737 = vadd.f32 %v3604, %v3736
  %v3738 = vpop.f32.mrb[0].mxu0
  %3739 = vmatprep.mubr.f32.mxu0 0.0
  %3740 = vmatmul.mubr.f32.gmra.mrb[0].mxu0 %v3599
  %v3741 = vpop.f32.mrb[0].mxu0
  %v3742 = vadd.f32 %v3604, %v3741
  %v3743 = vpop.f32.mrb[0].mxu0
  %3744 = vmatprep.mubr.f32.mxu0 0.0
  %3745 = vmatmul.mubr.f32.gmra.mrb[0].mxu0 %v3600
  %v3746 = vpop.f32.mrb[0].mxu0
  %v3747 = vadd.f32 %v3604, %v3746
  %v3748 = vpop.f32.mrb[0].mxu0
  %3749 = vdwg.mxu0
  %v3750 = vmax.f32 %v3672, 0.0
  %v3751 = vmax.f32 %v3677, 0.0
  %v3752 = vmax.f32 %v3682, 0.0
  %v3753 = vmax.f32 %v3687, 0.0
  %v3754 = vmax.f32 %v3692, 0.0
  %v3755 = vmax.f32 %v3697, 0.0
  %v3756 = vmax.f32 %v3702, 0.0
  %v3757 = vmax.f32 %v3707, 0.0
  %v3758 = vmax.f32 %v3712, 0.0
  %v3759 = vmax.f32 %v3717, 0.0
  %v3760 = vmax.f32 %v3722, 0.0
  %v3761 = vmax.f32 %v3727, 0.0
  %v3762 = vmax.f32 %v3732, 0.0
  %v3763 = vmax.f32 %v3737, 0.0
  %v3764 = vmax.f32 %v3742, 0.0
  %v3765 = vmax.f32 %v3747, 0.0
  %v3766 = vld [vmem:[%s3 + $0x40] sm:$0xff]
  %v3767 = vld [vmem:[%s3 + $0x48] sm:$0xff]
  %v3768 = vld [vmem:[%s3 + $0x50] sm:$0xff]
  %v3769 = vld [vmem:[%s3 + $0x58] sm:$0xff]
  %3770 = vmatprep.subr.mxu0 0.0
  %3771 = vmatpush1.msra.mxu0 %v3768
  %3772 = vmatprep.subr.mxu0 0.0
  %3773 = vmatpush1.msra.mxu0 %v3769
  %3774 = vmatprep.subr.mxu0 0.0
  %3775 = vmatpush1.msra.mxu0 0.0
  %3776 = vmatprep.subr.mxu0 0.0
  %3777 = vmatpush1.msra.mxu0 0.0
  %3778 = vmatprep.subr.mxu0 0.0
  %3779 = vmatpush1.msra.mxu0 0.0
  %3780 = vmatprep.subr.mxu0 0.0
  %3781 = vmatpush1.msra.mxu0 0.0
  %3782 = vmatprep.subr.mxu0 0.0
  %3783 = vmatpush1.msra.mxu0 0.0
  %3784 = vmatprep.subr.mxu0 0.0
  %3785 = vmatpush1.msra.mxu0 0.0
  %3786 = vmatprep.subr.mxu0 0.0
  %3787 = vmatpush1.msra.mxu0 0.0
  %3788 = vmatprep.subr.mxu0 0.0
  %3789 = vmatpush1.msra.mxu0 0.0
  %3790 = vmatprep.subr.mxu0 0.0
  %3791 = vmatpush1.msra.mxu0 0.0
  %3792 = vmatprep.subr.mxu0 0.0
  %3793 = vmatpush1.msra.mxu0 0.0
  %3794 = vmatprep.subr.mxu0 0.0
  %3795 = vmatpush1.msra.mxu0 0.0
  %3796 = vmatprep.subr.mxu0 0.0
  %3797 = vmatpush1.msra.mxu0 0.0
  %3798 = vmatprep.subr.mxu0 0.0
  %3799 = vmatpush1.msra.mxu0 0.0
  %3800 = vmatprep.subr.mxu0 0.0
  %3801 = vmatpush1.msra.mxu0 0.0
  %3802 = vmatprep.subr.mxu0 0.0
  %3803 = vmatpush1.msra.mxu0 0.0
  %3804 = vmatprep.subr.mxu0 0.0
  %3805 = vmatpush1.msra.mxu0 0.0
  %3806 = vmatprep.subr.mxu0 0.0
  %3807 = vmatpush1.msra.mxu0 0.0
  %3808 = vmatprep.subr.mxu0 0.0
  %3809 = vmatpush1.msra.mxu0 0.0
  %3810 = vmatprep.subr.mxu0 0.0
  %3811 = vmatpush1.msra.mxu0 0.0
  %3812 = vmatprep.subr.mxu0 0.0
  %3813 = vmatpush1.msra.mxu0 0.0
  %3814 = vmatprep.subr.mxu0 0.0
  %3815 = vmatpush1.msra.mxu0 0.0
  %3816 = vmatprep.subr.mxu0 0.0
  %3817 = vmatpush1.msra.mxu0 0.0
  %3818 = vmatprep.subr.mxu0 0.0
  %3819 = vmatpush1.msra.mxu0 0.0
  %3820 = vmatprep.subr.mxu0 0.0
  %3821 = vmatpush1.msra.mxu0 0.0
  %3822 = vmatprep.subr.mxu0 0.0
  %3823 = vmatpush1.msra.mxu0 0.0
  %3824 = vmatprep.subr.mxu0 0.0
  %3825 = vmatpush1.msra.mxu0 0.0
  %3826 = vmatprep.subr.mxu0 0.0
  %3827 = vmatpush1.msra.mxu0 0.0
  %3828 = vmatprep.subr.mxu0 0.0
  %3829 = vmatpush1.msra.mxu0 0.0
  %3830 = vmatprep.subr.mxu0 0.0
  %3831 = vmatpush1.msra.mxu0 0.0
  %3832 = vmatprep.subr.mxu0 0.0
  %3833 = vmatpush1.msra.mxu0 0.0
  %3834 = vmatprep.mubr.f32.mxu0 0.0
  %3835 = vmatmul.mubr.f32.gmra.mrb[0].mxu0 %v58
  %v3836 = vpop.f32.mrb[0].mxu0
  %v3837 = vadd.f32 0.0, %v3836
  %v3838 = vpop.f32.mrb[0].mxu0
  %3839 = vmatprep.mubr.f32.mxu0 0.0
  %3840 = vmatmul.mubr.f32.gmra.mrb[0].mxu0 %v61
  %v3841 = vpop.f32.mrb[0].mxu0
  %v3842 = vadd.f32 0.0, %v3841
  %v3843 = vpop.f32.mrb[0].mxu0
  %3844 = vmatprep.mubr.f32.mxu0 0.0
  %3845 = vmatmul.mubr.f32.gmra.mrb[0].mxu0 %v64
  %v3846 = vpop.f32.mrb[0].mxu0
  %v3847 = vadd.f32 0.0, %v3846
  %v3848 = vpop.f32.mrb[0].mxu0
  %3849 = vmatprep.mubr.f32.mxu0 0.0
  %3850 = vmatmul.mubr.f32.gmra.mrb[0].mxu0 %v67
  %v3851 = vpop.f32.mrb[0].mxu0
  %v3852 = vadd.f32 0.0, %v3851
  %v3853 = vpop.f32.mrb[0].mxu0
  %3854 = vmatprep.mubr.f32.mxu0 0.0
  %3855 = vmatmul.mubr.f32.gmra.mrb[0].mxu0 %v70
  %v3856 = vpop.f32.mrb[0].mxu0
  %v3857 = vadd.f32 0.0, %v3856
  %v3858 = vpop.f32.mrb[0].mxu0
  %3859 = vmatprep.mubr.f32.mxu0 0.0
  %3860 = vmatmul.mubr.f32.gmra.mrb[0].mxu0 %v73
  %v3861 = vpop.f32.mrb[0].mxu0
  %v3862 = vadd.f32 0.0, %v3861
  %v3863 = vpop.f32.mrb[0].mxu0
  %3864 = vmatprep.mubr.f32.mxu0 0.0
  %3865 = vmatmul.mubr.f32.gmra.mrb[0].mxu0 %v76
  %v3866 = vpop.f32.mrb[0].mxu0
  %v3867 = vadd.f32 0.0, %v3866
  %v3868 = vpop.f32.mrb[0].mxu0
  %3869 = vmatprep.mubr.f32.mxu0 0.0
  %3870 = vmatmul.mubr.f32.gmra.mrb[0].mxu0 %v79
  %v3871 = vpop.f32.mrb[0].mxu0
  %v3872 = vadd.f32 0.0, %v3871
  %v3873 = vpop.f32.mrb[0].mxu0
  %3874 = vmatprep.mubr.f32.mxu0 0.0
  %3875 = vmatmul.mubr.f32.gmra.mrb[0].mxu0 %v82
  %v3876 = vpop.f32.mrb[0].mxu0
  %v3877 = vadd.f32 0.0, %v3876
  %v3878 = vpop.f32.mrb[0].mxu0
  %3879 = vmatprep.mubr.f32.mxu0 0.0
  %3880 = vmatmul.mubr.f32.gmra.mrb[0].mxu0 %v85
  %v3881 = vpop.f32.mrb[0].mxu0
  %v3882 = vadd.f32 0.0, %v3881
  %v3883 = vpop.f32.mrb[0].mxu0
  %3884 = vmatprep.mubr.f32.mxu0 0.0
  %3885 = vmatmul.mubr.f32.gmra.mrb[0].mxu0 %v88
  %v3886 = vpop.f32.mrb[0].mxu0
  %v3887 = vadd.f32 0.0, %v3886
  %v3888 = vpop.f32.mrb[0].mxu0
  %3889 = vmatprep.mubr.f32.mxu0 0.0
  %3890 = vmatmul.mubr.f32.gmra.mrb[0].mxu0 %v91
  %v3891 = vpop.f32.mrb[0].mxu0
  %v3892 = vadd.f32 0.0, %v3891
  %v3893 = vpop.f32.mrb[0].mxu0
  %3894 = vmatprep.mubr.f32.mxu0 0.0
  %3895 = vmatmul.mubr.f32.gmra.mrb[0].mxu0 %v94
  %v3896 = vpop.f32.mrb[0].mxu0
  %v3897 = vadd.f32 0.0, %v3896
  %v3898 = vpop.f32.mrb[0].mxu0
  %3899 = vmatprep.mubr.f32.mxu0 0.0
  %3900 = vmatmul.mubr.f32.gmra.mrb[0].mxu0 %v97
  %v3901 = vpop.f32.mrb[0].mxu0
  %v3902 = vadd.f32 0.0, %v3901
  %v3903 = vpop.f32.mrb[0].mxu0
  %3904 = vmatprep.mubr.f32.mxu0 0.0
  %3905 = vmatmul.mubr.f32.gmra.mrb[0].mxu0 %v100
  %v3906 = vpop.f32.mrb[0].mxu0
  %v3907 = vadd.f32 0.0, %v3906
  %v3908 = vpop.f32.mrb[0].mxu0
  %3909 = vmatprep.mubr.f32.mxu0 0.0
  %3910 = vmatmul.mubr.f32.gmra.mrb[0].mxu0 %v103
  %v3911 = vpop.f32.mrb[0].mxu0
  %v3912 = vadd.f32 0.0, %v3911
  %v3913 = vpop.f32.mrb[0].mxu0
  %3914 = vdwg.mxu0
  %v3916 = vsel %vm56, %v3750, 0
  %v3919 = vsel %vm56, %v3751, 0
  %v3922 = vsel %vm56, %v3752, 0
  %v3925 = vsel %vm56, %v3753, 0
  %v3928 = vsel %vm56, %v3754, 0
  %v3931 = vsel %vm56, %v3755, 0
  %v3934 = vsel %vm56, %v3756, 0
  %v3937 = vsel %vm56, %v3757, 0
  %v3940 = vsel %vm56, %v3758, 0
  %v3943 = vsel %vm56, %v3759, 0
  %v3946 = vsel %vm56, %v3760, 0
  %v3949 = vsel %vm56, %v3761, 0
  %v3952 = vsel %vm56, %v3762, 0
  %v3955 = vsel %vm56, %v3763, 0
  %v3958 = vsel %vm56, %v3764, 0
  %v3961 = vsel %vm56, %v3765, 0
  %3963 = vmatprep.subr.mxu0 0.0
  %3964 = vmatpush1.msra.mxu0 %v3766
  %3965 = vmatprep.subr.mxu0 0.0
  %3966 = vmatpush1.msra.mxu0 %v3767
  %3967 = vmatprep.subr.mxu0 0.0
  %3968 = vmatpush1.msra.mxu0 0.0
  %3969 = vmatprep.subr.mxu0 0.0
  %3970 = vmatpush1.msra.mxu0 0.0
  %3971 = vmatprep.subr.mxu0 0.0
  %3972 = vmatpush1.msra.mxu0 0.0
  %3973 = vmatprep.subr.mxu0 0.0
  %3974 = vmatpush1.msra.mxu0 0.0
  %3975 = vmatprep.subr.mxu0 0.0
  %3976 = vmatpush1.msra.mxu0 0.0
  %3977 = vmatprep.subr.mxu0 0.0
  %3978 = vmatpush1.msra.mxu0 0.0
  %3979 = vmatprep.subr.mxu0 0.0
  %3980 = vmatpush1.msra.mxu0 0.0
  %3981 = vmatprep.subr.mxu0 0.0
  %3982 = vmatpush1.msra.mxu0 0.0
  %3983 = vmatprep.subr.mxu0 0.0
  %3984 = vmatpush1.msra.mxu0 0.0
  %3985 = vmatprep.subr.mxu0 0.0
  %3986 = vmatpush1.msra.mxu0 0.0
  %3987 = vmatprep.subr.mxu0 0.0
  %3988 = vmatpush1.msra.mxu0 0.0
  %3989 = vmatprep.subr.mxu0 0.0
  %3990 = vmatpush1.msra.mxu0 0.0
  %3991 = vmatprep.subr.mxu0 0.0
  %3992 = vmatpush1.msra.mxu0 0.0
  %3993 = vmatprep.subr.mxu0 0.0
  %3994 = vmatpush1.msra.mxu0 0.0
  %3995 = vmatprep.subr.mxu0 0.0
  %3996 = vmatpush1.msra.mxu0 0.0
  %3997 = vmatprep.subr.mxu0 0.0
  %3998 = vmatpush1.msra.mxu0 0.0
  %3999 = vmatprep.subr.mxu0 0.0
  %4000 = vmatpush1.msra.mxu0 0.0
  %4001 = vmatprep.subr.mxu0 0.0
  %4002 = vmatpush1.msra.mxu0 0.0
  %4003 = vmatprep.subr.mxu0 0.0
  %4004 = vmatpush1.msra.mxu0 0.0
  %4005 = vmatprep.subr.mxu0 0.0
  %4006 = vmatpush1.msra.mxu0 0.0
  %4007 = vmatprep.subr.mxu0 0.0
  %4008 = vmatpush1.msra.mxu0 0.0
  %4009 = vmatprep.subr.mxu0 0.0
  %4010 = vmatpush1.msra.mxu0 0.0
  %4011 = vmatprep.subr.mxu0 0.0
  %4012 = vmatpush1.msra.mxu0 0.0
  %4013 = vmatprep.subr.mxu0 0.0
  %4014 = vmatpush1.msra.mxu0 0.0
  %4015 = vmatprep.subr.mxu0 0.0
  %4016 = vmatpush1.msra.mxu0 0.0
  %4017 = vmatprep.subr.mxu0 0.0
  %4018 = vmatpush1.msra.mxu0 0.0
  %4019 = vmatprep.subr.mxu0 0.0
  %4020 = vmatpush1.msra.mxu0 0.0
  %4021 = vmatprep.subr.mxu0 0.0
  %4022 = vmatpush1.msra.mxu0 0.0
  %4023 = vmatprep.subr.mxu0 0.0
  %4024 = vmatpush1.msra.mxu0 0.0
  %4025 = vmatprep.subr.mxu0 0.0
  %4026 = vmatpush1.msra.mxu0 0.0
  %4027 = vmatprep.mubr.f32.mxu0 0.0
  %4028 = vmatmul.mubr.f32.gmra.mrb[0].mxu0 %v3916
  %v4029 = vpop.f32.mrb[0].mxu0
  %v4030 = vadd.f32 %v3837, %v4029
  %v4031 = vpop.f32.mrb[0].mxu0
  %4032 = vmatprep.mubr.f32.mxu0 0.0
  %4033 = vmatmul.mubr.f32.gmra.mrb[0].mxu0 %v3919
  %v4034 = vpop.f32.mrb[0].mxu0
  %v4035 = vadd.f32 %v3842, %v4034
  %v4036 = vpop.f32.mrb[0].mxu0
  %4037 = vmatprep.mubr.f32.mxu0 0.0
  %4038 = vmatmul.mubr.f32.gmra.mrb[0].mxu0 %v3922
  %v4039 = vpop.f32.mrb[0].mxu0
  %v4040 = vadd.f32 %v3847, %v4039
  %v4041 = vpop.f32.mrb[0].mxu0
  %4042 = vmatprep.mubr.f32.mxu0 0.0
  %4043 = vmatmul.mubr.f32.gmra.mrb[0].mxu0 %v3925
  %v4044 = vpop.f32.mrb[0].mxu0
  %v4045 = vadd.f32 %v3852, %v4044
  %v4046 = vpop.f32.mrb[0].mxu0
  %4047 = vmatprep.mubr.f32.mxu0 0.0
  %4048 = vmatmul.mubr.f32.gmra.mrb[0].mxu0 %v3928
  %v4049 = vpop.f32.mrb[0].mxu0
  %v4050 = vadd.f32 %v3857, %v4049
  %v4051 = vpop.f32.mrb[0].mxu0
  %4052 = vmatprep.mubr.f32.mxu0 0.0
  %4053 = vmatmul.mubr.f32.gmra.mrb[0].mxu0 %v3931
  %v4054 = vpop.f32.mrb[0].mxu0
  %v4055 = vadd.f32 %v3862, %v4054
  %v4056 = vpop.f32.mrb[0].mxu0
  %4057 = vmatprep.mubr.f32.mxu0 0.0
  %4058 = vmatmul.mubr.f32.gmra.mrb[0].mxu0 %v3934
  %v4059 = vpop.f32.mrb[0].mxu0
  %v4060 = vadd.f32 %v3867, %v4059
  %v4061 = vpop.f32.mrb[0].mxu0
  %4062 = vmatprep.mubr.f32.mxu0 0.0
  %4063 = vmatmul.mubr.f32.gmra.mrb[0].mxu0 %v3937
  %v4064 = vpop.f32.mrb[0].mxu0
  %v4065 = vadd.f32 %v3872, %v4064
  %v4066 = vpop.f32.mrb[0].mxu0
  %4067 = vmatprep.mubr.f32.mxu0 0.0
  %4068 = vmatmul.mubr.f32.gmra.mrb[0].mxu0 %v3940
  %v4069 = vpop.f32.mrb[0].mxu0
  %v4070 = vadd.f32 %v3877, %v4069
  %v4071 = vpop.f32.mrb[0].mxu0
  %4072 = vmatprep.mubr.f32.mxu0 0.0
  %4073 = vmatmul.mubr.f32.gmra.mrb[0].mxu0 %v3943
  %v4074 = vpop.f32.mrb[0].mxu0
  %v4075 = vadd.f32 %v3882, %v4074
  %v4076 = vpop.f32.mrb[0].mxu0
  %4077 = vmatprep.mubr.f32.mxu0 0.0
  %4078 = vmatmul.mubr.f32.gmra.mrb[0].mxu0 %v3946
  %v4079 = vpop.f32.mrb[0].mxu0
  %v4080 = vadd.f32 %v3887, %v4079
  %v4081 = vpop.f32.mrb[0].mxu0
  %4082 = vmatprep.mubr.f32.mxu0 0.0
  %4083 = vmatmul.mubr.f32.gmra.mrb[0].mxu0 %v3949
  %v4084 = vpop.f32.mrb[0].mxu0
  %v4085 = vadd.f32 %v3892, %v4084
  %v4086 = vpop.f32.mrb[0].mxu0
  %4087 = vmatprep.mubr.f32.mxu0 0.0
  %4088 = vmatmul.mubr.f32.gmra.mrb[0].mxu0 %v3952
  %v4089 = vpop.f32.mrb[0].mxu0
  %v4090 = vadd.f32 %v3897, %v4089
  %v4091 = vpop.f32.mrb[0].mxu0
  %4092 = vmatprep.mubr.f32.mxu0 0.0
  %4093 = vmatmul.mubr.f32.gmra.mrb[0].mxu0 %v3955
  %v4094 = vpop.f32.mrb[0].mxu0
  %v4095 = vadd.f32 %v3902, %v4094
  %v4096 = vpop.f32.mrb[0].mxu0
  %4097 = vmatprep.mubr.f32.mxu0 0.0
  %4098 = vmatmul.mubr.f32.gmra.mrb[0].mxu0 %v3958
  %v4099 = vpop.f32.mrb[0].mxu0
  %v4100 = vadd.f32 %v3907, %v4099
  %v4101 = vpop.f32.mrb[0].mxu0
  %4102 = vmatprep.mubr.f32.mxu0 0.0
  %4103 = vmatmul.mubr.f32.gmra.mrb[0].mxu0 %v3961
  %v4104 = vpop.f32.mrb[0].mxu0
  %v4105 = vadd.f32 %v3912, %v4104
  %v4106 = vpop.f32.mrb[0].mxu0
  %4107 = vdwg.mxu0
  %v4108 = vlaneseq
  %v4109 = vshrl.u32 %v4108, 7
  %v4110 = vsub.s32 3, %v4109
  %v4111 = vrot.slane %v53, %v4110
  %v4112 = vadd.f32 %v4030, %v4111
  %v4113 = vadd.f32 %v4035, %v4111
  %v4114 = vadd.f32 %v4040, %v4111
  %v4115 = vadd.f32 %v4045, %v4111
  %v4116 = vadd.f32 %v4050, %v4111
  %v4117 = vadd.f32 %v4055, %v4111
  %v4118 = vadd.f32 %v4060, %v4111
  %v4119 = vadd.f32 %v4065, %v4111
  %v4120 = vadd.f32 %v4070, %v4111
  %v4121 = vadd.f32 %v4075, %v4111
  %v4122 = vadd.f32 %v4080, %v4111
  %v4123 = vadd.f32 %v4085, %v4111
  %v4124 = vadd.f32 %v4090, %v4111
  %v4125 = vadd.f32 %v4095, %v4111
  %v4126 = vadd.f32 %v4100, %v4111
  %v4127 = vadd.f32 %v4105, %v4111
  %v4128 = vmax.f32 %v4112, 0.0
  %v4129 = vmax.f32 %v4113, 0.0
  %v4130 = vmax.f32 %v4114, 0.0
  %v4131 = vmax.f32 %v4115, 0.0
  %v4132 = vmax.f32 %v4116, 0.0
  %v4133 = vmax.f32 %v4117, 0.0
  %v4134 = vmax.f32 %v4118, 0.0
  %v4135 = vmax.f32 %v4119, 0.0
  %v4136 = vmax.f32 %v4120, 0.0
  %v4137 = vmax.f32 %v4121, 0.0
  %v4138 = vmax.f32 %v4122, 0.0
  %v4139 = vmax.f32 %v4123, 0.0
  %v4140 = vmax.f32 %v4124, 0.0
  %v4141 = vmax.f32 %v4125, 0.0
  %v4142 = vmax.f32 %v4126, 0.0
  %v4143 = vmax.f32 %v4127, 0.0
  %v4144 = vld [vmem:[%s3 + $0x60] sm:$0xff]
  %v4145 = vld [vmem:[%s3 + $0x68] sm:$0xff]
  %v4146 = vlaneseq
  %v4147 = vshrl.u32 %v4146, 7
  %v4148 = vsub.s32 4, %v4147
  %v4149 = vrot.slane %v53, %v4148
  %v4151 = vsel %vm56, %v4128, 0
  %v4154 = vsel %vm56, %v4129, 0
  %v4157 = vsel %vm56, %v4130, 0
  %v4160 = vsel %vm56, %v4131, 0
  %v4163 = vsel %vm56, %v4132, 0
  %v4166 = vsel %vm56, %v4133, 0
  %v4169 = vsel %vm56, %v4134, 0
  %v4172 = vsel %vm56, %v4135, 0
  %v4175 = vsel %vm56, %v4136, 0
  %v4178 = vsel %vm56, %v4137, 0
  %v4181 = vsel %vm56, %v4138, 0
  %v4184 = vsel %vm56, %v4139, 0
  %v4187 = vsel %vm56, %v4140, 0
  %v4190 = vsel %vm56, %v4141, 0
  %v4193 = vsel %vm56, %v4142, 0
  %v4196 = vsel %vm56, %v4143, 0
  %4198 = vmatprep.subr.mxu0 0.0
  %4199 = vmatpush1.msra.mxu0 %v4144
  %4200 = vmatprep.subr.mxu0 0.0
  %4201 = vmatpush1.msra.mxu0 %v4145
  %4202 = vmatprep.subr.mxu0 0.0
  %4203 = vmatpush1.msra.mxu0 0.0
  %4204 = vmatprep.subr.mxu0 0.0
  %4205 = vmatpush1.msra.mxu0 0.0
  %4206 = vmatprep.subr.mxu0 0.0
  %4207 = vmatpush1.msra.mxu0 0.0
  %4208 = vmatprep.subr.mxu0 0.0
  %4209 = vmatpush1.msra.mxu0 0.0
  %4210 = vmatprep.subr.mxu0 0.0
  %4211 = vmatpush1.msra.mxu0 0.0
  %4212 = vmatprep.subr.mxu0 0.0
  %4213 = vmatpush1.msra.mxu0 0.0
  %4214 = vmatprep.subr.mxu0 0.0
  %4215 = vmatpush1.msra.mxu0 0.0
  %4216 = vmatprep.subr.mxu0 0.0
  %4217 = vmatpush1.msra.mxu0 0.0
  %4218 = vmatprep.subr.mxu0 0.0
  %4219 = vmatpush1.msra.mxu0 0.0
  %4220 = vmatprep.subr.mxu0 0.0
  %4221 = vmatpush1.msra.mxu0 0.0
  %4222 = vmatprep.subr.mxu0 0.0
  %4223 = vmatpush1.msra.mxu0 0.0
  %4224 = vmatprep.subr.mxu0 0.0
  %4225 = vmatpush1.msra.mxu0 0.0
  %4226 = vmatprep.subr.mxu0 0.0
  %4227 = vmatpush1.msra.mxu0 0.0
  %4228 = vmatprep.subr.mxu0 0.0
  %4229 = vmatpush1.msra.mxu0 0.0
  %4230 = vmatprep.subr.mxu0 0.0
  %4231 = vmatpush1.msra.mxu0 0.0
  %4232 = vmatprep.subr.mxu0 0.0
  %4233 = vmatpush1.msra.mxu0 0.0
  %4234 = vmatprep.subr.mxu0 0.0
  %4235 = vmatpush1.msra.mxu0 0.0
  %4236 = vmatprep.subr.mxu0 0.0
  %4237 = vmatpush1.msra.mxu0 0.0
  %4238 = vmatprep.subr.mxu0 0.0
  %4239 = vmatpush1.msra.mxu0 0.0
  %4240 = vmatprep.subr.mxu0 0.0
  %4241 = vmatpush1.msra.mxu0 0.0
  %4242 = vmatprep.subr.mxu0 0.0
  %4243 = vmatpush1.msra.mxu0 0.0
  %4244 = vmatprep.subr.mxu0 0.0
  %4245 = vmatpush1.msra.mxu0 0.0
  %4246 = vmatprep.subr.mxu0 0.0
  %4247 = vmatpush1.msra.mxu0 0.0
  %4248 = vmatprep.subr.mxu0 0.0
  %4249 = vmatpush1.msra.mxu0 0.0
  %4250 = vmatprep.subr.mxu0 0.0
  %4251 = vmatpush1.msra.mxu0 0.0
  %4252 = vmatprep.subr.mxu0 0.0
  %4253 = vmatpush1.msra.mxu0 0.0
  %4254 = vmatprep.subr.mxu0 0.0
  %4255 = vmatpush1.msra.mxu0 0.0
  %4256 = vmatprep.subr.mxu0 0.0
  %4257 = vmatpush1.msra.mxu0 0.0
  %4258 = vmatprep.subr.mxu0 0.0
  %4259 = vmatpush1.msra.mxu0 0.0
  %4260 = vmatprep.subr.mxu0 0.0
  %4261 = vmatpush1.msra.mxu0 0.0
  %4262 = vmatprep.mubr.f32.mxu0 0.0
  %4263 = vmatmul.mubr.f32.gmra.mrb[0].mxu0 %v4151
  %v4264 = vpop.f32.mrb[0].mxu0
  %v4265 = vadd.f32 %v4149, %v4264
  %v4266 = vpop.f32.mrb[0].mxu0
  %4267 = vmatprep.mubr.f32.mxu0 0.0
  %4268 = vmatmul.mubr.f32.gmra.mrb[0].mxu0 %v4154
  %v4269 = vpop.f32.mrb[0].mxu0
  %v4270 = vadd.f32 %v4149, %v4269
  %v4271 = vpop.f32.mrb[0].mxu0
  %4272 = vmatprep.mubr.f32.mxu0 0.0
  %4273 = vmatmul.mubr.f32.gmra.mrb[0].mxu0 %v4157
  %v4274 = vpop.f32.mrb[0].mxu0
  %v4275 = vadd.f32 %v4149, %v4274
  %v4276 = vpop.f32.mrb[0].mxu0
  %4277 = vmatprep.mubr.f32.mxu0 0.0
  %4278 = vmatmul.mubr.f32.gmra.mrb[0].mxu0 %v4160
  %v4279 = vpop.f32.mrb[0].mxu0
  %v4280 = vadd.f32 %v4149, %v4279
  %v4281 = vpop.f32.mrb[0].mxu0
  %4282 = vmatprep.mubr.f32.mxu0 0.0
  %4283 = vmatmul.mubr.f32.gmra.mrb[0].mxu0 %v4163
  %v4284 = vpop.f32.mrb[0].mxu0
  %v4285 = vadd.f32 %v4149, %v4284
  %v4286 = vpop.f32.mrb[0].mxu0
  %4287 = vmatprep.mubr.f32.mxu0 0.0
  %4288 = vmatmul.mubr.f32.gmra.mrb[0].mxu0 %v4166
  %v4289 = vpop.f32.mrb[0].mxu0
  %v4290 = vadd.f32 %v4149, %v4289
  %v4291 = vpop.f32.mrb[0].mxu0
  %4292 = vmatprep.mubr.f32.mxu0 0.0
  %4293 = vmatmul.mubr.f32.gmra.mrb[0].mxu0 %v4169
  %v4294 = vpop.f32.mrb[0].mxu0
  %v4295 = vadd.f32 %v4149, %v4294
  %v4296 = vpop.f32.mrb[0].mxu0
  %4297 = vmatprep.mubr.f32.mxu0 0.0
  %4298 = vmatmul.mubr.f32.gmra.mrb[0].mxu0 %v4172
  %v4299 = vpop.f32.mrb[0].mxu0
  %v4300 = vadd.f32 %v4149, %v4299
  %v4301 = vpop.f32.mrb[0].mxu0
  %4302 = vmatprep.mubr.f32.mxu0 0.0
  %4303 = vmatmul.mubr.f32.gmra.mrb[0].mxu0 %v4175
  %v4304 = vpop.f32.mrb[0].mxu0
  %v4305 = vadd.f32 %v4149, %v4304
  %v4306 = vpop.f32.mrb[0].mxu0
  %4307 = vmatprep.mubr.f32.mxu0 0.0
  %4308 = vmatmul.mubr.f32.gmra.mrb[0].mxu0 %v4178
  %v4309 = vpop.f32.mrb[0].mxu0
  %v4310 = vadd.f32 %v4149, %v4309
  %v4311 = vpop.f32.mrb[0].mxu0
  %4312 = vmatprep.mubr.f32.mxu0 0.0
  %4313 = vmatmul.mubr.f32.gmra.mrb[0].mxu0 %v4181
  %v4314 = vpop.f32.mrb[0].mxu0
  %v4315 = vadd.f32 %v4149, %v4314
  %v4316 = vpop.f32.mrb[0].mxu0
  %4317 = vmatprep.mubr.f32.mxu0 0.0
  %4318 = vmatmul.mubr.f32.gmra.mrb[0].mxu0 %v4184
  %v4319 = vpop.f32.mrb[0].mxu0
  %v4320 = vadd.f32 %v4149, %v4319
  %v4321 = vpop.f32.mrb[0].mxu0
  %4322 = vmatprep.mubr.f32.mxu0 0.0
  %4323 = vmatmul.mubr.f32.gmra.mrb[0].mxu0 %v4187
  %v4324 = vpop.f32.mrb[0].mxu0
  %v4325 = vadd.f32 %v4149, %v4324
  %v4326 = vpop.f32.mrb[0].mxu0
  %4327 = vmatprep.mubr.f32.mxu0 0.0
  %4328 = vmatmul.mubr.f32.gmra.mrb[0].mxu0 %v4190
  %v4329 = vpop.f32.mrb[0].mxu0
  %v4330 = vadd.f32 %v4149, %v4329
  %v4331 = vpop.f32.mrb[0].mxu0
  %4332 = vmatprep.mubr.f32.mxu0 0.0
  %4333 = vmatmul.mubr.f32.gmra.mrb[0].mxu0 %v4193
  %v4334 = vpop.f32.mrb[0].mxu0
  %v4335 = vadd.f32 %v4149, %v4334
  %v4336 = vpop.f32.mrb[0].mxu0
  %4337 = vmatprep.mubr.f32.mxu0 0.0
  %4338 = vmatmul.mubr.f32.gmra.mrb[0].mxu0 %v4196
  %v4339 = vpop.f32.mrb[0].mxu0
  %v4340 = vadd.f32 %v4149, %v4339
  %v4341 = vpop.f32.mrb[0].mxu0
  %4342 = vdwg.mxu0
  %v4343 = vsub.f32 0.0, %v4265
  %v4344 = vsub.f32 0.0, %v4270
  %v4345 = vsub.f32 0.0, %v4275
  %v4346 = vsub.f32 0.0, %v4280
  %v4347 = vsub.f32 0.0, %v4285
  %v4348 = vsub.f32 0.0, %v4290
  %v4349 = vsub.f32 0.0, %v4295
  %v4350 = vsub.f32 0.0, %v4300
  %v4351 = vsub.f32 0.0, %v4305
  %v4352 = vsub.f32 0.0, %v4310
  %v4353 = vsub.f32 0.0, %v4315
  %v4354 = vsub.f32 0.0, %v4320
  %v4355 = vsub.f32 0.0, %v4325
  %v4356 = vsub.f32 0.0, %v4330
  %v4357 = vsub.f32 0.0, %v4335
  %v4358 = vsub.f32 0.0, %v4340
  %v4359 = vmul.f32 %v4343, 1.442695
  %v4360 = vpow.pop %v4359
  %v4361 = vmul.f32 %v4344, 1.442695
  %v4362 = vpow.pop %v4361
  %v4363 = vmul.f32 %v4345, 1.442695
  %v4364 = vpow.pop %v4363
  %v4365 = vmul.f32 %v4346, 1.442695
  %v4366 = vpow.pop %v4365
  %v4367 = vmul.f32 %v4347, 1.442695
  %v4368 = vpow.pop %v4367
  %v4369 = vmul.f32 %v4348, 1.442695
  %v4370 = vpow.pop %v4369
  %v4371 = vmul.f32 %v4349, 1.442695
  %v4372 = vpow.pop %v4371
  %v4373 = vmul.f32 %v4350, 1.442695
  %v4374 = vpow.pop %v4373
  %v4375 = vmul.f32 %v4351, 1.442695
  %v4376 = vpow.pop %v4375
  %v4377 = vmul.f32 %v4352, 1.442695
  %v4378 = vpow.pop %v4377
  %v4379 = vmul.f32 %v4353, 1.442695
  %v4380 = vpow.pop %v4379
  %v4381 = vmul.f32 %v4354, 1.442695
  %v4382 = vpow.pop %v4381
  %v4383 = vmul.f32 %v4355, 1.442695
  %v4384 = vpow.pop %v4383
  %v4385 = vmul.f32 %v4356, 1.442695
  %v4386 = vpow.pop %v4385
  %v4387 = vmul.f32 %v4357, 1.442695
  %v4388 = vpow.pop %v4387
  %v4389 = vmul.f32 %v4358, 1.442695
  %v4390 = vpow.pop %v4389
  %v4391 = vadd.f32 %v4360, 1.0
  %v4392 = vadd.f32 %v4362, 1.0
  %v4393 = vadd.f32 %v4364, 1.0
  %v4394 = vadd.f32 %v4366, 1.0
  %v4395 = vadd.f32 %v4368, 1.0
  %v4396 = vadd.f32 %v4370, 1.0
  %v4397 = vadd.f32 %v4372, 1.0
  %v4398 = vadd.f32 %v4374, 1.0
  %v4399 = vadd.f32 %v4376, 1.0
  %v4400 = vadd.f32 %v4378, 1.0
  %v4401 = vadd.f32 %v4380, 1.0
  %v4402 = vadd.f32 %v4382, 1.0
  %v4403 = vadd.f32 %v4384, 1.0
  %v4404 = vadd.f32 %v4386, 1.0
  %v4405 = vadd.f32 %v4388, 1.0
  %v4406 = vadd.f32 %v4390, 1.0
  %v4407 = vrcp.pop %v4391
  %v4408 = vmul.f32 1.0, %v4407
  %v4409 = vrcp.pop %v4392
  %v4410 = vmul.f32 1.0, %v4409
  %v4411 = vrcp.pop %v4393
  %v4412 = vmul.f32 1.0, %v4411
  %v4413 = vrcp.pop %v4394
  %v4414 = vmul.f32 1.0, %v4413
  %v4415 = vrcp.pop %v4395
  %v4416 = vmul.f32 1.0, %v4415
  %v4417 = vrcp.pop %v4396
  %v4418 = vmul.f32 1.0, %v4417
  %v4419 = vrcp.pop %v4397
  %v4420 = vmul.f32 1.0, %v4419
  %v4421 = vrcp.pop %v4398
  %v4422 = vmul.f32 1.0, %v4421
  %v4423 = vrcp.pop %v4399
  %v4424 = vmul.f32 1.0, %v4423
  %v4425 = vrcp.pop %v4400
  %v4426 = vmul.f32 1.0, %v4425
  %v4427 = vrcp.pop %v4401
  %v4428 = vmul.f32 1.0, %v4427
  %v4429 = vrcp.pop %v4402
  %v4430 = vmul.f32 1.0, %v4429
  %v4431 = vrcp.pop %v4403
  %v4432 = vmul.f32 1.0, %v4431
  %v4433 = vrcp.pop %v4404
  %v4434 = vmul.f32 1.0, %v4433
  %v4435 = vrcp.pop %v4405
  %v4436 = vmul.f32 1.0, %v4435
  %v4437 = vrcp.pop %v4406
  %v4438 = vmul.f32 1.0, %v4437
  %4439 = vst.msk [vmem:[%s5] sm:$0xff] %vm56, %v4408
  %4440 = vst.msk [vmem:[%s5 + $0x8] sm:$0xff] %vm56, %v4410
  %4441 = vst.msk [vmem:[%s5 + $0x10] sm:$0xff] %vm56, %v4412
  %4442 = vst.msk [vmem:[%s5 + $0x18] sm:$0xff] %vm56, %v4414
  %4443 = vst.msk [vmem:[%s5 + $0x20] sm:$0xff] %vm56, %v4416
  %4444 = vst.msk [vmem:[%s5 + $0x28] sm:$0xff] %vm56, %v4418
  %4445 = vst.msk [vmem:[%s5 + $0x30] sm:$0xff] %vm56, %v4420
  %4446 = vst.msk [vmem:[%s5 + $0x38] sm:$0xff] %vm56, %v4422
  %4447 = vst.msk [vmem:[%s5 + $0x40] sm:$0xff] %vm56, %v4424
  %4448 = vst.msk [vmem:[%s5 + $0x48] sm:$0xff] %vm56, %v4426
  %4449 = vst.msk [vmem:[%s5 + $0x50] sm:$0xff] %vm56, %v4428
  %4450 = vst.msk [vmem:[%s5 + $0x58] sm:$0xff] %vm56, %v4430
  %4451 = vst.msk [vmem:[%s5 + $0x60] sm:$0xff] %vm56, %v4432
  %4452 = vst.msk [vmem:[%s5 + $0x68] sm:$0xff] %vm56, %v4434
  %4453 = vst.msk [vmem:[%s5 + $0x70] sm:$0xff] %vm56, %v4436
  %4454 = vst.msk [vmem:[%s5 + $0x78] sm:$0xff] %vm56, %v4438
  // Predicated region
  $region22: #{tpu_custom_call.1} parent=0 // pred_check
    _
  $region23: #{tpu_custom_call.1} parent=0 // pred_check_branch
    %4456 = sbr.rel (0) target = $region25
  $region24: #{tpu_custom_call.1} parent=0 // pred_region
    _
  $region25: #{tpu_custom_call.1} parent=0 // pred_fallthru
    _
  // Predicated region
  $region26: #{tpu_custom_call.1} parent=0 // pred_check
    _
  $region27: #{tpu_custom_call.1} parent=0 // pred_check_branch
    %4458 = sbr.rel (0) target = $region29
  $region28: #{tpu_custom_call.1} parent=0 // pred_region
    _
  $region29: #{tpu_custom_call.1} parent=0 // pred_fallthru
    _

</llo_original>
